<compile_context>
chip_gen: v5e
topology: v5e:2x2
jax: 0.10.0
libtpu: 0.0.40
codegen_flags: <defaults>
</compile_context>

<pallas_src>
import jax
import jax.numpy as jnp
from jax import lax
from jax.experimental import pallas as pl
from jax.experimental.pallas import tpu as pltpu

# -----------------------------------------------------------------------------
# Hyper-parameters (small, consistent with the PyTorch module; embed_dim must
# equal hidden_dim because decoder input_size == hidden_dim).
# -----------------------------------------------------------------------------
IN_VOCAB = 11
OUT_VOCAB = 16
NUM_LAYERS = 2
EMBED_DIM = 32
HIDDEN_DIM = 32               # encoder hidden per direction
DEC_HIDDEN = 2 * HIDDEN_DIM   # decoder hidden = 2 * hidden_dim
MAX_LEN = 8
BATCH = 2
SEQ_LEN = 8
CLS_ID = 1                    # stand-in for out_tokenizer.token2idx('[CLS]')

H = HIDDEN_DIM
DH = DEC_HIDDEN               # 64: encoder [fwd|bwd] state width == decoder hidden
GW = DH                       # 64: gate block width (i/f/g/o) in enc (regrouped) & dec
B = BATCH
T = SEQ_LEN
V = OUT_VOCAB
G_ENC = 8 * H                 # 256: fwd+bwd encoder gate width

_VMEM = pl.BlockSpec(memory_space=pltpu.MemorySpace.VMEM)


# -----------------------------------------------------------------------------
# Shared LSTM gate update.  Works for both the regrouped encoder layout
# ([i_f i_b | f_f f_b | g_f g_b | o_f o_b], state = [c_fwd|c_bwd]) and the
# natural decoder layout ([i|f|g|o], hidden=64) because the block width is 64
# in both cases.  sigmoid over the contiguous i|f block, tanh only over g.
# -----------------------------------------------------------------------------
def _lstm_step(gates, c):
    sif = jax.nn.sigmoid(gates[:, 0:2 * GW])          # i|f, one 128-lane slab
    g = jnp.tanh(gates[:, 2 * GW:3 * GW])
    o = jax.nn.sigmoid(gates[:, 3 * GW:4 * GW])
    c_new = sif[:, GW:2 * GW] * c + sif[:, 0:GW] * g
    return o * jnp.tanh(c_new), c_new


# -----------------------------------------------------------------------------
# Fused Pallas kernel
# -----------------------------------------------------------------------------
def _seq2seq_kernel(xp_ref,
                    wx0_ref, bx0_ref, u0_ref,
                    wx1_ref, bx1_ref, u1_ref,
                    d0w_ref, d0u_ref, d0b_ref,
                    d1w_ref, d1u_ref, d1b_ref,
                    lw_ref, lb_ref,
                    out_ref, x1buf_ref):
    f32 = jnp.float32
    bf16 = jnp.bfloat16

    def enc_layer(xproj, u, store_outputs):
        # xproj: (T*B, 8H) f32, row block s already pairs fwd time s / bwd time T-1-s.
        h = jnp.zeros((B, DH), f32)                   # [h_fwd | h_bwd]
        c = jnp.zeros((B, DH), f32)
        for s in range(T):                            # fully unrolled
            gates = xproj[s * B:(s + 1) * B, :] + jnp.dot(
                h.astype(bf16), u, preferred_element_type=f32)      # (B, 8H)
            h, c = _lstm_step(gates, c)
            if store_outputs:
                # Stream layer-0 step outputs to VMEM scratch (off the h->h chain):
                #   row s,     cols 0:DH   <- [h_fwd(s)     | h_bwd(T-1-s)]
                #   row T-1-s, cols DH:2DH <- [h_fwd(s)     | h_bwd(T-1-s)]
                # so row block r ends up holding the time-paired layer-1 input.
                x1buf_ref[s * B:(s + 1) * B, 0:DH] = h
                x1buf_ref[(T - 1 - s) * B:(T - s) * B, DH:2 * DH] = h
        # After the last step h == [h_fwd final | h_bwd final] == decoder init.
        return h, c

    # ---------------- encoder ----------------
    # Input projection for every timestep & both directions: one hoisted matmul.
    xproj0 = (jnp.dot(xp_ref[...], wx0_ref[...], preferred_element_type=f32)
              + bx0_ref[...])                         # (T*B, 8H)
    h0, c0 = enc_layer(xproj0, u0_ref[...], True)

    xproj1 = (jnp.dot(x1buf_ref[...].astype(bf16), wx1_ref[...],
                      preferred_element_type=f32) + bx1_ref[...])
    h1, c1 = enc_layer(xproj1, u1_ref[...], False)

    # ---------------- greedy autoregressive decoder ----------------
    d0w = d0w_ref[...]
    d0u = d0u_ref[...]
    d0b = d0b_ref[...]
    d1w = d1w_ref[...]
    d1u = d1u_ref[...]
    d1b = d1b_ref[...]
    lw = lw_ref[...]
    lb = lb_ref[...]

    lane = lax.broadcasted_iota(jnp.int32, (B, V), 1)   # built once (hoisted)
    lane_f = lane.astype(f32)
    prev = (lane == CLS_ID).astype(f32)                  # [CLS] one-hot
    preds = [prev]

    for _t in range(1, MAX_LEN):                         # fully unrolled
        # torch-style argmax (lowest index wins ties), kept in f32
        m = jnp.max(prev, axis=-1, keepdims=True)
        idx = jnp.min(jnp.where(prev == m, lane_f, jnp.float32(V)),
                      axis=-1, keepdims=True)
        onehot = (lane_f == idx).astype(bf16)
        # layer 0: one-hot @ (out_emb @ W_ih)  +  h0 @ W_hh   (no lane concat)
        g0 = (jnp.dot(onehot, d0w, preferred_element_type=f32)
              + jnp.dot(h0.astype(bf16), d0u, preferred_element_type=f32) + d0b)
        h0, c0 = _lstm_step(g0, c0)
        # layer 1: h0 @ W_ih  +  h1 @ W_hh
        g1 = (jnp.dot(h0.astype(bf16), d1w, preferred_element_type=f32)
              + jnp.dot(h1.astype(bf16), d1u, preferred_element_type=f32) + d1b)
        h1, c1 = _lstm_step(g1, c1)
        # linear head
        pred = jnp.dot(h1.astype(bf16), lw, preferred_element_type=f32) + lb
        preds.append(pred)
        prev = pred

    # Single lane-dense (B, MAX_LEN*V) = (2, 128) store.
    out_ref[...] = jnp.concatenate(preds, axis=-1)


# -----------------------------------------------------------------------------
# Parameter construction (deterministic, PyTorch-style init ranges)
# -----------------------------------------------------------------------------
def _uniform(key, shape, bound):
    return jax.random.uniform(key, shape, jnp.float32, -bound, bound)


def init_params(key):
    params = {}
    keys = iter(jax.random.split(key, 64))

    in_emb = jax.random.normal(next(keys), (IN_VOCAB, EMBED_DIM), jnp.float32)
    params["in_emb"] = in_emb.at[0].set(0.0)            # padding_idx=0
    out_emb = jax.random.normal(next(keys), (OUT_VOCAB, EMBED_DIM), jnp.float32)
    params["out_emb"] = out_emb.at[0].set(0.0)

    enc_bound = 1.0 / (HIDDEN_DIM ** 0.5)
    enc = []
    for layer in range(NUM_LAYERS):
        in_size = EMBED_DIM if layer == 0 else 2 * HIDDEN_DIM
        per_dir = []
        for _direction in range(2):
            wih = _uniform(next(keys), (4 * HIDDEN_DIM, in_size), enc_bound)
            whh = _uniform(next(keys), (4 * HIDDEN_DIM, HIDDEN_DIM), enc_bound)
            bih = _uniform(next(keys), (4 * HIDDEN_DIM,), enc_bound)
            bhh = _uniform(next(keys), (4 * HIDDEN_DIM,), enc_bound)
            per_dir.append((wih.T, whh.T, (bih + bhh)[None, :]))
        enc.append(per_dir)
    params["enc"] = enc

    dec_bound = 1.0 / (DEC_HIDDEN ** 0.5)
    dec = []
    for layer in range(NUM_LAYERS):
        in_size = HIDDEN_DIM if layer == 0 else DEC_HIDDEN
        wih = _uniform(next(keys), (4 * DEC_HIDDEN, in_size), dec_bound)
        whh = _uniform(next(keys), (4 * DEC_HIDDEN, DEC_HIDDEN), dec_bound)
        bih = _uniform(next(keys), (4 * DEC_HIDDEN,), dec_bound)
        bhh = _uniform(next(keys), (4 * DEC_HIDDEN,), dec_bound)
        dec.append((wih.T, whh.T, (bih + bhh)[None, :]))
    params["dec"] = dec

    lin_bound = 1.0 / (DEC_HIDDEN ** 0.5)
    w = _uniform(next(keys), (OUT_VOCAB, DEC_HIDDEN), lin_bound)
    b = _uniform(next(keys), (OUT_VOCAB,), lin_bound)
    params["lin_w_t"] = w.T
    params["lin_b"] = b[None, :]
    return params


def _regroup_cols(w_nat, direction):
    """Place natural [i|f|g|o] (each H wide) columns of one direction into the
    regrouped layout [i_f i_b | f_f f_b | g_f g_b | o_f o_b] (zeros elsewhere)."""
    rows = w_nat.shape[0]
    out = jnp.zeros((rows, G_ENC), jnp.float32)
    for k in range(4):
        col = (2 * k + direction) * H
        out = out.at[:, col:col + H].set(w_nat[:, k * H:(k + 1) * H])
    return out


def prep_kernel_params(params):
    """One-time host-side weight packing for the fused kernel (bf16 MXU operands)."""
    bf16 = jnp.bfloat16
    kp = {}

    # encoder layer 0: input rows are the paired (x_t | x_{T-1-t}) layout
    (w0f, u0f, b0f), (w0b, u0b, b0b) = params["enc"][0]
    kp["wx0"] = jnp.concatenate(
        [_regroup_cols(w0f, 0), _regroup_cols(w0b, 1)], axis=0).astype(bf16)
    kp["bx0"] = _regroup_cols(b0f, 0) + _regroup_cols(b0b, 1)           # f32
    kp["u0"] = jnp.concatenate(
        [_regroup_cols(u0f, 0), _regroup_cols(u0b, 1)], axis=0).astype(bf16)

    # encoder layer 1: rows pre-permuted to the scratch's time-paired layout
    #   scratch row block s = [h0f(s) | h0b(T-1-s) | h0f(T-1-s) | h0b(s)]
    (w1f, u1f, b1f), (w1b, u1b, b1b) = params["enc"][1]
    kp["wx1"] = jnp.concatenate([
        _regroup_cols(w1f[0:H], 0),        # h0_fwd(s)     -> fwd dir, in dims 0:H
        _regroup_cols(w1b[H:2 * H], 1),    # h0_bwd(T-1-s) -> bwd dir, in dims H:2H
        _regroup_cols(w1b[0:H], 1),        # h0_fwd(T-1-s) -> bwd dir, in dims 0:H
        _regroup_cols(w1f[H:2 * H], 0),    # h0_bwd(s)     -> fwd dir, in dims H:2H
    ], axis=0).astype(bf16)
    kp["bx1"] = _regroup_cols(b1f, 0) + _regroup_cols(b1b, 1)
    kp["u1"] = jnp.concatenate(
        [_regroup_cols(u1f, 0), _regroup_cols(u1b, 1)], axis=0).astype(bf16)

    # decoder (natural [i|f|g|o] layout, hidden = 64)
    (wd0, ud0, bd0) = params["dec"][0]
    (wd1, ud1, bd1) = params["dec"][1]
    # fold output embedding into decoder layer-0 input projection (f32 precompose)
    kp["d0w"] = jnp.dot(params["out_emb"], wd0,
                        precision=lax.Precision.HIGHEST).astype(bf16)   # (V, 4DH)
    kp["d0u"] = ud0.astype(bf16)
    kp["d0b"] = bd0
    kp["d1w"] = wd1.astype(bf16)
    kp["d1u"] = ud1.astype(bf16)
    kp["d1b"] = bd1
    kp["lw"] = params["lin_w_t"].astype(bf16)
    kp["lb"] = params["lin_b"]
    return kp


# -----------------------------------------------------------------------------
# Forward pass: one pallas_call for the whole model
# -----------------------------------------------------------------------------
@jax.jit
def seq2seq_forward(kp, in_emb, inputs):
    bsz, seq = inputs.shape
    # Input-token embedding gather stays in XLA (data-dependent gather).
    x = jnp.take(in_emb, inputs, axis=0)                          # (B, T, E)
    xt = jnp.swapaxes(x, 0, 1)                                    # (T, B, E)
    # Pair fwd time s with bwd time T-1-s once, outside the kernel (loop-invariant).
    x_pair = jnp.concatenate([xt, xt[::-1]], axis=-1)             # (T, B, 2E)
    x_pair = x_pair.reshape(seq * bsz, 2 * EMBED_DIM).astype(jnp.bfloat16)

    out_flat = pl.pallas_call(
        _seq2seq_kernel,
        out_shape=jax.ShapeDtypeStruct((bsz, MAX_LEN * OUT_VOCAB), jnp.float32),
        in_specs=[_VMEM] * 15,
        out_specs=_VMEM,
        scratch_shapes=[pltpu.VMEM((SEQ_LEN * BATCH, 2 * DEC_HIDDEN), jnp.float32)],
        compiler_params=pltpu.CompilerParams(vmem_limit_bytes=8 * 1024 * 1024),
    )(x_pair,
      kp["wx0"], kp["bx0"], kp["u0"],
      kp["wx1"], kp["bx1"], kp["u1"],
      kp["d0w"], kp["d0u"], kp["d0b"],
      kp["d1w"], kp["d1u"], kp["d1b"],
      kp["lw"], kp["lb"])
    return out_flat.reshape(bsz, MAX_LEN, OUT_VOCAB)


# -----------------------------------------------------------------------------
# Pure-JAX reference replicating the PyTorch forward (eval semantics) with the
# SAME numeric policy as the kernel (bf16 matmul operands, f32 accumulation).
# Decoding is teacher-forced with the kernel's own greedy tokens, which keeps
# the check robust to argmax near-ties while still validating every step's
# math (including which token the kernel fed back to itself).
# -----------------------------------------------------------------------------
def _ref_gates_to_hc(gates, c, hidden):
    i = jax.nn.sigmoid(gates[:, 0:hidden])
    f = jax.nn.sigmoid(gates[:, hidden:2 * hidden])
    g = jnp.tanh(gates[:, 2 * hidden:3 * hidden])
    o = jax.nn.sigmoid(gates[:, 3 * hidden:4 * hidden])
    c_new = f * c + i * g
    return o * jnp.tanh(c_new), c_new


def _ref_cell(x, h, c, wih_t, whh_t, b, hidden):
    bf16 = jnp.bfloat16
    f32 = jnp.float32
    gates = (jnp.dot(x.astype(bf16), wih_t.astype(bf16), preferred_element_type=f32)
             + jnp.dot(h.astype(bf16), whh_t.astype(bf16), preferred_element_type=f32)
             + b)
    return _ref_gates_to_hc(gates, c, hidden)


def reference_forward(params, inputs, forced_tokens):
    bf16 = jnp.bfloat16
    f32 = jnp.float32
    bsz, seq = inputs.shape
    x = jnp.take(params["in_emb"], inputs, axis=0)                # (B, T, E)
    h_fin, c_fin = [], []
    for layer in range(NUM_LAYERS):
        (wf, uf, bfw), (wb, ub, bb) = params["enc"][layer]
        hf = jnp.zeros((bsz, HIDDEN_DIM), f32)
        cf = jnp.zeros_like(hf)
        outs_f = []
        for t in range(seq):
            hf, cf = _ref_cell(x[:, t], hf, cf, wf, uf, bfw, HIDDEN_DIM)
            outs_f.append(hf)
        hb = jnp.zeros((bsz, HIDDEN_DIM), f32)
        cb = jnp.zeros_like(hb)
        outs_b = [None] * seq
        for t in range(seq - 1, -1, -1):
            hb, cb = _ref_cell(x[:, t], hb, cb, wb, ub, bb, HIDDEN_DIM)
            outs_b[t] = hb
        x = jnp.stack([jnp.concatenate([outs_f[t], outs_b[t]], axis=-1)
                       for t in range(seq)], axis=1)              # (B, T, 2H)
        h_fin.append(jnp.concatenate([hf, hb], axis=-1))          # PyTorch reshuffle
        c_fin.append(jnp.concatenate([cf, cb], axis=-1))

    (wd0, ud0, bd0) = params["dec"][0]
    (wd1, ud1, bd1) = params["dec"][1]
    # Same fold of output_embedding into the decoder layer-0 input projection
    # as the kernel (f32 precompose, bf16 storage).
    emb_proj = jnp.dot(params["out_emb"], wd0,
                       precision=lax.Precision.HIGHEST).astype(bf16).astype(f32)

    prev = jax.nn.one_hot(jnp.full((bsz,), CLS_ID, jnp.int32), OUT_VOCAB, dtype=f32)
    outs = [prev]
    h0, c0 = h_fin[0], c_fin[0]
    h1, c1 = h_fin[1], c_fin[1]
    for t in range(1, MAX_LEN):
        tok = forced_tokens[:, t - 1]
        g0 = (jnp.take(emb_proj, tok, axis=0)
              + jnp.dot(h0.astype(bf16), ud0.astype(bf16), preferred_element_type=f32)
              + bd0)
        h0, c0 = _ref_gates_to_hc(g0, c0, DEC_HIDDEN)
        g1 = (jnp.dot(h0.astype(bf16), wd1.astype(bf16), preferred_element_type=f32)
              + jnp.dot(h1.astype(bf16), ud1.astype(bf16), preferred_element_type=f32)
              + bd1)
        h1, c1 = _ref_gates_to_hc(g1, c1, DEC_HIDDEN)
        pred = (jnp.dot(h1.astype(bf16), params["lin_w_t"].astype(bf16),
                        preferred_element_type=f32) + params["lin_b"])
        outs.append(pred)
    return jnp.stack(outs, axis=1)                                # (B, L, V)


# -----------------------------------------------------------------------------
if __name__ == "__main__":
    key = jax.random.PRNGKey(0)
    pkey, dkey = jax.random.split(key)
    params = init_params(pkey)
    kp = prep_kernel_params(params)
    inputs = jax.random.randint(dkey, (BATCH, SEQ_LEN), 0, IN_VOCAB, jnp.int32)

    out = seq2seq_forward(kp, params["in_emb"], inputs)
    out = jax.block_until_ready(out)

    assert out.shape == (BATCH, MAX_LEN, OUT_VOCAB), out.shape
    assert out.dtype == jnp.float32
    assert bool(jnp.all(jnp.isfinite(out)))
    # first decoder "input" must be the [CLS] one-hot
    assert bool(jnp.all(out[:, 0, CLS_ID] == 1.0))
    assert bool(jnp.all(jnp.sum(out[:, 0], axis=-1) == 1.0))

    # tokens the kernel actually fed back at decode steps 1..MAX_LEN-1
    forced = jnp.argmax(out[:, :-1, :], axis=-1)
    ref = jax.block_until_ready(jax.jit(reference_forward)(params, inputs, forced))
    max_err = float(jnp.max(jnp.abs(out - ref)))
    assert bool(jnp.allclose(out, ref, atol=5e-3, rtol=5e-3)), max_err

    print("KERNEL_OK")
</pallas_src>

<mosaic_0001>
module attributes {stable_mosaic.version = 11 : i64} {
  func.func @_seq2seq_kernel(%arg0: memref<16x64xbf16, #tpu.memory_space<vmem>>, %arg1: memref<64x256xbf16, #tpu.memory_space<vmem>>, %arg2: memref<1x256xf32, #tpu.memory_space<vmem>>, %arg3: memref<64x256xbf16, #tpu.memory_space<vmem>>, %arg4: memref<128x256xbf16, #tpu.memory_space<vmem>>, %arg5: memref<1x256xf32, #tpu.memory_space<vmem>>, %arg6: memref<64x256xbf16, #tpu.memory_space<vmem>>, %arg7: memref<16x256xbf16, #tpu.memory_space<vmem>>, %arg8: memref<64x256xbf16, #tpu.memory_space<vmem>>, %arg9: memref<1x256xf32, #tpu.memory_space<vmem>>, %arg10: memref<64x256xbf16, #tpu.memory_space<vmem>>, %arg11: memref<64x256xbf16, #tpu.memory_space<vmem>>, %arg12: memref<1x256xf32, #tpu.memory_space<vmem>>, %arg13: memref<64x16xbf16, #tpu.memory_space<vmem>>, %arg14: memref<1x16xf32, #tpu.memory_space<vmem>>, %arg15: memref<2x128xf32, #tpu.memory_space<vmem>>, %arg16: memref<16x128xf32, #tpu.memory_space<vmem>>) attributes {dimension_semantics = [], scalar_prefetch = 0 : i64, scratch_operands = 1 : i64, tpu.core_type = #tpu.core_type<tc>} {
    %c0 = arith.constant 0 : index
    %c0_0 = arith.constant 0 : index
    %0 = vector.load %arg0[%c0, %c0_0] : memref<16x64xbf16, #tpu.memory_space<vmem>>, vector<16x64xbf16>
    %c0_1 = arith.constant 0 : index
    %c0_2 = arith.constant 0 : index
    %1 = vector.load %arg1[%c0_1, %c0_2] : memref<64x256xbf16, #tpu.memory_space<vmem>>, vector<64x256xbf16>
    %cst = arith.constant dense<0.000000e+00> : vector<16x256xf32>
    %2 = tpu.matmul %0, %1, %cst {dimension_numbers = #tpu.dot_dimension_numbers<[1], [0], [0], [1], [0, 0, 1, 1], [], []>} : vector<16x64xbf16>, vector<64x256xbf16>, vector<16x256xf32> -> vector<16x256xf32>
    %c0_3 = arith.constant 0 : index
    %c0_4 = arith.constant 0 : index
    %3 = vector.load %arg2[%c0_3, %c0_4] : memref<1x256xf32, #tpu.memory_space<vmem>>, vector<1x256xf32>
    %4 = vector.broadcast %3 : vector<1x256xf32> to vector<16x256xf32>
    %5 = arith.addf %2, %4 : vector<16x256xf32>
    %c0_5 = arith.constant 0 : index
    %c0_6 = arith.constant 0 : index
    %6 = vector.load %arg3[%c0_5, %c0_6] : memref<64x256xbf16, #tpu.memory_space<vmem>>, vector<64x256xbf16>
    %cst_7 = arith.constant 0.000000e+00 : f32
    %7 = vector.broadcast %cst_7 : f32 to vector<2x64xf32>
    %cst_8 = arith.constant 0.000000e+00 : f32
    %8 = vector.broadcast %cst_8 : f32 to vector<2x64xf32>
    %9 = vector.extract_strided_slice %5 {offsets = [0, 0], sizes = [2, 256], strides = [1, 1]} : vector<16x256xf32> to vector<2x256xf32>
    %10 = arith.truncf %7 : vector<2x64xf32> to vector<2x64xbf16>
    %cst_9 = arith.constant dense<0.000000e+00> : vector<2x256xf32>
    %11 = tpu.matmul %10, %6, %cst_9 {dimension_numbers = #tpu.dot_dimension_numbers<[1], [0], [0], [1], [0, 0, 1, 1], [], []>} : vector<2x64xbf16>, vector<64x256xbf16>, vector<2x256xf32> -> vector<2x256xf32>
    %12 = arith.addf %9, %11 : vector<2x256xf32>
    %13 = vector.extract_strided_slice %12 {offsets = [0, 0], sizes = [2, 128], strides = [1, 1]} : vector<2x256xf32> to vector<2x128xf32>
    %14 = arith.negf %13 : vector<2x128xf32>
    %15 = math.exp %14 : vector<2x128xf32>
    %cst_10 = arith.constant 1.000000e+00 : f32
    %16 = vector.broadcast %cst_10 : f32 to vector<2x128xf32>
    %17 = arith.addf %16, %15 : vector<2x128xf32>
    %18 = arith.divf %16, %17 : vector<2x128xf32>
    %19 = vector.extract_strided_slice %12 {offsets = [0, 128], sizes = [2, 64], strides = [1, 1]} : vector<2x256xf32> to vector<2x64xf32>
    %20 = math.tanh %19 : vector<2x64xf32>
    %21 = vector.extract_strided_slice %12 {offsets = [0, 192], sizes = [2, 64], strides = [1, 1]} : vector<2x256xf32> to vector<2x64xf32>
    %22 = arith.negf %21 : vector<2x64xf32>
    %23 = math.exp %22 : vector<2x64xf32>
    %cst_11 = arith.constant 1.000000e+00 : f32
    %24 = vector.broadcast %cst_11 : f32 to vector<2x64xf32>
    %25 = arith.addf %24, %23 : vector<2x64xf32>
    %26 = arith.divf %24, %25 : vector<2x64xf32>
    %27 = vector.extract_strided_slice %18 {offsets = [0, 64], sizes = [2, 64], strides = [1, 1]} : vector<2x128xf32> to vector<2x64xf32>
    %28 = arith.mulf %27, %8 : vector<2x64xf32>
    %29 = vector.extract_strided_slice %18 {offsets = [0, 0], sizes = [2, 64], strides = [1, 1]} : vector<2x128xf32> to vector<2x64xf32>
    %30 = arith.mulf %29, %20 : vector<2x64xf32>
    %31 = arith.addf %28, %30 : vector<2x64xf32>
    %32 = math.tanh %31 : vector<2x64xf32>
    %33 = arith.mulf %26, %32 : vector<2x64xf32>
    %c0_12 = arith.constant 0 : index
    %c0_13 = arith.constant 0 : index
    %34 = vector.load %arg16[%c0_12, %c0_13] : memref<16x128xf32, #tpu.memory_space<vmem>>, vector<2x64xf32>
    tpu.vector_store %arg16[%c0_12, %c0_13], %33 {strides = array<i32>} : memref<16x128xf32, #tpu.memory_space<vmem>>, vector<2x64xf32>,
    %c14 = arith.constant 14 : index
    %c64 = arith.constant 64 : index
    %35 = vector.load %arg16[%c14, %c64] : memref<16x128xf32, #tpu.memory_space<vmem>>, vector<2x64xf32>
    tpu.vector_store %arg16[%c14, %c64], %33 {strides = array<i32>} : memref<16x128xf32, #tpu.memory_space<vmem>>, vector<2x64xf32>,
    %36 = vector.extract_strided_slice %5 {offsets = [2, 0], sizes = [2, 256], strides = [1, 1]} : vector<16x256xf32> to vector<2x256xf32>
    %37 = arith.truncf %33 : vector<2x64xf32> to vector<2x64xbf16>
    %cst_14 = arith.constant dense<0.000000e+00> : vector<2x256xf32>
    %38 = tpu.matmul %37, %6, %cst_14 {dimension_numbers = #tpu.dot_dimension_numbers<[1], [0], [0], [1], [0, 0, 1, 1], [], []>} : vector<2x64xbf16>, vector<64x256xbf16>, vector<2x256xf32> -> vector<2x256xf32>
    %39 = arith.addf %36, %38 : vector<2x256xf32>
    %40 = vector.extract_strided_slice %39 {offsets = [0, 0], sizes = [2, 128], strides = [1, 1]} : vector<2x256xf32> to vector<2x128xf32>
    %41 = arith.negf %40 : vector<2x128xf32>
    %42 = math.exp %41 : vector<2x128xf32>
    %cst_15 = arith.constant 1.000000e+00 : f32
    %43 = vector.broadcast %cst_15 : f32 to vector<2x128xf32>
    %44 = arith.addf %43, %42 : vector<2x128xf32>
    %45 = arith.divf %43, %44 : vector<2x128xf32>
    %46 = vector.extract_strided_slice %39 {offsets = [0, 128], sizes = [2, 64], strides = [1, 1]} : vector<2x256xf32> to vector<2x64xf32>
    %47 = math.tanh %46 : vector<2x64xf32>
    %48 = vector.extract_strided_slice %39 {offsets = [0, 192], sizes = [2, 64], strides = [1, 1]} : vector<2x256xf32> to vector<2x64xf32>
    %49 = arith.negf %48 : vector<2x64xf32>
    %50 = math.exp %49 : vector<2x64xf32>
    %cst_16 = arith.constant 1.000000e+00 : f32
    %51 = vector.broadcast %cst_16 : f32 to vector<2x64xf32>
    %52 = arith.addf %51, %50 : vector<2x64xf32>
    %53 = arith.divf %51, %52 : vector<2x64xf32>
    %54 = vector.extract_strided_slice %45 {offsets = [0, 64], sizes = [2, 64], strides = [1, 1]} : vector<2x128xf32> to vector<2x64xf32>
    %55 = arith.mulf %54, %31 : vector<2x64xf32>
    %56 = vector.extract_strided_slice %45 {offsets = [0, 0], sizes = [2, 64], strides = [1, 1]} : vector<2x128xf32> to vector<2x64xf32>
    %57 = arith.mulf %56, %47 : vector<2x64xf32>
    %58 = arith.addf %55, %57 : vector<2x64xf32>
    %59 = math.tanh %58 : vector<2x64xf32>
    %60 = arith.mulf %53, %59 : vector<2x64xf32>
    %c2 = arith.constant 2 : index
    %c0_17 = arith.constant 0 : index
    %61 = vector.load %arg16[%c2, %c0_17] : memref<16x128xf32, #tpu.memory_space<vmem>>, vector<2x64xf32>
    tpu.vector_store %arg16[%c2, %c0_17], %60 {strides = array<i32>} : memref<16x128xf32, #tpu.memory_space<vmem>>, vector<2x64xf32>,
    %c12 = arith.constant 12 : index
    %c64_18 = arith.constant 64 : index
    %62 = vector.load %arg16[%c12, %c64_18] : memref<16x128xf32, #tpu.memory_space<vmem>>, vector<2x64xf32>
    tpu.vector_store %arg16[%c12, %c64_18], %60 {strides = array<i32>} : memref<16x128xf32, #tpu.memory_space<vmem>>, vector<2x64xf32>,
    %63 = vector.extract_strided_slice %5 {offsets = [4, 0], sizes = [2, 256], strides = [1, 1]} : vector<16x256xf32> to vector<2x256xf32>
    %64 = arith.truncf %60 : vector<2x64xf32> to vector<2x64xbf16>
    %cst_19 = arith.constant dense<0.000000e+00> : vector<2x256xf32>
    %65 = tpu.matmul %64, %6, %cst_19 {dimension_numbers = #tpu.dot_dimension_numbers<[1], [0], [0], [1], [0, 0, 1, 1], [], []>} : vector<2x64xbf16>, vector<64x256xbf16>, vector<2x256xf32> -> vector<2x256xf32>
    %66 = arith.addf %63, %65 : vector<2x256xf32>
    %67 = vector.extract_strided_slice %66 {offsets = [0, 0], sizes = [2, 128], strides = [1, 1]} : vector<2x256xf32> to vector<2x128xf32>
    %68 = arith.negf %67 : vector<2x128xf32>
    %69 = math.exp %68 : vector<2x128xf32>
    %cst_20 = arith.constant 1.000000e+00 : f32
    %70 = vector.broadcast %cst_20 : f32 to vector<2x128xf32>
    %71 = arith.addf %70, %69 : vector<2x128xf32>
    %72 = arith.divf %70, %71 : vector<2x128xf32>
    %73 = vector.extract_strided_slice %66 {offsets = [0, 128], sizes = [2, 64], strides = [1, 1]} : vector<2x256xf32> to vector<2x64xf32>
    %74 = math.tanh %73 : vector<2x64xf32>
    %75 = vector.extract_strided_slice %66 {offsets = [0, 192], sizes = [2, 64], strides = [1, 1]} : vector<2x256xf32> to vector<2x64xf32>
    %76 = arith.negf %75 : vector<2x64xf32>
    %77 = math.exp %76 : vector<2x64xf32>
    %cst_21 = arith.constant 1.000000e+00 : f32
    %78 = vector.broadcast %cst_21 : f32 to vector<2x64xf32>
    %79 = arith.addf %78, %77 : vector<2x64xf32>
    %80 = arith.divf %78, %79 : vector<2x64xf32>
    %81 = vector.extract_strided_slice %72 {offsets = [0, 64], sizes = [2, 64], strides = [1, 1]} : vector<2x128xf32> to vector<2x64xf32>
    %82 = arith.mulf %81, %58 : vector<2x64xf32>
    %83 = vector.extract_strided_slice %72 {offsets = [0, 0], sizes = [2, 64], strides = [1, 1]} : vector<2x128xf32> to vector<2x64xf32>
    %84 = arith.mulf %83, %74 : vector<2x64xf32>
    %85 = arith.addf %82, %84 : vector<2x64xf32>
    %86 = math.tanh %85 : vector<2x64xf32>
    %87 = arith.mulf %80, %86 : vector<2x64xf32>
    %c4 = arith.constant 4 : index
    %c0_22 = arith.constant 0 : index
    %88 = vector.load %arg16[%c4, %c0_22] : memref<16x128xf32, #tpu.memory_space<vmem>>, vector<2x64xf32>
    tpu.vector_store %arg16[%c4, %c0_22], %87 {strides = array<i32>} : memref<16x128xf32, #tpu.memory_space<vmem>>, vector<2x64xf32>,
    %c10 = arith.constant 10 : index
    %c64_23 = arith.constant 64 : index
    %89 = vector.load %arg16[%c10, %c64_23] : memref<16x128xf32, #tpu.memory_space<vmem>>, vector<2x64xf32>
    tpu.vector_store %arg16[%c10, %c64_23], %87 {strides = array<i32>} : memref<16x128xf32, #tpu.memory_space<vmem>>, vector<2x64xf32>,
    %90 = vector.extract_strided_slice %5 {offsets = [6, 0], sizes = [2, 256], strides = [1, 1]} : vector<16x256xf32> to vector<2x256xf32>
    %91 = arith.truncf %87 : vector<2x64xf32> to vector<2x64xbf16>
    %cst_24 = arith.constant dense<0.000000e+00> : vector<2x256xf32>
    %92 = tpu.matmul %91, %6, %cst_24 {dimension_numbers = #tpu.dot_dimension_numbers<[1], [0], [0], [1], [0, 0, 1, 1], [], []>} : vector<2x64xbf16>, vector<64x256xbf16>, vector<2x256xf32> -> vector<2x256xf32>
    %93 = arith.addf %90, %92 : vector<2x256xf32>
    %94 = vector.extract_strided_slice %93 {offsets = [0, 0], sizes = [2, 128], strides = [1, 1]} : vector<2x256xf32> to vector<2x128xf32>
    %95 = arith.negf %94 : vector<2x128xf32>
    %96 = math.exp %95 : vector<2x128xf32>
    %cst_25 = arith.constant 1.000000e+00 : f32
    %97 = vector.broadcast %cst_25 : f32 to vector<2x128xf32>
    %98 = arith.addf %97, %96 : vector<2x128xf32>
    %99 = arith.divf %97, %98 : vector<2x128xf32>
    %100 = vector.extract_strided_slice %93 {offsets = [0, 128], sizes = [2, 64], strides = [1, 1]} : vector<2x256xf32> to vector<2x64xf32>
    %101 = math.tanh %100 : vector<2x64xf32>
    %102 = vector.extract_strided_slice %93 {offsets = [0, 192], sizes = [2, 64], strides = [1, 1]} : vector<2x256xf32> to vector<2x64xf32>
    %103 = arith.negf %102 : vector<2x64xf32>
    %104 = math.exp %103 : vector<2x64xf32>
    %cst_26 = arith.constant 1.000000e+00 : f32
    %105 = vector.broadcast %cst_26 : f32 to vector<2x64xf32>
    %106 = arith.addf %105, %104 : vector<2x64xf32>
    %107 = arith.divf %105, %106 : vector<2x64xf32>
    %108 = vector.extract_strided_slice %99 {offsets = [0, 64], sizes = [2, 64], strides = [1, 1]} : vector<2x128xf32> to vector<2x64xf32>
    %109 = arith.mulf %108, %85 : vector<2x64xf32>
    %110 = vector.extract_strided_slice %99 {offsets = [0, 0], sizes = [2, 64], strides = [1, 1]} : vector<2x128xf32> to vector<2x64xf32>
    %111 = arith.mulf %110, %101 : vector<2x64xf32>
    %112 = arith.addf %109, %111 : vector<2x64xf32>
    %113 = math.tanh %112 : vector<2x64xf32>
    %114 = arith.mulf %107, %113 : vector<2x64xf32>
    %c6 = arith.constant 6 : index
    %c0_27 = arith.constant 0 : index
    %115 = vector.load %arg16[%c6, %c0_27] : memref<16x128xf32, #tpu.memory_space<vmem>>, vector<2x64xf32>
    tpu.vector_store %arg16[%c6, %c0_27], %114 {strides = array<i32>} : memref<16x128xf32, #tpu.memory_space<vmem>>, vector<2x64xf32>,
    %c8 = arith.constant 8 : index
    %c64_28 = arith.constant 64 : index
    %116 = vector.load %arg16[%c8, %c64_28] : memref<16x128xf32, #tpu.memory_space<vmem>>, vector<2x64xf32>
    tpu.vector_store %arg16[%c8, %c64_28], %114 {strides = array<i32>} : memref<16x128xf32, #tpu.memory_space<vmem>>, vector<2x64xf32>,
    %117 = vector.extract_strided_slice %5 {offsets = [8, 0], sizes = [2, 256], strides = [1, 1]} : vector<16x256xf32> to vector<2x256xf32>
    %118 = arith.truncf %114 : vector<2x64xf32> to vector<2x64xbf16>
    %cst_29 = arith.constant dense<0.000000e+00> : vector<2x256xf32>
    %119 = tpu.matmul %118, %6, %cst_29 {dimension_numbers = #tpu.dot_dimension_numbers<[1], [0], [0], [1], [0, 0, 1, 1], [], []>} : vector<2x64xbf16>, vector<64x256xbf16>, vector<2x256xf32> -> vector<2x256xf32>
    %120 = arith.addf %117, %119 : vector<2x256xf32>
    %121 = vector.extract_strided_slice %120 {offsets = [0, 0], sizes = [2, 128], strides = [1, 1]} : vector<2x256xf32> to vector<2x128xf32>
    %122 = arith.negf %121 : vector<2x128xf32>
    %123 = math.exp %122 : vector<2x128xf32>
    %cst_30 = arith.constant 1.000000e+00 : f32
    %124 = vector.broadcast %cst_30 : f32 to vector<2x128xf32>
    %125 = arith.addf %124, %123 : vector<2x128xf32>
    %126 = arith.divf %124, %125 : vector<2x128xf32>
    %127 = vector.extract_strided_slice %120 {offsets = [0, 128], sizes = [2, 64], strides = [1, 1]} : vector<2x256xf32> to vector<2x64xf32>
    %128 = math.tanh %127 : vector<2x64xf32>
    %129 = vector.extract_strided_slice %120 {offsets = [0, 192], sizes = [2, 64], strides = [1, 1]} : vector<2x256xf32> to vector<2x64xf32>
    %130 = arith.negf %129 : vector<2x64xf32>
    %131 = math.exp %130 : vector<2x64xf32>
    %cst_31 = arith.constant 1.000000e+00 : f32
    %132 = vector.broadcast %cst_31 : f32 to vector<2x64xf32>
    %133 = arith.addf %132, %131 : vector<2x64xf32>
    %134 = arith.divf %132, %133 : vector<2x64xf32>
    %135 = vector.extract_strided_slice %126 {offsets = [0, 64], sizes = [2, 64], strides = [1, 1]} : vector<2x128xf32> to vector<2x64xf32>
    %136 = arith.mulf %135, %112 : vector<2x64xf32>
    %137 = vector.extract_strided_slice %126 {offsets = [0, 0], sizes = [2, 64], strides = [1, 1]} : vector<2x128xf32> to vector<2x64xf32>
    %138 = arith.mulf %137, %128 : vector<2x64xf32>
    %139 = arith.addf %136, %138 : vector<2x64xf32>
    %140 = math.tanh %139 : vector<2x64xf32>
    %141 = arith.mulf %134, %140 : vector<2x64xf32>
    %c8_32 = arith.constant 8 : index
    %c0_33 = arith.constant 0 : index
    %142 = vector.load %arg16[%c8_32, %c0_33] : memref<16x128xf32, #tpu.memory_space<vmem>>, vector<2x64xf32>
    tpu.vector_store %arg16[%c8_32, %c0_33], %141 {strides = array<i32>} : memref<16x128xf32, #tpu.memory_space<vmem>>, vector<2x64xf32>,
    %c6_34 = arith.constant 6 : index
    %c64_35 = arith.constant 64 : index
    %143 = vector.load %arg16[%c6_34, %c64_35] : memref<16x128xf32, #tpu.memory_space<vmem>>, vector<2x64xf32>
    tpu.vector_store %arg16[%c6_34, %c64_35], %141 {strides = array<i32>} : memref<16x128xf32, #tpu.memory_space<vmem>>, vector<2x64xf32>,
    %144 = vector.extract_strided_slice %5 {offsets = [10, 0], sizes = [2, 256], strides = [1, 1]} : vector<16x256xf32> to vector<2x256xf32>
    %145 = arith.truncf %141 : vector<2x64xf32> to vector<2x64xbf16>
    %cst_36 = arith.constant dense<0.000000e+00> : vector<2x256xf32>
    %146 = tpu.matmul %145, %6, %cst_36 {dimension_numbers = #tpu.dot_dimension_numbers<[1], [0], [0], [1], [0, 0, 1, 1], [], []>} : vector<2x64xbf16>, vector<64x256xbf16>, vector<2x256xf32> -> vector<2x256xf32>
    %147 = arith.addf %144, %146 : vector<2x256xf32>
    %148 = vector.extract_strided_slice %147 {offsets = [0, 0], sizes = [2, 128], strides = [1, 1]} : vector<2x256xf32> to vector<2x128xf32>
    %149 = arith.negf %148 : vector<2x128xf32>
    %150 = math.exp %149 : vector<2x128xf32>
    %cst_37 = arith.constant 1.000000e+00 : f32
    %151 = vector.broadcast %cst_37 : f32 to vector<2x128xf32>
    %152 = arith.addf %151, %150 : vector<2x128xf32>
    %153 = arith.divf %151, %152 : vector<2x128xf32>
    %154 = vector.extract_strided_slice %147 {offsets = [0, 128], sizes = [2, 64], strides = [1, 1]} : vector<2x256xf32> to vector<2x64xf32>
    %155 = math.tanh %154 : vector<2x64xf32>
    %156 = vector.extract_strided_slice %147 {offsets = [0, 192], sizes = [2, 64], strides = [1, 1]} : vector<2x256xf32> to vector<2x64xf32>
    %157 = arith.negf %156 : vector<2x64xf32>
    %158 = math.exp %157 : vector<2x64xf32>
    %cst_38 = arith.constant 1.000000e+00 : f32
    %159 = vector.broadcast %cst_38 : f32 to vector<2x64xf32>
    %160 = arith.addf %159, %158 : vector<2x64xf32>
    %161 = arith.divf %159, %160 : vector<2x64xf32>
    %162 = vector.extract_strided_slice %153 {offsets = [0, 64], sizes = [2, 64], strides = [1, 1]} : vector<2x128xf32> to vector<2x64xf32>
    %163 = arith.mulf %162, %139 : vector<2x64xf32>
    %164 = vector.extract_strided_slice %153 {offsets = [0, 0], sizes = [2, 64], strides = [1, 1]} : vector<2x128xf32> to vector<2x64xf32>
    %165 = arith.mulf %164, %155 : vector<2x64xf32>
    %166 = arith.addf %163, %165 : vector<2x64xf32>
    %167 = math.tanh %166 : vector<2x64xf32>
    %168 = arith.mulf %161, %167 : vector<2x64xf32>
    %c10_39 = arith.constant 10 : index
    %c0_40 = arith.constant 0 : index
    %169 = vector.load %arg16[%c10_39, %c0_40] : memref<16x128xf32, #tpu.memory_space<vmem>>, vector<2x64xf32>
    tpu.vector_store %arg16[%c10_39, %c0_40], %168 {strides = array<i32>} : memref<16x128xf32, #tpu.memory_space<vmem>>, vector<2x64xf32>,
    %c4_41 = arith.constant 4 : index
    %c64_42 = arith.constant 64 : index
    %170 = vector.load %arg16[%c4_41, %c64_42] : memref<16x128xf32, #tpu.memory_space<vmem>>, vector<2x64xf32>
    tpu.vector_store %arg16[%c4_41, %c64_42], %168 {strides = array<i32>} : memref<16x128xf32, #tpu.memory_space<vmem>>, vector<2x64xf32>,
    %171 = vector.extract_strided_slice %5 {offsets = [12, 0], sizes = [2, 256], strides = [1, 1]} : vector<16x256xf32> to vector<2x256xf32>
    %172 = arith.truncf %168 : vector<2x64xf32> to vector<2x64xbf16>
    %cst_43 = arith.constant dense<0.000000e+00> : vector<2x256xf32>
    %173 = tpu.matmul %172, %6, %cst_43 {dimension_numbers = #tpu.dot_dimension_numbers<[1], [0], [0], [1], [0, 0, 1, 1], [], []>} : vector<2x64xbf16>, vector<64x256xbf16>, vector<2x256xf32> -> vector<2x256xf32>
    %174 = arith.addf %171, %173 : vector<2x256xf32>
    %175 = vector.extract_strided_slice %174 {offsets = [0, 0], sizes = [2, 128], strides = [1, 1]} : vector<2x256xf32> to vector<2x128xf32>
    %176 = arith.negf %175 : vector<2x128xf32>
    %177 = math.exp %176 : vector<2x128xf32>
    %cst_44 = arith.constant 1.000000e+00 : f32
    %178 = vector.broadcast %cst_44 : f32 to vector<2x128xf32>
    %179 = arith.addf %178, %177 : vector<2x128xf32>
    %180 = arith.divf %178, %179 : vector<2x128xf32>
    %181 = vector.extract_strided_slice %174 {offsets = [0, 128], sizes = [2, 64], strides = [1, 1]} : vector<2x256xf32> to vector<2x64xf32>
    %182 = math.tanh %181 : vector<2x64xf32>
    %183 = vector.extract_strided_slice %174 {offsets = [0, 192], sizes = [2, 64], strides = [1, 1]} : vector<2x256xf32> to vector<2x64xf32>
    %184 = arith.negf %183 : vector<2x64xf32>
    %185 = math.exp %184 : vector<2x64xf32>
    %cst_45 = arith.constant 1.000000e+00 : f32
    %186 = vector.broadcast %cst_45 : f32 to vector<2x64xf32>
    %187 = arith.addf %186, %185 : vector<2x64xf32>
    %188 = arith.divf %186, %187 : vector<2x64xf32>
    %189 = vector.extract_strided_slice %180 {offsets = [0, 64], sizes = [2, 64], strides = [1, 1]} : vector<2x128xf32> to vector<2x64xf32>
    %190 = arith.mulf %189, %166 : vector<2x64xf32>
    %191 = vector.extract_strided_slice %180 {offsets = [0, 0], sizes = [2, 64], strides = [1, 1]} : vector<2x128xf32> to vector<2x64xf32>
    %192 = arith.mulf %191, %182 : vector<2x64xf32>
    %193 = arith.addf %190, %192 : vector<2x64xf32>
    %194 = math.tanh %193 : vector<2x64xf32>
    %195 = arith.mulf %188, %194 : vector<2x64xf32>
    %c12_46 = arith.constant 12 : index
    %c0_47 = arith.constant 0 : index
    %196 = vector.load %arg16[%c12_46, %c0_47] : memref<16x128xf32, #tpu.memory_space<vmem>>, vector<2x64xf32>
    tpu.vector_store %arg16[%c12_46, %c0_47], %195 {strides = array<i32>} : memref<16x128xf32, #tpu.memory_space<vmem>>, vector<2x64xf32>,
    %c2_48 = arith.constant 2 : index
    %c64_49 = arith.constant 64 : index
    %197 = vector.load %arg16[%c2_48, %c64_49] : memref<16x128xf32, #tpu.memory_space<vmem>>, vector<2x64xf32>
    tpu.vector_store %arg16[%c2_48, %c64_49], %195 {strides = array<i32>} : memref<16x128xf32, #tpu.memory_space<vmem>>, vector<2x64xf32>,
    %198 = vector.extract_strided_slice %5 {offsets = [14, 0], sizes = [2, 256], strides = [1, 1]} : vector<16x256xf32> to vector<2x256xf32>
    %199 = arith.truncf %195 : vector<2x64xf32> to vector<2x64xbf16>
    %cst_50 = arith.constant dense<0.000000e+00> : vector<2x256xf32>
    %200 = tpu.matmul %199, %6, %cst_50 {dimension_numbers = #tpu.dot_dimension_numbers<[1], [0], [0], [1], [0, 0, 1, 1], [], []>} : vector<2x64xbf16>, vector<64x256xbf16>, vector<2x256xf32> -> vector<2x256xf32>
    %201 = arith.addf %198, %200 : vector<2x256xf32>
    %202 = vector.extract_strided_slice %201 {offsets = [0, 0], sizes = [2, 128], strides = [1, 1]} : vector<2x256xf32> to vector<2x128xf32>
    %203 = arith.negf %202 : vector<2x128xf32>
    %204 = math.exp %203 : vector<2x128xf32>
    %cst_51 = arith.constant 1.000000e+00 : f32
    %205 = vector.broadcast %cst_51 : f32 to vector<2x128xf32>
    %206 = arith.addf %205, %204 : vector<2x128xf32>
    %207 = arith.divf %205, %206 : vector<2x128xf32>
    %208 = vector.extract_strided_slice %201 {offsets = [0, 128], sizes = [2, 64], strides = [1, 1]} : vector<2x256xf32> to vector<2x64xf32>
    %209 = math.tanh %208 : vector<2x64xf32>
    %210 = vector.extract_strided_slice %201 {offsets = [0, 192], sizes = [2, 64], strides = [1, 1]} : vector<2x256xf32> to vector<2x64xf32>
    %211 = arith.negf %210 : vector<2x64xf32>
    %212 = math.exp %211 : vector<2x64xf32>
    %cst_52 = arith.constant 1.000000e+00 : f32
    %213 = vector.broadcast %cst_52 : f32 to vector<2x64xf32>
    %214 = arith.addf %213, %212 : vector<2x64xf32>
    %215 = arith.divf %213, %214 : vector<2x64xf32>
    %216 = vector.extract_strided_slice %207 {offsets = [0, 64], sizes = [2, 64], strides = [1, 1]} : vector<2x128xf32> to vector<2x64xf32>
    %217 = arith.mulf %216, %193 : vector<2x64xf32>
    %218 = vector.extract_strided_slice %207 {offsets = [0, 0], sizes = [2, 64], strides = [1, 1]} : vector<2x128xf32> to vector<2x64xf32>
    %219 = arith.mulf %218, %209 : vector<2x64xf32>
    %220 = arith.addf %217, %219 : vector<2x64xf32>
    %221 = math.tanh %220 : vector<2x64xf32>
    %222 = arith.mulf %215, %221 : vector<2x64xf32>
    %c14_53 = arith.constant 14 : index
    %c0_54 = arith.constant 0 : index
    %223 = vector.load %arg16[%c14_53, %c0_54] : memref<16x128xf32, #tpu.memory_space<vmem>>, vector<2x64xf32>
    tpu.vector_store %arg16[%c14_53, %c0_54], %222 {strides = array<i32>} : memref<16x128xf32, #tpu.memory_space<vmem>>, vector<2x64xf32>,
    %c0_55 = arith.constant 0 : index
    %c64_56 = arith.constant 64 : index
    %224 = vector.load %arg16[%c0_55, %c64_56] : memref<16x128xf32, #tpu.memory_space<vmem>>, vector<2x64xf32>
    tpu.vector_store %arg16[%c0_55, %c64_56], %222 {strides = array<i32>} : memref<16x128xf32, #tpu.memory_space<vmem>>, vector<2x64xf32>,
    %c0_57 = arith.constant 0 : index
    %c0_58 = arith.constant 0 : index
    %225 = vector.load %arg16[%c0_57, %c0_58] : memref<16x128xf32, #tpu.memory_space<vmem>>, vector<16x128xf32>
    %226 = arith.truncf %225 : vector<16x128xf32> to vector<16x128xbf16>
    %c0_59 = arith.constant 0 : index
    %c0_60 = arith.constant 0 : index
    %227 = vector.load %arg4[%c0_59, %c0_60] : memref<128x256xbf16, #tpu.memory_space<vmem>>, vector<128x256xbf16>
    %cst_61 = arith.constant dense<0.000000e+00> : vector<16x256xf32>
    %228 = tpu.matmul %226, %227, %cst_61 {dimension_numbers = #tpu.dot_dimension_numbers<[1], [0], [0], [1], [0, 0, 1, 1], [], []>} : vector<16x128xbf16>, vector<128x256xbf16>, vector<16x256xf32> -> vector<16x256xf32>
    %c0_62 = arith.constant 0 : index
    %c0_63 = arith.constant 0 : index
    %229 = vector.load %arg5[%c0_62, %c0_63] : memref<1x256xf32, #tpu.memory_space<vmem>>, vector<1x256xf32>
    %230 = vector.broadcast %229 : vector<1x256xf32> to vector<16x256xf32>
    %231 = arith.addf %228, %230 : vector<16x256xf32>
    %c0_64 = arith.constant 0 : index
    %c0_65 = arith.constant 0 : index
    %232 = vector.load %arg6[%c0_64, %c0_65] : memref<64x256xbf16, #tpu.memory_space<vmem>>, vector<64x256xbf16>
    %cst_66 = arith.constant 0.000000e+00 : f32
    %233 = vector.broadcast %cst_66 : f32 to vector<2x64xf32>
    %cst_67 = arith.constant 0.000000e+00 : f32
    %234 = vector.broadcast %cst_67 : f32 to vector<2x64xf32>
    %235 = vector.extract_strided_slice %231 {offsets = [0, 0], sizes = [2, 256], strides = [1, 1]} : vector<16x256xf32> to vector<2x256xf32>
    %236 = arith.truncf %233 : vector<2x64xf32> to vector<2x64xbf16>
    %cst_68 = arith.constant dense<0.000000e+00> : vector<2x256xf32>
    %237 = tpu.matmul %236, %232, %cst_68 {dimension_numbers = #tpu.dot_dimension_numbers<[1], [0], [0], [1], [0, 0, 1, 1], [], []>} : vector<2x64xbf16>, vector<64x256xbf16>, vector<2x256xf32> -> vector<2x256xf32>
    %238 = arith.addf %235, %237 : vector<2x256xf32>
    %239 = vector.extract_strided_slice %238 {offsets = [0, 0], sizes = [2, 128], strides = [1, 1]} : vector<2x256xf32> to vector<2x128xf32>
    %240 = arith.negf %239 : vector<2x128xf32>
    %241 = math.exp %240 : vector<2x128xf32>
    %cst_69 = arith.constant 1.000000e+00 : f32
    %242 = vector.broadcast %cst_69 : f32 to vector<2x128xf32>
    %243 = arith.addf %242, %241 : vector<2x128xf32>
    %244 = arith.divf %242, %243 : vector<2x128xf32>
    %245 = vector.extract_strided_slice %238 {offsets = [0, 128], sizes = [2, 64], strides = [1, 1]} : vector<2x256xf32> to vector<2x64xf32>
    %246 = math.tanh %245 : vector<2x64xf32>
    %247 = vector.extract_strided_slice %238 {offsets = [0, 192], sizes = [2, 64], strides = [1, 1]} : vector<2x256xf32> to vector<2x64xf32>
    %248 = arith.negf %247 : vector<2x64xf32>
    %249 = math.exp %248 : vector<2x64xf32>
    %cst_70 = arith.constant 1.000000e+00 : f32
    %250 = vector.broadcast %cst_70 : f32 to vector<2x64xf32>
    %251 = arith.addf %250, %249 : vector<2x64xf32>
    %252 = arith.divf %250, %251 : vector<2x64xf32>
    %253 = vector.extract_strided_slice %244 {offsets = [0, 64], sizes = [2, 64], strides = [1, 1]} : vector<2x128xf32> to vector<2x64xf32>
    %254 = arith.mulf %253, %234 : vector<2x64xf32>
    %255 = vector.extract_strided_slice %244 {offsets = [0, 0], sizes = [2, 64], strides = [1, 1]} : vector<2x128xf32> to vector<2x64xf32>
    %256 = arith.mulf %255, %246 : vector<2x64xf32>
    %257 = arith.addf %254, %256 : vector<2x64xf32>
    %258 = math.tanh %257 : vector<2x64xf32>
    %259 = arith.mulf %252, %258 : vector<2x64xf32>
    %260 = vector.extract_strided_slice %231 {offsets = [2, 0], sizes = [2, 256], strides = [1, 1]} : vector<16x256xf32> to vector<2x256xf32>
    %261 = arith.truncf %259 : vector<2x64xf32> to vector<2x64xbf16>
    %cst_71 = arith.constant dense<0.000000e+00> : vector<2x256xf32>
    %262 = tpu.matmul %261, %232, %cst_71 {dimension_numbers = #tpu.dot_dimension_numbers<[1], [0], [0], [1], [0, 0, 1, 1], [], []>} : vector<2x64xbf16>, vector<64x256xbf16>, vector<2x256xf32> -> vector<2x256xf32>
    %263 = arith.addf %260, %262 : vector<2x256xf32>
    %264 = vector.extract_strided_slice %263 {offsets = [0, 0], sizes = [2, 128], strides = [1, 1]} : vector<2x256xf32> to vector<2x128xf32>
    %265 = arith.negf %264 : vector<2x128xf32>
    %266 = math.exp %265 : vector<2x128xf32>
    %cst_72 = arith.constant 1.000000e+00 : f32
    %267 = vector.broadcast %cst_72 : f32 to vector<2x128xf32>
    %268 = arith.addf %267, %266 : vector<2x128xf32>
    %269 = arith.divf %267, %268 : vector<2x128xf32>
    %270 = vector.extract_strided_slice %263 {offsets = [0, 128], sizes = [2, 64], strides = [1, 1]} : vector<2x256xf32> to vector<2x64xf32>
    %271 = math.tanh %270 : vector<2x64xf32>
    %272 = vector.extract_strided_slice %263 {offsets = [0, 192], sizes = [2, 64], strides = [1, 1]} : vector<2x256xf32> to vector<2x64xf32>
    %273 = arith.negf %272 : vector<2x64xf32>
    %274 = math.exp %273 : vector<2x64xf32>
    %cst_73 = arith.constant 1.000000e+00 : f32
    %275 = vector.broadcast %cst_73 : f32 to vector<2x64xf32>
    %276 = arith.addf %275, %274 : vector<2x64xf32>
    %277 = arith.divf %275, %276 : vector<2x64xf32>
    %278 = vector.extract_strided_slice %269 {offsets = [0, 64], sizes = [2, 64], strides = [1, 1]} : vector<2x128xf32> to vector<2x64xf32>
    %279 = arith.mulf %278, %257 : vector<2x64xf32>
    %280 = vector.extract_strided_slice %269 {offsets = [0, 0], sizes = [2, 64], strides = [1, 1]} : vector<2x128xf32> to vector<2x64xf32>
    %281 = arith.mulf %280, %271 : vector<2x64xf32>
    %282 = arith.addf %279, %281 : vector<2x64xf32>
    %283 = math.tanh %282 : vector<2x64xf32>
    %284 = arith.mulf %277, %283 : vector<2x64xf32>
    %285 = vector.extract_strided_slice %231 {offsets = [4, 0], sizes = [2, 256], strides = [1, 1]} : vector<16x256xf32> to vector<2x256xf32>
    %286 = arith.truncf %284 : vector<2x64xf32> to vector<2x64xbf16>
    %cst_74 = arith.constant dense<0.000000e+00> : vector<2x256xf32>
    %287 = tpu.matmul %286, %232, %cst_74 {dimension_numbers = #tpu.dot_dimension_numbers<[1], [0], [0], [1], [0, 0, 1, 1], [], []>} : vector<2x64xbf16>, vector<64x256xbf16>, vector<2x256xf32> -> vector<2x256xf32>
    %288 = arith.addf %285, %287 : vector<2x256xf32>
    %289 = vector.extract_strided_slice %288 {offsets = [0, 0], sizes = [2, 128], strides = [1, 1]} : vector<2x256xf32> to vector<2x128xf32>
    %290 = arith.negf %289 : vector<2x128xf32>
    %291 = math.exp %290 : vector<2x128xf32>
    %cst_75 = arith.constant 1.000000e+00 : f32
    %292 = vector.broadcast %cst_75 : f32 to vector<2x128xf32>
    %293 = arith.addf %292, %291 : vector<2x128xf32>
    %294 = arith.divf %292, %293 : vector<2x128xf32>
    %295 = vector.extract_strided_slice %288 {offsets = [0, 128], sizes = [2, 64], strides = [1, 1]} : vector<2x256xf32> to vector<2x64xf32>
    %296 = math.tanh %295 : vector<2x64xf32>
    %297 = vector.extract_strided_slice %288 {offsets = [0, 192], sizes = [2, 64], strides = [1, 1]} : vector<2x256xf32> to vector<2x64xf32>
    %298 = arith.negf %297 : vector<2x64xf32>
    %299 = math.exp %298 : vector<2x64xf32>
    %cst_76 = arith.constant 1.000000e+00 : f32
    %300 = vector.broadcast %cst_76 : f32 to vector<2x64xf32>
    %301 = arith.addf %300, %299 : vector<2x64xf32>
    %302 = arith.divf %300, %301 : vector<2x64xf32>
    %303 = vector.extract_strided_slice %294 {offsets = [0, 64], sizes = [2, 64], strides = [1, 1]} : vector<2x128xf32> to vector<2x64xf32>
    %304 = arith.mulf %303, %282 : vector<2x64xf32>
    %305 = vector.extract_strided_slice %294 {offsets = [0, 0], sizes = [2, 64], strides = [1, 1]} : vector<2x128xf32> to vector<2x64xf32>
    %306 = arith.mulf %305, %296 : vector<2x64xf32>
    %307 = arith.addf %304, %306 : vector<2x64xf32>
    %308 = math.tanh %307 : vector<2x64xf32>
    %309 = arith.mulf %302, %308 : vector<2x64xf32>
    %310 = vector.extract_strided_slice %231 {offsets = [6, 0], sizes = [2, 256], strides = [1, 1]} : vector<16x256xf32> to vector<2x256xf32>
    %311 = arith.truncf %309 : vector<2x64xf32> to vector<2x64xbf16>
    %cst_77 = arith.constant dense<0.000000e+00> : vector<2x256xf32>
    %312 = tpu.matmul %311, %232, %cst_77 {dimension_numbers = #tpu.dot_dimension_numbers<[1], [0], [0], [1], [0, 0, 1, 1], [], []>} : vector<2x64xbf16>, vector<64x256xbf16>, vector<2x256xf32> -> vector<2x256xf32>
    %313 = arith.addf %310, %312 : vector<2x256xf32>
    %314 = vector.extract_strided_slice %313 {offsets = [0, 0], sizes = [2, 128], strides = [1, 1]} : vector<2x256xf32> to vector<2x128xf32>
    %315 = arith.negf %314 : vector<2x128xf32>
    %316 = math.exp %315 : vector<2x128xf32>
    %cst_78 = arith.constant 1.000000e+00 : f32
    %317 = vector.broadcast %cst_78 : f32 to vector<2x128xf32>
    %318 = arith.addf %317, %316 : vector<2x128xf32>
    %319 = arith.divf %317, %318 : vector<2x128xf32>
    %320 = vector.extract_strided_slice %313 {offsets = [0, 128], sizes = [2, 64], strides = [1, 1]} : vector<2x256xf32> to vector<2x64xf32>
    %321 = math.tanh %320 : vector<2x64xf32>
    %322 = vector.extract_strided_slice %313 {offsets = [0, 192], sizes = [2, 64], strides = [1, 1]} : vector<2x256xf32> to vector<2x64xf32>
    %323 = arith.negf %322 : vector<2x64xf32>
    %324 = math.exp %323 : vector<2x64xf32>
    %cst_79 = arith.constant 1.000000e+00 : f32
    %325 = vector.broadcast %cst_79 : f32 to vector<2x64xf32>
    %326 = arith.addf %325, %324 : vector<2x64xf32>
    %327 = arith.divf %325, %326 : vector<2x64xf32>
    %328 = vector.extract_strided_slice %319 {offsets = [0, 64], sizes = [2, 64], strides = [1, 1]} : vector<2x128xf32> to vector<2x64xf32>
    %329 = arith.mulf %328, %307 : vector<2x64xf32>
    %330 = vector.extract_strided_slice %319 {offsets = [0, 0], sizes = [2, 64], strides = [1, 1]} : vector<2x128xf32> to vector<2x64xf32>
    %331 = arith.mulf %330, %321 : vector<2x64xf32>
    %332 = arith.addf %329, %331 : vector<2x64xf32>
    %333 = math.tanh %332 : vector<2x64xf32>
    %334 = arith.mulf %327, %333 : vector<2x64xf32>
    %335 = vector.extract_strided_slice %231 {offsets = [8, 0], sizes = [2, 256], strides = [1, 1]} : vector<16x256xf32> to vector<2x256xf32>
    %336 = arith.truncf %334 : vector<2x64xf32> to vector<2x64xbf16>
    %cst_80 = arith.constant dense<0.000000e+00> : vector<2x256xf32>
    %337 = tpu.matmul %336, %232, %cst_80 {dimension_numbers = #tpu.dot_dimension_numbers<[1], [0], [0], [1], [0, 0, 1, 1], [], []>} : vector<2x64xbf16>, vector<64x256xbf16>, vector<2x256xf32> -> vector<2x256xf32>
    %338 = arith.addf %335, %337 : vector<2x256xf32>
    %339 = vector.extract_strided_slice %338 {offsets = [0, 0], sizes = [2, 128], strides = [1, 1]} : vector<2x256xf32> to vector<2x128xf32>
    %340 = arith.negf %339 : vector<2x128xf32>
    %341 = math.exp %340 : vector<2x128xf32>
    %cst_81 = arith.constant 1.000000e+00 : f32
    %342 = vector.broadcast %cst_81 : f32 to vector<2x128xf32>
    %343 = arith.addf %342, %341 : vector<2x128xf32>
    %344 = arith.divf %342, %343 : vector<2x128xf32>
    %345 = vector.extract_strided_slice %338 {offsets = [0, 128], sizes = [2, 64], strides = [1, 1]} : vector<2x256xf32> to vector<2x64xf32>
    %346 = math.tanh %345 : vector<2x64xf32>
    %347 = vector.extract_strided_slice %338 {offsets = [0, 192], sizes = [2, 64], strides = [1, 1]} : vector<2x256xf32> to vector<2x64xf32>
    %348 = arith.negf %347 : vector<2x64xf32>
    %349 = math.exp %348 : vector<2x64xf32>
    %cst_82 = arith.constant 1.000000e+00 : f32
    %350 = vector.broadcast %cst_82 : f32 to vector<2x64xf32>
    %351 = arith.addf %350, %349 : vector<2x64xf32>
    %352 = arith.divf %350, %351 : vector<2x64xf32>
    %353 = vector.extract_strided_slice %344 {offsets = [0, 64], sizes = [2, 64], strides = [1, 1]} : vector<2x128xf32> to vector<2x64xf32>
    %354 = arith.mulf %353, %332 : vector<2x64xf32>
    %355 = vector.extract_strided_slice %344 {offsets = [0, 0], sizes = [2, 64], strides = [1, 1]} : vector<2x128xf32> to vector<2x64xf32>
    %356 = arith.mulf %355, %346 : vector<2x64xf32>
    %357 = arith.addf %354, %356 : vector<2x64xf32>
    %358 = math.tanh %357 : vector<2x64xf32>
    %359 = arith.mulf %352, %358 : vector<2x64xf32>
    %360 = vector.extract_strided_slice %231 {offsets = [10, 0], sizes = [2, 256], strides = [1, 1]} : vector<16x256xf32> to vector<2x256xf32>
    %361 = arith.truncf %359 : vector<2x64xf32> to vector<2x64xbf16>
    %cst_83 = arith.constant dense<0.000000e+00> : vector<2x256xf32>
    %362 = tpu.matmul %361, %232, %cst_83 {dimension_numbers = #tpu.dot_dimension_numbers<[1], [0], [0], [1], [0, 0, 1, 1], [], []>} : vector<2x64xbf16>, vector<64x256xbf16>, vector<2x256xf32> -> vector<2x256xf32>
    %363 = arith.addf %360, %362 : vector<2x256xf32>
    %364 = vector.extract_strided_slice %363 {offsets = [0, 0], sizes = [2, 128], strides = [1, 1]} : vector<2x256xf32> to vector<2x128xf32>
    %365 = arith.negf %364 : vector<2x128xf32>
    %366 = math.exp %365 : vector<2x128xf32>
    %cst_84 = arith.constant 1.000000e+00 : f32
    %367 = vector.broadcast %cst_84 : f32 to vector<2x128xf32>
    %368 = arith.addf %367, %366 : vector<2x128xf32>
    %369 = arith.divf %367, %368 : vector<2x128xf32>
    %370 = vector.extract_strided_slice %363 {offsets = [0, 128], sizes = [2, 64], strides = [1, 1]} : vector<2x256xf32> to vector<2x64xf32>
    %371 = math.tanh %370 : vector<2x64xf32>
    %372 = vector.extract_strided_slice %363 {offsets = [0, 192], sizes = [2, 64], strides = [1, 1]} : vector<2x256xf32> to vector<2x64xf32>
    %373 = arith.negf %372 : vector<2x64xf32>
    %374 = math.exp %373 : vector<2x64xf32>
    %cst_85 = arith.constant 1.000000e+00 : f32
    %375 = vector.broadcast %cst_85 : f32 to vector<2x64xf32>
    %376 = arith.addf %375, %374 : vector<2x64xf32>
    %377 = arith.divf %375, %376 : vector<2x64xf32>
    %378 = vector.extract_strided_slice %369 {offsets = [0, 64], sizes = [2, 64], strides = [1, 1]} : vector<2x128xf32> to vector<2x64xf32>
    %379 = arith.mulf %378, %357 : vector<2x64xf32>
    %380 = vector.extract_strided_slice %369 {offsets = [0, 0], sizes = [2, 64], strides = [1, 1]} : vector<2x128xf32> to vector<2x64xf32>
    %381 = arith.mulf %380, %371 : vector<2x64xf32>
    %382 = arith.addf %379, %381 : vector<2x64xf32>
    %383 = math.tanh %382 : vector<2x64xf32>
    %384 = arith.mulf %377, %383 : vector<2x64xf32>
    %385 = vector.extract_strided_slice %231 {offsets = [12, 0], sizes = [2, 256], strides = [1, 1]} : vector<16x256xf32> to vector<2x256xf32>
    %386 = arith.truncf %384 : vector<2x64xf32> to vector<2x64xbf16>
    %cst_86 = arith.constant dense<0.000000e+00> : vector<2x256xf32>
    %387 = tpu.matmul %386, %232, %cst_86 {dimension_numbers = #tpu.dot_dimension_numbers<[1], [0], [0], [1], [0, 0, 1, 1], [], []>} : vector<2x64xbf16>, vector<64x256xbf16>, vector<2x256xf32> -> vector<2x256xf32>
    %388 = arith.addf %385, %387 : vector<2x256xf32>
    %389 = vector.extract_strided_slice %388 {offsets = [0, 0], sizes = [2, 128], strides = [1, 1]} : vector<2x256xf32> to vector<2x128xf32>
    %390 = arith.negf %389 : vector<2x128xf32>
    %391 = math.exp %390 : vector<2x128xf32>
    %cst_87 = arith.constant 1.000000e+00 : f32
    %392 = vector.broadcast %cst_87 : f32 to vector<2x128xf32>
    %393 = arith.addf %392, %391 : vector<2x128xf32>
    %394 = arith.divf %392, %393 : vector<2x128xf32>
    %395 = vector.extract_strided_slice %388 {offsets = [0, 128], sizes = [2, 64], strides = [1, 1]} : vector<2x256xf32> to vector<2x64xf32>
    %396 = math.tanh %395 : vector<2x64xf32>
    %397 = vector.extract_strided_slice %388 {offsets = [0, 192], sizes = [2, 64], strides = [1, 1]} : vector<2x256xf32> to vector<2x64xf32>
    %398 = arith.negf %397 : vector<2x64xf32>
    %399 = math.exp %398 : vector<2x64xf32>
    %cst_88 = arith.constant 1.000000e+00 : f32
    %400 = vector.broadcast %cst_88 : f32 to vector<2x64xf32>
    %401 = arith.addf %400, %399 : vector<2x64xf32>
    %402 = arith.divf %400, %401 : vector<2x64xf32>
    %403 = vector.extract_strided_slice %394 {offsets = [0, 64], sizes = [2, 64], strides = [1, 1]} : vector<2x128xf32> to vector<2x64xf32>
    %404 = arith.mulf %403, %382 : vector<2x64xf32>
    %405 = vector.extract_strided_slice %394 {offsets = [0, 0], sizes = [2, 64], strides = [1, 1]} : vector<2x128xf32> to vector<2x64xf32>
    %406 = arith.mulf %405, %396 : vector<2x64xf32>
    %407 = arith.addf %404, %406 : vector<2x64xf32>
    %408 = math.tanh %407 : vector<2x64xf32>
    %409 = arith.mulf %402, %408 : vector<2x64xf32>
    %410 = vector.extract_strided_slice %231 {offsets = [14, 0], sizes = [2, 256], strides = [1, 1]} : vector<16x256xf32> to vector<2x256xf32>
    %411 = arith.truncf %409 : vector<2x64xf32> to vector<2x64xbf16>
    %cst_89 = arith.constant dense<0.000000e+00> : vector<2x256xf32>
    %412 = tpu.matmul %411, %232, %cst_89 {dimension_numbers = #tpu.dot_dimension_numbers<[1], [0], [0], [1], [0, 0, 1, 1], [], []>} : vector<2x64xbf16>, vector<64x256xbf16>, vector<2x256xf32> -> vector<2x256xf32>
    %413 = arith.addf %410, %412 : vector<2x256xf32>
    %414 = vector.extract_strided_slice %413 {offsets = [0, 0], sizes = [2, 128], strides = [1, 1]} : vector<2x256xf32> to vector<2x128xf32>
    %415 = arith.negf %414 : vector<2x128xf32>
    %416 = math.exp %415 : vector<2x128xf32>
    %cst_90 = arith.constant 1.000000e+00 : f32
    %417 = vector.broadcast %cst_90 : f32 to vector<2x128xf32>
    %418 = arith.addf %417, %416 : vector<2x128xf32>
    %419 = arith.divf %417, %418 : vector<2x128xf32>
    %420 = vector.extract_strided_slice %413 {offsets = [0, 128], sizes = [2, 64], strides = [1, 1]} : vector<2x256xf32> to vector<2x64xf32>
    %421 = math.tanh %420 : vector<2x64xf32>
    %422 = vector.extract_strided_slice %413 {offsets = [0, 192], sizes = [2, 64], strides = [1, 1]} : vector<2x256xf32> to vector<2x64xf32>
    %423 = arith.negf %422 : vector<2x64xf32>
    %424 = math.exp %423 : vector<2x64xf32>
    %cst_91 = arith.constant 1.000000e+00 : f32
    %425 = vector.broadcast %cst_91 : f32 to vector<2x64xf32>
    %426 = arith.addf %425, %424 : vector<2x64xf32>
    %427 = arith.divf %425, %426 : vector<2x64xf32>
    %428 = vector.extract_strided_slice %419 {offsets = [0, 64], sizes = [2, 64], strides = [1, 1]} : vector<2x128xf32> to vector<2x64xf32>
    %429 = arith.mulf %428, %407 : vector<2x64xf32>
    %430 = vector.extract_strided_slice %419 {offsets = [0, 0], sizes = [2, 64], strides = [1, 1]} : vector<2x128xf32> to vector<2x64xf32>
    %431 = arith.mulf %430, %421 : vector<2x64xf32>
    %432 = arith.addf %429, %431 : vector<2x64xf32>
    %433 = math.tanh %432 : vector<2x64xf32>
    %434 = arith.mulf %427, %433 : vector<2x64xf32>
    %c0_92 = arith.constant 0 : index
    %c0_93 = arith.constant 0 : index
    %435 = vector.load %arg7[%c0_92, %c0_93] : memref<16x256xbf16, #tpu.memory_space<vmem>>, vector<16x256xbf16>
    %c0_94 = arith.constant 0 : index
    %c0_95 = arith.constant 0 : index
    %436 = vector.load %arg8[%c0_94, %c0_95] : memref<64x256xbf16, #tpu.memory_space<vmem>>, vector<64x256xbf16>
    %c0_96 = arith.constant 0 : index
    %c0_97 = arith.constant 0 : index
    %437 = vector.load %arg9[%c0_96, %c0_97] : memref<1x256xf32, #tpu.memory_space<vmem>>, vector<1x256xf32>
    %c0_98 = arith.constant 0 : index
    %c0_99 = arith.constant 0 : index
    %438 = vector.load %arg10[%c0_98, %c0_99] : memref<64x256xbf16, #tpu.memory_space<vmem>>, vector<64x256xbf16>
    %c0_100 = arith.constant 0 : index
    %c0_101 = arith.constant 0 : index
    %439 = vector.load %arg11[%c0_100, %c0_101] : memref<64x256xbf16, #tpu.memory_space<vmem>>, vector<64x256xbf16>
    %c0_102 = arith.constant 0 : index
    %c0_103 = arith.constant 0 : index
    %440 = vector.load %arg12[%c0_102, %c0_103] : memref<1x256xf32, #tpu.memory_space<vmem>>, vector<1x256xf32>
    %c0_104 = arith.constant 0 : index
    %c0_105 = arith.constant 0 : index
    %441 = vector.load %arg13[%c0_104, %c0_105] : memref<64x16xbf16, #tpu.memory_space<vmem>>, vector<64x16xbf16>
    %c0_106 = arith.constant 0 : index
    %c0_107 = arith.constant 0 : index
    %442 = vector.load %arg14[%c0_106, %c0_107] : memref<1x16xf32, #tpu.memory_space<vmem>>, vector<1x16xf32>
    %443 = tpu.iota {dimensions = array<i32: 1>} : vector<2x16xi32>
    %444 = arith.sitofp %443 : vector<2x16xi32> to vector<2x16xf32>
    %c1_i32 = arith.constant 1 : i32
    %445 = vector.broadcast %c1_i32 : i32 to vector<2x16xi32>
    %446 = arith.cmpi eq, %443, %445 : vector<2x16xi32>
    %447 = arith.extui %446 : vector<2x16xi1> to vector<2x16xi32>
    %448 = arith.sitofp %447 : vector<2x16xi32> to vector<2x16xf32>
    %cst_108 = arith.constant dense<0xFF800000> : vector<2xf32>
    %449 = vector.multi_reduction <maximumf>, %448, %cst_108 [1] : vector<2x16xf32> to vector<2xf32>
    %450 = vector.shape_cast %449 : vector<2xf32> to vector<2x1xf32>
    %451 = vector.broadcast %450 : vector<2x1xf32> to vector<2x16xf32>
    %452 = arith.cmpf oeq, %448, %451 : vector<2x16xf32>
    %cst_109 = arith.constant 1.600000e+01 : f32
    %453 = vector.broadcast %cst_109 : f32 to vector<2x16xf32>
    %454 = arith.select %452, %444, %453 : vector<2x16xi1>, vector<2x16xf32>
    %cst_110 = arith.constant dense<0x7F800000> : vector<2xf32>
    %455 = vector.multi_reduction <minimumf>, %454, %cst_110 [1] : vector<2x16xf32> to vector<2xf32>
    %456 = vector.shape_cast %455 : vector<2xf32> to vector<2x1xf32>
    %457 = vector.broadcast %456 : vector<2x1xf32> to vector<2x16xf32>
    %458 = arith.cmpf oeq, %444, %457 : vector<2x16xf32>
    %459 = arith.extui %458 : vector<2x16xi1> to vector<2x16xi32>
    %460 = arith.sitofp %459 : vector<2x16xi32> to vector<2x16xf32>
    %461 = arith.truncf %460 : vector<2x16xf32> to vector<2x16xbf16>
    %cst_111 = arith.constant dense<0.000000e+00> : vector<2x256xf32>
    %462 = tpu.matmul %461, %435, %cst_111 {dimension_numbers = #tpu.dot_dimension_numbers<[1], [0], [0], [1], [0, 0, 1, 1], [], []>} : vector<2x16xbf16>, vector<16x256xbf16>, vector<2x256xf32> -> vector<2x256xf32>
    %463 = arith.truncf %222 : vector<2x64xf32> to vector<2x64xbf16>
    %cst_112 = arith.constant dense<0.000000e+00> : vector<2x256xf32>
    %464 = tpu.matmul %463, %436, %cst_112 {dimension_numbers = #tpu.dot_dimension_numbers<[1], [0], [0], [1], [0, 0, 1, 1], [], []>} : vector<2x64xbf16>, vector<64x256xbf16>, vector<2x256xf32> -> vector<2x256xf32>
    %465 = arith.addf %462, %464 : vector<2x256xf32>
    %466 = vector.broadcast %437 : vector<1x256xf32> to vector<2x256xf32>
    %467 = arith.addf %465, %466 : vector<2x256xf32>
    %468 = vector.extract_strided_slice %467 {offsets = [0, 0], sizes = [2, 128], strides = [1, 1]} : vector<2x256xf32> to vector<2x128xf32>
    %469 = arith.negf %468 : vector<2x128xf32>
    %470 = math.exp %469 : vector<2x128xf32>
    %cst_113 = arith.constant 1.000000e+00 : f32
    %471 = vector.broadcast %cst_113 : f32 to vector<2x128xf32>
    %472 = arith.addf %471, %470 : vector<2x128xf32>
    %473 = arith.divf %471, %472 : vector<2x128xf32>
    %474 = vector.extract_strided_slice %467 {offsets = [0, 128], sizes = [2, 64], strides = [1, 1]} : vector<2x256xf32> to vector<2x64xf32>
    %475 = math.tanh %474 : vector<2x64xf32>
    %476 = vector.extract_strided_slice %467 {offsets = [0, 192], sizes = [2, 64], strides = [1, 1]} : vector<2x256xf32> to vector<2x64xf32>
    %477 = arith.negf %476 : vector<2x64xf32>
    %478 = math.exp %477 : vector<2x64xf32>
    %cst_114 = arith.constant 1.000000e+00 : f32
    %479 = vector.broadcast %cst_114 : f32 to vector<2x64xf32>
    %480 = arith.addf %479, %478 : vector<2x64xf32>
    %481 = arith.divf %479, %480 : vector<2x64xf32>
    %482 = vector.extract_strided_slice %473 {offsets = [0, 64], sizes = [2, 64], strides = [1, 1]} : vector<2x128xf32> to vector<2x64xf32>
    %483 = arith.mulf %482, %220 : vector<2x64xf32>
    %484 = vector.extract_strided_slice %473 {offsets = [0, 0], sizes = [2, 64], strides = [1, 1]} : vector<2x128xf32> to vector<2x64xf32>
    %485 = arith.mulf %484, %475 : vector<2x64xf32>
    %486 = arith.addf %483, %485 : vector<2x64xf32>
    %487 = math.tanh %486 : vector<2x64xf32>
    %488 = arith.mulf %481, %487 : vector<2x64xf32>
    %489 = arith.truncf %488 : vector<2x64xf32> to vector<2x64xbf16>
    %cst_115 = arith.constant dense<0.000000e+00> : vector<2x256xf32>
    %490 = tpu.matmul %489, %438, %cst_115 {dimension_numbers = #tpu.dot_dimension_numbers<[1], [0], [0], [1], [0, 0, 1, 1], [], []>} : vector<2x64xbf16>, vector<64x256xbf16>, vector<2x256xf32> -> vector<2x256xf32>
    %491 = arith.truncf %434 : vector<2x64xf32> to vector<2x64xbf16>
    %cst_116 = arith.constant dense<0.000000e+00> : vector<2x256xf32>
    %492 = tpu.matmul %491, %439, %cst_116 {dimension_numbers = #tpu.dot_dimension_numbers<[1], [0], [0], [1], [0, 0, 1, 1], [], []>} : vector<2x64xbf16>, vector<64x256xbf16>, vector<2x256xf32> -> vector<2x256xf32>
    %493 = arith.addf %490, %492 : vector<2x256xf32>
    %494 = vector.broadcast %440 : vector<1x256xf32> to vector<2x256xf32>
    %495 = arith.addf %493, %494 : vector<2x256xf32>
    %496 = vector.extract_strided_slice %495 {offsets = [0, 0], sizes = [2, 128], strides = [1, 1]} : vector<2x256xf32> to vector<2x128xf32>
    %497 = arith.negf %496 : vector<2x128xf32>
    %498 = math.exp %497 : vector<2x128xf32>
    %cst_117 = arith.constant 1.000000e+00 : f32
    %499 = vector.broadcast %cst_117 : f32 to vector<2x128xf32>
    %500 = arith.addf %499, %498 : vector<2x128xf32>
    %501 = arith.divf %499, %500 : vector<2x128xf32>
    %502 = vector.extract_strided_slice %495 {offsets = [0, 128], sizes = [2, 64], strides = [1, 1]} : vector<2x256xf32> to vector<2x64xf32>
    %503 = math.tanh %502 : vector<2x64xf32>
    %504 = vector.extract_strided_slice %495 {offsets = [0, 192], sizes = [2, 64], strides = [1, 1]} : vector<2x256xf32> to vector<2x64xf32>
    %505 = arith.negf %504 : vector<2x64xf32>
    %506 = math.exp %505 : vector<2x64xf32>
    %cst_118 = arith.constant 1.000000e+00 : f32
    %507 = vector.broadcast %cst_118 : f32 to vector<2x64xf32>
    %508 = arith.addf %507, %506 : vector<2x64xf32>
    %509 = arith.divf %507, %508 : vector<2x64xf32>
    %510 = vector.extract_strided_slice %501 {offsets = [0, 64], sizes = [2, 64], strides = [1, 1]} : vector<2x128xf32> to vector<2x64xf32>
    %511 = arith.mulf %510, %432 : vector<2x64xf32>
    %512 = vector.extract_strided_slice %501 {offsets = [0, 0], sizes = [2, 64], strides = [1, 1]} : vector<2x128xf32> to vector<2x64xf32>
    %513 = arith.mulf %512, %503 : vector<2x64xf32>
    %514 = arith.addf %511, %513 : vector<2x64xf32>
    %515 = math.tanh %514 : vector<2x64xf32>
    %516 = arith.mulf %509, %515 : vector<2x64xf32>
    %517 = arith.truncf %516 : vector<2x64xf32> to vector<2x64xbf16>
    %cst_119 = arith.constant dense<0.000000e+00> : vector<2x16xf32>
    %518 = tpu.matmul %517, %441, %cst_119 {dimension_numbers = #tpu.dot_dimension_numbers<[1], [0], [0], [1], [0, 0, 1, 1], [], []>} : vector<2x64xbf16>, vector<64x16xbf16>, vector<2x16xf32> -> vector<2x16xf32>
    %519 = vector.broadcast %442 : vector<1x16xf32> to vector<2x16xf32>
    %520 = arith.addf %518, %519 : vector<2x16xf32>
    %cst_120 = arith.constant dense<0xFF800000> : vector<2xf32>
    %521 = vector.multi_reduction <maximumf>, %520, %cst_120 [1] : vector<2x16xf32> to vector<2xf32>
    %522 = vector.shape_cast %521 : vector<2xf32> to vector<2x1xf32>
    %523 = vector.broadcast %522 : vector<2x1xf32> to vector<2x16xf32>
    %524 = arith.cmpf oeq, %520, %523 : vector<2x16xf32>
    %cst_121 = arith.constant 1.600000e+01 : f32
    %525 = vector.broadcast %cst_121 : f32 to vector<2x16xf32>
    %526 = arith.select %524, %444, %525 : vector<2x16xi1>, vector<2x16xf32>
    %cst_122 = arith.constant dense<0x7F800000> : vector<2xf32>
    %527 = vector.multi_reduction <minimumf>, %526, %cst_122 [1] : vector<2x16xf32> to vector<2xf32>
    %528 = vector.shape_cast %527 : vector<2xf32> to vector<2x1xf32>
    %529 = vector.broadcast %528 : vector<2x1xf32> to vector<2x16xf32>
    %530 = arith.cmpf oeq, %444, %529 : vector<2x16xf32>
    %531 = arith.extui %530 : vector<2x16xi1> to vector<2x16xi32>
    %532 = arith.sitofp %531 : vector<2x16xi32> to vector<2x16xf32>
    %533 = arith.truncf %532 : vector<2x16xf32> to vector<2x16xbf16>
    %cst_123 = arith.constant dense<0.000000e+00> : vector<2x256xf32>
    %534 = tpu.matmul %533, %435, %cst_123 {dimension_numbers = #tpu.dot_dimension_numbers<[1], [0], [0], [1], [0, 0, 1, 1], [], []>} : vector<2x16xbf16>, vector<16x256xbf16>, vector<2x256xf32> -> vector<2x256xf32>
    %535 = arith.truncf %488 : vector<2x64xf32> to vector<2x64xbf16>
    %cst_124 = arith.constant dense<0.000000e+00> : vector<2x256xf32>
    %536 = tpu.matmul %535, %436, %cst_124 {dimension_numbers = #tpu.dot_dimension_numbers<[1], [0], [0], [1], [0, 0, 1, 1], [], []>} : vector<2x64xbf16>, vector<64x256xbf16>, vector<2x256xf32> -> vector<2x256xf32>
    %537 = arith.addf %534, %536 : vector<2x256xf32>
    %538 = vector.broadcast %437 : vector<1x256xf32> to vector<2x256xf32>
    %539 = arith.addf %537, %538 : vector<2x256xf32>
    %540 = vector.extract_strided_slice %539 {offsets = [0, 0], sizes = [2, 128], strides = [1, 1]} : vector<2x256xf32> to vector<2x128xf32>
    %541 = arith.negf %540 : vector<2x128xf32>
    %542 = math.exp %541 : vector<2x128xf32>
    %cst_125 = arith.constant 1.000000e+00 : f32
    %543 = vector.broadcast %cst_125 : f32 to vector<2x128xf32>
    %544 = arith.addf %543, %542 : vector<2x128xf32>
    %545 = arith.divf %543, %544 : vector<2x128xf32>
    %546 = vector.extract_strided_slice %539 {offsets = [0, 128], sizes = [2, 64], strides = [1, 1]} : vector<2x256xf32> to vector<2x64xf32>
    %547 = math.tanh %546 : vector<2x64xf32>
    %548 = vector.extract_strided_slice %539 {offsets = [0, 192], sizes = [2, 64], strides = [1, 1]} : vector<2x256xf32> to vector<2x64xf32>
    %549 = arith.negf %548 : vector<2x64xf32>
    %550 = math.exp %549 : vector<2x64xf32>
    %cst_126 = arith.constant 1.000000e+00 : f32
    %551 = vector.broadcast %cst_126 : f32 to vector<2x64xf32>
    %552 = arith.addf %551, %550 : vector<2x64xf32>
    %553 = arith.divf %551, %552 : vector<2x64xf32>
    %554 = vector.extract_strided_slice %545 {offsets = [0, 64], sizes = [2, 64], strides = [1, 1]} : vector<2x128xf32> to vector<2x64xf32>
    %555 = arith.mulf %554, %486 : vector<2x64xf32>
    %556 = vector.extract_strided_slice %545 {offsets = [0, 0], sizes = [2, 64], strides = [1, 1]} : vector<2x128xf32> to vector<2x64xf32>
    %557 = arith.mulf %556, %547 : vector<2x64xf32>
    %558 = arith.addf %555, %557 : vector<2x64xf32>
    %559 = math.tanh %558 : vector<2x64xf32>
    %560 = arith.mulf %553, %559 : vector<2x64xf32>
    %561 = arith.truncf %560 : vector<2x64xf32> to vector<2x64xbf16>
    %cst_127 = arith.constant dense<0.000000e+00> : vector<2x256xf32>
    %562 = tpu.matmul %561, %438, %cst_127 {dimension_numbers = #tpu.dot_dimension_numbers<[1], [0], [0], [1], [0, 0, 1, 1], [], []>} : vector<2x64xbf16>, vector<64x256xbf16>, vector<2x256xf32> -> vector<2x256xf32>
    %563 = arith.truncf %516 : vector<2x64xf32> to vector<2x64xbf16>
    %cst_128 = arith.constant dense<0.000000e+00> : vector<2x256xf32>
    %564 = tpu.matmul %563, %439, %cst_128 {dimension_numbers = #tpu.dot_dimension_numbers<[1], [0], [0], [1], [0, 0, 1, 1], [], []>} : vector<2x64xbf16>, vector<64x256xbf16>, vector<2x256xf32> -> vector<2x256xf32>
    %565 = arith.addf %562, %564 : vector<2x256xf32>
    %566 = vector.broadcast %440 : vector<1x256xf32> to vector<2x256xf32>
    %567 = arith.addf %565, %566 : vector<2x256xf32>
    %568 = vector.extract_strided_slice %567 {offsets = [0, 0], sizes = [2, 128], strides = [1, 1]} : vector<2x256xf32> to vector<2x128xf32>
    %569 = arith.negf %568 : vector<2x128xf32>
    %570 = math.exp %569 : vector<2x128xf32>
    %cst_129 = arith.constant 1.000000e+00 : f32
    %571 = vector.broadcast %cst_129 : f32 to vector<2x128xf32>
    %572 = arith.addf %571, %570 : vector<2x128xf32>
    %573 = arith.divf %571, %572 : vector<2x128xf32>
    %574 = vector.extract_strided_slice %567 {offsets = [0, 128], sizes = [2, 64], strides = [1, 1]} : vector<2x256xf32> to vector<2x64xf32>
    %575 = math.tanh %574 : vector<2x64xf32>
    %576 = vector.extract_strided_slice %567 {offsets = [0, 192], sizes = [2, 64], strides = [1, 1]} : vector<2x256xf32> to vector<2x64xf32>
    %577 = arith.negf %576 : vector<2x64xf32>
    %578 = math.exp %577 : vector<2x64xf32>
    %cst_130 = arith.constant 1.000000e+00 : f32
    %579 = vector.broadcast %cst_130 : f32 to vector<2x64xf32>
    %580 = arith.addf %579, %578 : vector<2x64xf32>
    %581 = arith.divf %579, %580 : vector<2x64xf32>
    %582 = vector.extract_strided_slice %573 {offsets = [0, 64], sizes = [2, 64], strides = [1, 1]} : vector<2x128xf32> to vector<2x64xf32>
    %583 = arith.mulf %582, %514 : vector<2x64xf32>
    %584 = vector.extract_strided_slice %573 {offsets = [0, 0], sizes = [2, 64], strides = [1, 1]} : vector<2x128xf32> to vector<2x64xf32>
    %585 = arith.mulf %584, %575 : vector<2x64xf32>
    %586 = arith.addf %583, %585 : vector<2x64xf32>
    %587 = math.tanh %586 : vector<2x64xf32>
    %588 = arith.mulf %581, %587 : vector<2x64xf32>
    %589 = arith.truncf %588 : vector<2x64xf32> to vector<2x64xbf16>
    %cst_131 = arith.constant dense<0.000000e+00> : vector<2x16xf32>
    %590 = tpu.matmul %589, %441, %cst_131 {dimension_numbers = #tpu.dot_dimension_numbers<[1], [0], [0], [1], [0, 0, 1, 1], [], []>} : vector<2x64xbf16>, vector<64x16xbf16>, vector<2x16xf32> -> vector<2x16xf32>
    %591 = vector.broadcast %442 : vector<1x16xf32> to vector<2x16xf32>
    %592 = arith.addf %590, %591 : vector<2x16xf32>
    %cst_132 = arith.constant dense<0xFF800000> : vector<2xf32>
    %593 = vector.multi_reduction <maximumf>, %592, %cst_132 [1] : vector<2x16xf32> to vector<2xf32>
    %594 = vector.shape_cast %593 : vector<2xf32> to vector<2x1xf32>
    %595 = vector.broadcast %594 : vector<2x1xf32> to vector<2x16xf32>
    %596 = arith.cmpf oeq, %592, %595 : vector<2x16xf32>
    %cst_133 = arith.constant 1.600000e+01 : f32
    %597 = vector.broadcast %cst_133 : f32 to vector<2x16xf32>
    %598 = arith.select %596, %444, %597 : vector<2x16xi1>, vector<2x16xf32>
    %cst_134 = arith.constant dense<0x7F800000> : vector<2xf32>
    %599 = vector.multi_reduction <minimumf>, %598, %cst_134 [1] : vector<2x16xf32> to vector<2xf32>
    %600 = vector.shape_cast %599 : vector<2xf32> to vector<2x1xf32>
    %601 = vector.broadcast %600 : vector<2x1xf32> to vector<2x16xf32>
    %602 = arith.cmpf oeq, %444, %601 : vector<2x16xf32>
    %603 = arith.extui %602 : vector<2x16xi1> to vector<2x16xi32>
    %604 = arith.sitofp %603 : vector<2x16xi32> to vector<2x16xf32>
    %605 = arith.truncf %604 : vector<2x16xf32> to vector<2x16xbf16>
    %cst_135 = arith.constant dense<0.000000e+00> : vector<2x256xf32>
    %606 = tpu.matmul %605, %435, %cst_135 {dimension_numbers = #tpu.dot_dimension_numbers<[1], [0], [0], [1], [0, 0, 1, 1], [], []>} : vector<2x16xbf16>, vector<16x256xbf16>, vector<2x256xf32> -> vector<2x256xf32>
    %607 = arith.truncf %560 : vector<2x64xf32> to vector<2x64xbf16>
    %cst_136 = arith.constant dense<0.000000e+00> : vector<2x256xf32>
    %608 = tpu.matmul %607, %436, %cst_136 {dimension_numbers = #tpu.dot_dimension_numbers<[1], [0], [0], [1], [0, 0, 1, 1], [], []>} : vector<2x64xbf16>, vector<64x256xbf16>, vector<2x256xf32> -> vector<2x256xf32>
    %609 = arith.addf %606, %608 : vector<2x256xf32>
    %610 = vector.broadcast %437 : vector<1x256xf32> to vector<2x256xf32>
    %611 = arith.addf %609, %610 : vector<2x256xf32>
    %612 = vector.extract_strided_slice %611 {offsets = [0, 0], sizes = [2, 128], strides = [1, 1]} : vector<2x256xf32> to vector<2x128xf32>
    %613 = arith.negf %612 : vector<2x128xf32>
    %614 = math.exp %613 : vector<2x128xf32>
    %cst_137 = arith.constant 1.000000e+00 : f32
    %615 = vector.broadcast %cst_137 : f32 to vector<2x128xf32>
    %616 = arith.addf %615, %614 : vector<2x128xf32>
    %617 = arith.divf %615, %616 : vector<2x128xf32>
    %618 = vector.extract_strided_slice %611 {offsets = [0, 128], sizes = [2, 64], strides = [1, 1]} : vector<2x256xf32> to vector<2x64xf32>
    %619 = math.tanh %618 : vector<2x64xf32>
    %620 = vector.extract_strided_slice %611 {offsets = [0, 192], sizes = [2, 64], strides = [1, 1]} : vector<2x256xf32> to vector<2x64xf32>
    %621 = arith.negf %620 : vector<2x64xf32>
    %622 = math.exp %621 : vector<2x64xf32>
    %cst_138 = arith.constant 1.000000e+00 : f32
    %623 = vector.broadcast %cst_138 : f32 to vector<2x64xf32>
    %624 = arith.addf %623, %622 : vector<2x64xf32>
    %625 = arith.divf %623, %624 : vector<2x64xf32>
    %626 = vector.extract_strided_slice %617 {offsets = [0, 64], sizes = [2, 64], strides = [1, 1]} : vector<2x128xf32> to vector<2x64xf32>
    %627 = arith.mulf %626, %558 : vector<2x64xf32>
    %628 = vector.extract_strided_slice %617 {offsets = [0, 0], sizes = [2, 64], strides = [1, 1]} : vector<2x128xf32> to vector<2x64xf32>
    %629 = arith.mulf %628, %619 : vector<2x64xf32>
    %630 = arith.addf %627, %629 : vector<2x64xf32>
    %631 = math.tanh %630 : vector<2x64xf32>
    %632 = arith.mulf %625, %631 : vector<2x64xf32>
    %633 = arith.truncf %632 : vector<2x64xf32> to vector<2x64xbf16>
    %cst_139 = arith.constant dense<0.000000e+00> : vector<2x256xf32>
    %634 = tpu.matmul %633, %438, %cst_139 {dimension_numbers = #tpu.dot_dimension_numbers<[1], [0], [0], [1], [0, 0, 1, 1], [], []>} : vector<2x64xbf16>, vector<64x256xbf16>, vector<2x256xf32> -> vector<2x256xf32>
    %635 = arith.truncf %588 : vector<2x64xf32> to vector<2x64xbf16>
    %cst_140 = arith.constant dense<0.000000e+00> : vector<2x256xf32>
    %636 = tpu.matmul %635, %439, %cst_140 {dimension_numbers = #tpu.dot_dimension_numbers<[1], [0], [0], [1], [0, 0, 1, 1], [], []>} : vector<2x64xbf16>, vector<64x256xbf16>, vector<2x256xf32> -> vector<2x256xf32>
    %637 = arith.addf %634, %636 : vector<2x256xf32>
    %638 = vector.broadcast %440 : vector<1x256xf32> to vector<2x256xf32>
    %639 = arith.addf %637, %638 : vector<2x256xf32>
    %640 = vector.extract_strided_slice %639 {offsets = [0, 0], sizes = [2, 128], strides = [1, 1]} : vector<2x256xf32> to vector<2x128xf32>
    %641 = arith.negf %640 : vector<2x128xf32>
    %642 = math.exp %641 : vector<2x128xf32>
    %cst_141 = arith.constant 1.000000e+00 : f32
    %643 = vector.broadcast %cst_141 : f32 to vector<2x128xf32>
    %644 = arith.addf %643, %642 : vector<2x128xf32>
    %645 = arith.divf %643, %644 : vector<2x128xf32>
    %646 = vector.extract_strided_slice %639 {offsets = [0, 128], sizes = [2, 64], strides = [1, 1]} : vector<2x256xf32> to vector<2x64xf32>
    %647 = math.tanh %646 : vector<2x64xf32>
    %648 = vector.extract_strided_slice %639 {offsets = [0, 192], sizes = [2, 64], strides = [1, 1]} : vector<2x256xf32> to vector<2x64xf32>
    %649 = arith.negf %648 : vector<2x64xf32>
    %650 = math.exp %649 : vector<2x64xf32>
    %cst_142 = arith.constant 1.000000e+00 : f32
    %651 = vector.broadcast %cst_142 : f32 to vector<2x64xf32>
    %652 = arith.addf %651, %650 : vector<2x64xf32>
    %653 = arith.divf %651, %652 : vector<2x64xf32>
    %654 = vector.extract_strided_slice %645 {offsets = [0, 64], sizes = [2, 64], strides = [1, 1]} : vector<2x128xf32> to vector<2x64xf32>
    %655 = arith.mulf %654, %586 : vector<2x64xf32>
    %656 = vector.extract_strided_slice %645 {offsets = [0, 0], sizes = [2, 64], strides = [1, 1]} : vector<2x128xf32> to vector<2x64xf32>
    %657 = arith.mulf %656, %647 : vector<2x64xf32>
    %658 = arith.addf %655, %657 : vector<2x64xf32>
    %659 = math.tanh %658 : vector<2x64xf32>
    %660 = arith.mulf %653, %659 : vector<2x64xf32>
    %661 = arith.truncf %660 : vector<2x64xf32> to vector<2x64xbf16>
    %cst_143 = arith.constant dense<0.000000e+00> : vector<2x16xf32>
    %662 = tpu.matmul %661, %441, %cst_143 {dimension_numbers = #tpu.dot_dimension_numbers<[1], [0], [0], [1], [0, 0, 1, 1], [], []>} : vector<2x64xbf16>, vector<64x16xbf16>, vector<2x16xf32> -> vector<2x16xf32>
    %663 = vector.broadcast %442 : vector<1x16xf32> to vector<2x16xf32>
    %664 = arith.addf %662, %663 : vector<2x16xf32>
    %cst_144 = arith.constant dense<0xFF800000> : vector<2xf32>
    %665 = vector.multi_reduction <maximumf>, %664, %cst_144 [1] : vector<2x16xf32> to vector<2xf32>
    %666 = vector.shape_cast %665 : vector<2xf32> to vector<2x1xf32>
    %667 = vector.broadcast %666 : vector<2x1xf32> to vector<2x16xf32>
    %668 = arith.cmpf oeq, %664, %667 : vector<2x16xf32>
    %cst_145 = arith.constant 1.600000e+01 : f32
    %669 = vector.broadcast %cst_145 : f32 to vector<2x16xf32>
    %670 = arith.select %668, %444, %669 : vector<2x16xi1>, vector<2x16xf32>
    %cst_146 = arith.constant dense<0x7F800000> : vector<2xf32>
    %671 = vector.multi_reduction <minimumf>, %670, %cst_146 [1] : vector<2x16xf32> to vector<2xf32>
    %672 = vector.shape_cast %671 : vector<2xf32> to vector<2x1xf32>
    %673 = vector.broadcast %672 : vector<2x1xf32> to vector<2x16xf32>
    %674 = arith.cmpf oeq, %444, %673 : vector<2x16xf32>
    %675 = arith.extui %674 : vector<2x16xi1> to vector<2x16xi32>
    %676 = arith.sitofp %675 : vector<2x16xi32> to vector<2x16xf32>
    %677 = arith.truncf %676 : vector<2x16xf32> to vector<2x16xbf16>
    %cst_147 = arith.constant dense<0.000000e+00> : vector<2x256xf32>
    %678 = tpu.matmul %677, %435, %cst_147 {dimension_numbers = #tpu.dot_dimension_numbers<[1], [0], [0], [1], [0, 0, 1, 1], [], []>} : vector<2x16xbf16>, vector<16x256xbf16>, vector<2x256xf32> -> vector<2x256xf32>
    %679 = arith.truncf %632 : vector<2x64xf32> to vector<2x64xbf16>
    %cst_148 = arith.constant dense<0.000000e+00> : vector<2x256xf32>
    %680 = tpu.matmul %679, %436, %cst_148 {dimension_numbers = #tpu.dot_dimension_numbers<[1], [0], [0], [1], [0, 0, 1, 1], [], []>} : vector<2x64xbf16>, vector<64x256xbf16>, vector<2x256xf32> -> vector<2x256xf32>
    %681 = arith.addf %678, %680 : vector<2x256xf32>
    %682 = vector.broadcast %437 : vector<1x256xf32> to vector<2x256xf32>
    %683 = arith.addf %681, %682 : vector<2x256xf32>
    %684 = vector.extract_strided_slice %683 {offsets = [0, 0], sizes = [2, 128], strides = [1, 1]} : vector<2x256xf32> to vector<2x128xf32>
    %685 = arith.negf %684 : vector<2x128xf32>
    %686 = math.exp %685 : vector<2x128xf32>
    %cst_149 = arith.constant 1.000000e+00 : f32
    %687 = vector.broadcast %cst_149 : f32 to vector<2x128xf32>
    %688 = arith.addf %687, %686 : vector<2x128xf32>
    %689 = arith.divf %687, %688 : vector<2x128xf32>
    %690 = vector.extract_strided_slice %683 {offsets = [0, 128], sizes = [2, 64], strides = [1, 1]} : vector<2x256xf32> to vector<2x64xf32>
    %691 = math.tanh %690 : vector<2x64xf32>
    %692 = vector.extract_strided_slice %683 {offsets = [0, 192], sizes = [2, 64], strides = [1, 1]} : vector<2x256xf32> to vector<2x64xf32>
    %693 = arith.negf %692 : vector<2x64xf32>
    %694 = math.exp %693 : vector<2x64xf32>
    %cst_150 = arith.constant 1.000000e+00 : f32
    %695 = vector.broadcast %cst_150 : f32 to vector<2x64xf32>
    %696 = arith.addf %695, %694 : vector<2x64xf32>
    %697 = arith.divf %695, %696 : vector<2x64xf32>
    %698 = vector.extract_strided_slice %689 {offsets = [0, 64], sizes = [2, 64], strides = [1, 1]} : vector<2x128xf32> to vector<2x64xf32>
    %699 = arith.mulf %698, %630 : vector<2x64xf32>
    %700 = vector.extract_strided_slice %689 {offsets = [0, 0], sizes = [2, 64], strides = [1, 1]} : vector<2x128xf32> to vector<2x64xf32>
    %701 = arith.mulf %700, %691 : vector<2x64xf32>
    %702 = arith.addf %699, %701 : vector<2x64xf32>
    %703 = math.tanh %702 : vector<2x64xf32>
    %704 = arith.mulf %697, %703 : vector<2x64xf32>
    %705 = arith.truncf %704 : vector<2x64xf32> to vector<2x64xbf16>
    %cst_151 = arith.constant dense<0.000000e+00> : vector<2x256xf32>
    %706 = tpu.matmul %705, %438, %cst_151 {dimension_numbers = #tpu.dot_dimension_numbers<[1], [0], [0], [1], [0, 0, 1, 1], [], []>} : vector<2x64xbf16>, vector<64x256xbf16>, vector<2x256xf32> -> vector<2x256xf32>
    %707 = arith.truncf %660 : vector<2x64xf32> to vector<2x64xbf16>
    %cst_152 = arith.constant dense<0.000000e+00> : vector<2x256xf32>
    %708 = tpu.matmul %707, %439, %cst_152 {dimension_numbers = #tpu.dot_dimension_numbers<[1], [0], [0], [1], [0, 0, 1, 1], [], []>} : vector<2x64xbf16>, vector<64x256xbf16>, vector<2x256xf32> -> vector<2x256xf32>
    %709 = arith.addf %706, %708 : vector<2x256xf32>
    %710 = vector.broadcast %440 : vector<1x256xf32> to vector<2x256xf32>
    %711 = arith.addf %709, %710 : vector<2x256xf32>
    %712 = vector.extract_strided_slice %711 {offsets = [0, 0], sizes = [2, 128], strides = [1, 1]} : vector<2x256xf32> to vector<2x128xf32>
    %713 = arith.negf %712 : vector<2x128xf32>
    %714 = math.exp %713 : vector<2x128xf32>
    %cst_153 = arith.constant 1.000000e+00 : f32
    %715 = vector.broadcast %cst_153 : f32 to vector<2x128xf32>
    %716 = arith.addf %715, %714 : vector<2x128xf32>
    %717 = arith.divf %715, %716 : vector<2x128xf32>
    %718 = vector.extract_strided_slice %711 {offsets = [0, 128], sizes = [2, 64], strides = [1, 1]} : vector<2x256xf32> to vector<2x64xf32>
    %719 = math.tanh %718 : vector<2x64xf32>
    %720 = vector.extract_strided_slice %711 {offsets = [0, 192], sizes = [2, 64], strides = [1, 1]} : vector<2x256xf32> to vector<2x64xf32>
    %721 = arith.negf %720 : vector<2x64xf32>
    %722 = math.exp %721 : vector<2x64xf32>
    %cst_154 = arith.constant 1.000000e+00 : f32
    %723 = vector.broadcast %cst_154 : f32 to vector<2x64xf32>
    %724 = arith.addf %723, %722 : vector<2x64xf32>
    %725 = arith.divf %723, %724 : vector<2x64xf32>
    %726 = vector.extract_strided_slice %717 {offsets = [0, 64], sizes = [2, 64], strides = [1, 1]} : vector<2x128xf32> to vector<2x64xf32>
    %727 = arith.mulf %726, %658 : vector<2x64xf32>
    %728 = vector.extract_strided_slice %717 {offsets = [0, 0], sizes = [2, 64], strides = [1, 1]} : vector<2x128xf32> to vector<2x64xf32>
    %729 = arith.mulf %728, %719 : vector<2x64xf32>
    %730 = arith.addf %727, %729 : vector<2x64xf32>
    %731 = math.tanh %730 : vector<2x64xf32>
    %732 = arith.mulf %725, %731 : vector<2x64xf32>
    %733 = arith.truncf %732 : vector<2x64xf32> to vector<2x64xbf16>
    %cst_155 = arith.constant dense<0.000000e+00> : vector<2x16xf32>
    %734 = tpu.matmul %733, %441, %cst_155 {dimension_numbers = #tpu.dot_dimension_numbers<[1], [0], [0], [1], [0, 0, 1, 1], [], []>} : vector<2x64xbf16>, vector<64x16xbf16>, vector<2x16xf32> -> vector<2x16xf32>
    %735 = vector.broadcast %442 : vector<1x16xf32> to vector<2x16xf32>
    %736 = arith.addf %734, %735 : vector<2x16xf32>
    %cst_156 = arith.constant dense<0xFF800000> : vector<2xf32>
    %737 = vector.multi_reduction <maximumf>, %736, %cst_156 [1] : vector<2x16xf32> to vector<2xf32>
    %738 = vector.shape_cast %737 : vector<2xf32> to vector<2x1xf32>
    %739 = vector.broadcast %738 : vector<2x1xf32> to vector<2x16xf32>
    %740 = arith.cmpf oeq, %736, %739 : vector<2x16xf32>
    %cst_157 = arith.constant 1.600000e+01 : f32
    %741 = vector.broadcast %cst_157 : f32 to vector<2x16xf32>
    %742 = arith.select %740, %444, %741 : vector<2x16xi1>, vector<2x16xf32>
    %cst_158 = arith.constant dense<0x7F800000> : vector<2xf32>
    %743 = vector.multi_reduction <minimumf>, %742, %cst_158 [1] : vector<2x16xf32> to vector<2xf32>
    %744 = vector.shape_cast %743 : vector<2xf32> to vector<2x1xf32>
    %745 = vector.broadcast %744 : vector<2x1xf32> to vector<2x16xf32>
    %746 = arith.cmpf oeq, %444, %745 : vector<2x16xf32>
    %747 = arith.extui %746 : vector<2x16xi1> to vector<2x16xi32>
    %748 = arith.sitofp %747 : vector<2x16xi32> to vector<2x16xf32>
    %749 = arith.truncf %748 : vector<2x16xf32> to vector<2x16xbf16>
    %cst_159 = arith.constant dense<0.000000e+00> : vector<2x256xf32>
    %750 = tpu.matmul %749, %435, %cst_159 {dimension_numbers = #tpu.dot_dimension_numbers<[1], [0], [0], [1], [0, 0, 1, 1], [], []>} : vector<2x16xbf16>, vector<16x256xbf16>, vector<2x256xf32> -> vector<2x256xf32>
    %751 = arith.truncf %704 : vector<2x64xf32> to vector<2x64xbf16>
    %cst_160 = arith.constant dense<0.000000e+00> : vector<2x256xf32>
    %752 = tpu.matmul %751, %436, %cst_160 {dimension_numbers = #tpu.dot_dimension_numbers<[1], [0], [0], [1], [0, 0, 1, 1], [], []>} : vector<2x64xbf16>, vector<64x256xbf16>, vector<2x256xf32> -> vector<2x256xf32>
    %753 = arith.addf %750, %752 : vector<2x256xf32>
    %754 = vector.broadcast %437 : vector<1x256xf32> to vector<2x256xf32>
    %755 = arith.addf %753, %754 : vector<2x256xf32>
    %756 = vector.extract_strided_slice %755 {offsets = [0, 0], sizes = [2, 128], strides = [1, 1]} : vector<2x256xf32> to vector<2x128xf32>
    %757 = arith.negf %756 : vector<2x128xf32>
    %758 = math.exp %757 : vector<2x128xf32>
    %cst_161 = arith.constant 1.000000e+00 : f32
    %759 = vector.broadcast %cst_161 : f32 to vector<2x128xf32>
    %760 = arith.addf %759, %758 : vector<2x128xf32>
    %761 = arith.divf %759, %760 : vector<2x128xf32>
    %762 = vector.extract_strided_slice %755 {offsets = [0, 128], sizes = [2, 64], strides = [1, 1]} : vector<2x256xf32> to vector<2x64xf32>
    %763 = math.tanh %762 : vector<2x64xf32>
    %764 = vector.extract_strided_slice %755 {offsets = [0, 192], sizes = [2, 64], strides = [1, 1]} : vector<2x256xf32> to vector<2x64xf32>
    %765 = arith.negf %764 : vector<2x64xf32>
    %766 = math.exp %765 : vector<2x64xf32>
    %cst_162 = arith.constant 1.000000e+00 : f32
    %767 = vector.broadcast %cst_162 : f32 to vector<2x64xf32>
    %768 = arith.addf %767, %766 : vector<2x64xf32>
    %769 = arith.divf %767, %768 : vector<2x64xf32>
    %770 = vector.extract_strided_slice %761 {offsets = [0, 64], sizes = [2, 64], strides = [1, 1]} : vector<2x128xf32> to vector<2x64xf32>
    %771 = arith.mulf %770, %702 : vector<2x64xf32>
    %772 = vector.extract_strided_slice %761 {offsets = [0, 0], sizes = [2, 64], strides = [1, 1]} : vector<2x128xf32> to vector<2x64xf32>
    %773 = arith.mulf %772, %763 : vector<2x64xf32>
    %774 = arith.addf %771, %773 : vector<2x64xf32>
    %775 = math.tanh %774 : vector<2x64xf32>
    %776 = arith.mulf %769, %775 : vector<2x64xf32>
    %777 = arith.truncf %776 : vector<2x64xf32> to vector<2x64xbf16>
    %cst_163 = arith.constant dense<0.000000e+00> : vector<2x256xf32>
    %778 = tpu.matmul %777, %438, %cst_163 {dimension_numbers = #tpu.dot_dimension_numbers<[1], [0], [0], [1], [0, 0, 1, 1], [], []>} : vector<2x64xbf16>, vector<64x256xbf16>, vector<2x256xf32> -> vector<2x256xf32>
    %779 = arith.truncf %732 : vector<2x64xf32> to vector<2x64xbf16>
    %cst_164 = arith.constant dense<0.000000e+00> : vector<2x256xf32>
    %780 = tpu.matmul %779, %439, %cst_164 {dimension_numbers = #tpu.dot_dimension_numbers<[1], [0], [0], [1], [0, 0, 1, 1], [], []>} : vector<2x64xbf16>, vector<64x256xbf16>, vector<2x256xf32> -> vector<2x256xf32>
    %781 = arith.addf %778, %780 : vector<2x256xf32>
    %782 = vector.broadcast %440 : vector<1x256xf32> to vector<2x256xf32>
    %783 = arith.addf %781, %782 : vector<2x256xf32>
    %784 = vector.extract_strided_slice %783 {offsets = [0, 0], sizes = [2, 128], strides = [1, 1]} : vector<2x256xf32> to vector<2x128xf32>
    %785 = arith.negf %784 : vector<2x128xf32>
    %786 = math.exp %785 : vector<2x128xf32>
    %cst_165 = arith.constant 1.000000e+00 : f32
    %787 = vector.broadcast %cst_165 : f32 to vector<2x128xf32>
    %788 = arith.addf %787, %786 : vector<2x128xf32>
    %789 = arith.divf %787, %788 : vector<2x128xf32>
    %790 = vector.extract_strided_slice %783 {offsets = [0, 128], sizes = [2, 64], strides = [1, 1]} : vector<2x256xf32> to vector<2x64xf32>
    %791 = math.tanh %790 : vector<2x64xf32>
    %792 = vector.extract_strided_slice %783 {offsets = [0, 192], sizes = [2, 64], strides = [1, 1]} : vector<2x256xf32> to vector<2x64xf32>
    %793 = arith.negf %792 : vector<2x64xf32>
    %794 = math.exp %793 : vector<2x64xf32>
    %cst_166 = arith.constant 1.000000e+00 : f32
    %795 = vector.broadcast %cst_166 : f32 to vector<2x64xf32>
    %796 = arith.addf %795, %794 : vector<2x64xf32>
    %797 = arith.divf %795, %796 : vector<2x64xf32>
    %798 = vector.extract_strided_slice %789 {offsets = [0, 64], sizes = [2, 64], strides = [1, 1]} : vector<2x128xf32> to vector<2x64xf32>
    %799 = arith.mulf %798, %730 : vector<2x64xf32>
    %800 = vector.extract_strided_slice %789 {offsets = [0, 0], sizes = [2, 64], strides = [1, 1]} : vector<2x128xf32> to vector<2x64xf32>
    %801 = arith.mulf %800, %791 : vector<2x64xf32>
    %802 = arith.addf %799, %801 : vector<2x64xf32>
    %803 = math.tanh %802 : vector<2x64xf32>
    %804 = arith.mulf %797, %803 : vector<2x64xf32>
    %805 = arith.truncf %804 : vector<2x64xf32> to vector<2x64xbf16>
    %cst_167 = arith.constant dense<0.000000e+00> : vector<2x16xf32>
    %806 = tpu.matmul %805, %441, %cst_167 {dimension_numbers = #tpu.dot_dimension_numbers<[1], [0], [0], [1], [0, 0, 1, 1], [], []>} : vector<2x64xbf16>, vector<64x16xbf16>, vector<2x16xf32> -> vector<2x16xf32>
    %807 = vector.broadcast %442 : vector<1x16xf32> to vector<2x16xf32>
    %808 = arith.addf %806, %807 : vector<2x16xf32>
    %cst_168 = arith.constant dense<0xFF800000> : vector<2xf32>
    %809 = vector.multi_reduction <maximumf>, %808, %cst_168 [1] : vector<2x16xf32> to vector<2xf32>
    %810 = vector.shape_cast %809 : vector<2xf32> to vector<2x1xf32>
    %811 = vector.broadcast %810 : vector<2x1xf32> to vector<2x16xf32>
    %812 = arith.cmpf oeq, %808, %811 : vector<2x16xf32>
    %cst_169 = arith.constant 1.600000e+01 : f32
    %813 = vector.broadcast %cst_169 : f32 to vector<2x16xf32>
    %814 = arith.select %812, %444, %813 : vector<2x16xi1>, vector<2x16xf32>
    %cst_170 = arith.constant dense<0x7F800000> : vector<2xf32>
    %815 = vector.multi_reduction <minimumf>, %814, %cst_170 [1] : vector<2x16xf32> to vector<2xf32>
    %816 = vector.shape_cast %815 : vector<2xf32> to vector<2x1xf32>
    %817 = vector.broadcast %816 : vector<2x1xf32> to vector<2x16xf32>
    %818 = arith.cmpf oeq, %444, %817 : vector<2x16xf32>
    %819 = arith.extui %818 : vector<2x16xi1> to vector<2x16xi32>
    %820 = arith.sitofp %819 : vector<2x16xi32> to vector<2x16xf32>
    %821 = arith.truncf %820 : vector<2x16xf32> to vector<2x16xbf16>
    %cst_171 = arith.constant dense<0.000000e+00> : vector<2x256xf32>
    %822 = tpu.matmul %821, %435, %cst_171 {dimension_numbers = #tpu.dot_dimension_numbers<[1], [0], [0], [1], [0, 0, 1, 1], [], []>} : vector<2x16xbf16>, vector<16x256xbf16>, vector<2x256xf32> -> vector<2x256xf32>
    %823 = arith.truncf %776 : vector<2x64xf32> to vector<2x64xbf16>
    %cst_172 = arith.constant dense<0.000000e+00> : vector<2x256xf32>
    %824 = tpu.matmul %823, %436, %cst_172 {dimension_numbers = #tpu.dot_dimension_numbers<[1], [0], [0], [1], [0, 0, 1, 1], [], []>} : vector<2x64xbf16>, vector<64x256xbf16>, vector<2x256xf32> -> vector<2x256xf32>
    %825 = arith.addf %822, %824 : vector<2x256xf32>
    %826 = vector.broadcast %437 : vector<1x256xf32> to vector<2x256xf32>
    %827 = arith.addf %825, %826 : vector<2x256xf32>
    %828 = vector.extract_strided_slice %827 {offsets = [0, 0], sizes = [2, 128], strides = [1, 1]} : vector<2x256xf32> to vector<2x128xf32>
    %829 = arith.negf %828 : vector<2x128xf32>
    %830 = math.exp %829 : vector<2x128xf32>
    %cst_173 = arith.constant 1.000000e+00 : f32
    %831 = vector.broadcast %cst_173 : f32 to vector<2x128xf32>
    %832 = arith.addf %831, %830 : vector<2x128xf32>
    %833 = arith.divf %831, %832 : vector<2x128xf32>
    %834 = vector.extract_strided_slice %827 {offsets = [0, 128], sizes = [2, 64], strides = [1, 1]} : vector<2x256xf32> to vector<2x64xf32>
    %835 = math.tanh %834 : vector<2x64xf32>
    %836 = vector.extract_strided_slice %827 {offsets = [0, 192], sizes = [2, 64], strides = [1, 1]} : vector<2x256xf32> to vector<2x64xf32>
    %837 = arith.negf %836 : vector<2x64xf32>
    %838 = math.exp %837 : vector<2x64xf32>
    %cst_174 = arith.constant 1.000000e+00 : f32
    %839 = vector.broadcast %cst_174 : f32 to vector<2x64xf32>
    %840 = arith.addf %839, %838 : vector<2x64xf32>
    %841 = arith.divf %839, %840 : vector<2x64xf32>
    %842 = vector.extract_strided_slice %833 {offsets = [0, 64], sizes = [2, 64], strides = [1, 1]} : vector<2x128xf32> to vector<2x64xf32>
    %843 = arith.mulf %842, %774 : vector<2x64xf32>
    %844 = vector.extract_strided_slice %833 {offsets = [0, 0], sizes = [2, 64], strides = [1, 1]} : vector<2x128xf32> to vector<2x64xf32>
    %845 = arith.mulf %844, %835 : vector<2x64xf32>
    %846 = arith.addf %843, %845 : vector<2x64xf32>
    %847 = math.tanh %846 : vector<2x64xf32>
    %848 = arith.mulf %841, %847 : vector<2x64xf32>
    %849 = arith.truncf %848 : vector<2x64xf32> to vector<2x64xbf16>
    %cst_175 = arith.constant dense<0.000000e+00> : vector<2x256xf32>
    %850 = tpu.matmul %849, %438, %cst_175 {dimension_numbers = #tpu.dot_dimension_numbers<[1], [0], [0], [1], [0, 0, 1, 1], [], []>} : vector<2x64xbf16>, vector<64x256xbf16>, vector<2x256xf32> -> vector<2x256xf32>
    %851 = arith.truncf %804 : vector<2x64xf32> to vector<2x64xbf16>
    %cst_176 = arith.constant dense<0.000000e+00> : vector<2x256xf32>
    %852 = tpu.matmul %851, %439, %cst_176 {dimension_numbers = #tpu.dot_dimension_numbers<[1], [0], [0], [1], [0, 0, 1, 1], [], []>} : vector<2x64xbf16>, vector<64x256xbf16>, vector<2x256xf32> -> vector<2x256xf32>
    %853 = arith.addf %850, %852 : vector<2x256xf32>
    %854 = vector.broadcast %440 : vector<1x256xf32> to vector<2x256xf32>
    %855 = arith.addf %853, %854 : vector<2x256xf32>
    %856 = vector.extract_strided_slice %855 {offsets = [0, 0], sizes = [2, 128], strides = [1, 1]} : vector<2x256xf32> to vector<2x128xf32>
    %857 = arith.negf %856 : vector<2x128xf32>
    %858 = math.exp %857 : vector<2x128xf32>
    %cst_177 = arith.constant 1.000000e+00 : f32
    %859 = vector.broadcast %cst_177 : f32 to vector<2x128xf32>
    %860 = arith.addf %859, %858 : vector<2x128xf32>
    %861 = arith.divf %859, %860 : vector<2x128xf32>
    %862 = vector.extract_strided_slice %855 {offsets = [0, 128], sizes = [2, 64], strides = [1, 1]} : vector<2x256xf32> to vector<2x64xf32>
    %863 = math.tanh %862 : vector<2x64xf32>
    %864 = vector.extract_strided_slice %855 {offsets = [0, 192], sizes = [2, 64], strides = [1, 1]} : vector<2x256xf32> to vector<2x64xf32>
    %865 = arith.negf %864 : vector<2x64xf32>
    %866 = math.exp %865 : vector<2x64xf32>
    %cst_178 = arith.constant 1.000000e+00 : f32
    %867 = vector.broadcast %cst_178 : f32 to vector<2x64xf32>
    %868 = arith.addf %867, %866 : vector<2x64xf32>
    %869 = arith.divf %867, %868 : vector<2x64xf32>
    %870 = vector.extract_strided_slice %861 {offsets = [0, 64], sizes = [2, 64], strides = [1, 1]} : vector<2x128xf32> to vector<2x64xf32>
    %871 = arith.mulf %870, %802 : vector<2x64xf32>
    %872 = vector.extract_strided_slice %861 {offsets = [0, 0], sizes = [2, 64], strides = [1, 1]} : vector<2x128xf32> to vector<2x64xf32>
    %873 = arith.mulf %872, %863 : vector<2x64xf32>
    %874 = arith.addf %871, %873 : vector<2x64xf32>
    %875 = math.tanh %874 : vector<2x64xf32>
    %876 = arith.mulf %869, %875 : vector<2x64xf32>
    %877 = arith.truncf %876 : vector<2x64xf32> to vector<2x64xbf16>
    %cst_179 = arith.constant dense<0.000000e+00> : vector<2x16xf32>
    %878 = tpu.matmul %877, %441, %cst_179 {dimension_numbers = #tpu.dot_dimension_numbers<[1], [0], [0], [1], [0, 0, 1, 1], [], []>} : vector<2x64xbf16>, vector<64x16xbf16>, vector<2x16xf32> -> vector<2x16xf32>
    %879 = vector.broadcast %442 : vector<1x16xf32> to vector<2x16xf32>
    %880 = arith.addf %878, %879 : vector<2x16xf32>
    %cst_180 = arith.constant dense<0xFF800000> : vector<2xf32>
    %881 = vector.multi_reduction <maximumf>, %880, %cst_180 [1] : vector<2x16xf32> to vector<2xf32>
    %882 = vector.shape_cast %881 : vector<2xf32> to vector<2x1xf32>
    %883 = vector.broadcast %882 : vector<2x1xf32> to vector<2x16xf32>
    %884 = arith.cmpf oeq, %880, %883 : vector<2x16xf32>
    %cst_181 = arith.constant 1.600000e+01 : f32
    %885 = vector.broadcast %cst_181 : f32 to vector<2x16xf32>
    %886 = arith.select %884, %444, %885 : vector<2x16xi1>, vector<2x16xf32>
    %cst_182 = arith.constant dense<0x7F800000> : vector<2xf32>
    %887 = vector.multi_reduction <minimumf>, %886, %cst_182 [1] : vector<2x16xf32> to vector<2xf32>
    %888 = vector.shape_cast %887 : vector<2xf32> to vector<2x1xf32>
    %889 = vector.broadcast %888 : vector<2x1xf32> to vector<2x16xf32>
    %890 = arith.cmpf oeq, %444, %889 : vector<2x16xf32>
    %891 = arith.extui %890 : vector<2x16xi1> to vector<2x16xi32>
    %892 = arith.sitofp %891 : vector<2x16xi32> to vector<2x16xf32>
    %893 = arith.truncf %892 : vector<2x16xf32> to vector<2x16xbf16>
    %cst_183 = arith.constant dense<0.000000e+00> : vector<2x256xf32>
    %894 = tpu.matmul %893, %435, %cst_183 {dimension_numbers = #tpu.dot_dimension_numbers<[1], [0], [0], [1], [0, 0, 1, 1], [], []>} : vector<2x16xbf16>, vector<16x256xbf16>, vector<2x256xf32> -> vector<2x256xf32>
    %895 = arith.truncf %848 : vector<2x64xf32> to vector<2x64xbf16>
    %cst_184 = arith.constant dense<0.000000e+00> : vector<2x256xf32>
    %896 = tpu.matmul %895, %436, %cst_184 {dimension_numbers = #tpu.dot_dimension_numbers<[1], [0], [0], [1], [0, 0, 1, 1], [], []>} : vector<2x64xbf16>, vector<64x256xbf16>, vector<2x256xf32> -> vector<2x256xf32>
    %897 = arith.addf %894, %896 : vector<2x256xf32>
    %898 = vector.broadcast %437 : vector<1x256xf32> to vector<2x256xf32>
    %899 = arith.addf %897, %898 : vector<2x256xf32>
    %900 = vector.extract_strided_slice %899 {offsets = [0, 0], sizes = [2, 128], strides = [1, 1]} : vector<2x256xf32> to vector<2x128xf32>
    %901 = arith.negf %900 : vector<2x128xf32>
    %902 = math.exp %901 : vector<2x128xf32>
    %cst_185 = arith.constant 1.000000e+00 : f32
    %903 = vector.broadcast %cst_185 : f32 to vector<2x128xf32>
    %904 = arith.addf %903, %902 : vector<2x128xf32>
    %905 = arith.divf %903, %904 : vector<2x128xf32>
    %906 = vector.extract_strided_slice %899 {offsets = [0, 128], sizes = [2, 64], strides = [1, 1]} : vector<2x256xf32> to vector<2x64xf32>
    %907 = math.tanh %906 : vector<2x64xf32>
    %908 = vector.extract_strided_slice %899 {offsets = [0, 192], sizes = [2, 64], strides = [1, 1]} : vector<2x256xf32> to vector<2x64xf32>
    %909 = arith.negf %908 : vector<2x64xf32>
    %910 = math.exp %909 : vector<2x64xf32>
    %cst_186 = arith.constant 1.000000e+00 : f32
    %911 = vector.broadcast %cst_186 : f32 to vector<2x64xf32>
    %912 = arith.addf %911, %910 : vector<2x64xf32>
    %913 = arith.divf %911, %912 : vector<2x64xf32>
    %914 = vector.extract_strided_slice %905 {offsets = [0, 64], sizes = [2, 64], strides = [1, 1]} : vector<2x128xf32> to vector<2x64xf32>
    %915 = arith.mulf %914, %846 : vector<2x64xf32>
    %916 = vector.extract_strided_slice %905 {offsets = [0, 0], sizes = [2, 64], strides = [1, 1]} : vector<2x128xf32> to vector<2x64xf32>
    %917 = arith.mulf %916, %907 : vector<2x64xf32>
    %918 = arith.addf %915, %917 : vector<2x64xf32>
    %919 = math.tanh %918 : vector<2x64xf32>
    %920 = arith.mulf %913, %919 : vector<2x64xf32>
    %921 = arith.truncf %920 : vector<2x64xf32> to vector<2x64xbf16>
    %cst_187 = arith.constant dense<0.000000e+00> : vector<2x256xf32>
    %922 = tpu.matmul %921, %438, %cst_187 {dimension_numbers = #tpu.dot_dimension_numbers<[1], [0], [0], [1], [0, 0, 1, 1], [], []>} : vector<2x64xbf16>, vector<64x256xbf16>, vector<2x256xf32> -> vector<2x256xf32>
    %923 = arith.truncf %876 : vector<2x64xf32> to vector<2x64xbf16>
    %cst_188 = arith.constant dense<0.000000e+00> : vector<2x256xf32>
    %924 = tpu.matmul %923, %439, %cst_188 {dimension_numbers = #tpu.dot_dimension_numbers<[1], [0], [0], [1], [0, 0, 1, 1], [], []>} : vector<2x64xbf16>, vector<64x256xbf16>, vector<2x256xf32> -> vector<2x256xf32>
    %925 = arith.addf %922, %924 : vector<2x256xf32>
    %926 = vector.broadcast %440 : vector<1x256xf32> to vector<2x256xf32>
    %927 = arith.addf %925, %926 : vector<2x256xf32>
    %928 = vector.extract_strided_slice %927 {offsets = [0, 0], sizes = [2, 128], strides = [1, 1]} : vector<2x256xf32> to vector<2x128xf32>
    %929 = arith.negf %928 : vector<2x128xf32>
    %930 = math.exp %929 : vector<2x128xf32>
    %cst_189 = arith.constant 1.000000e+00 : f32
    %931 = vector.broadcast %cst_189 : f32 to vector<2x128xf32>
    %932 = arith.addf %931, %930 : vector<2x128xf32>
    %933 = arith.divf %931, %932 : vector<2x128xf32>
    %934 = vector.extract_strided_slice %927 {offsets = [0, 128], sizes = [2, 64], strides = [1, 1]} : vector<2x256xf32> to vector<2x64xf32>
    %935 = math.tanh %934 : vector<2x64xf32>
    %936 = vector.extract_strided_slice %927 {offsets = [0, 192], sizes = [2, 64], strides = [1, 1]} : vector<2x256xf32> to vector<2x64xf32>
    %937 = arith.negf %936 : vector<2x64xf32>
    %938 = math.exp %937 : vector<2x64xf32>
    %cst_190 = arith.constant 1.000000e+00 : f32
    %939 = vector.broadcast %cst_190 : f32 to vector<2x64xf32>
    %940 = arith.addf %939, %938 : vector<2x64xf32>
    %941 = arith.divf %939, %940 : vector<2x64xf32>
    %942 = vector.extract_strided_slice %933 {offsets = [0, 64], sizes = [2, 64], strides = [1, 1]} : vector<2x128xf32> to vector<2x64xf32>
    %943 = arith.mulf %942, %874 : vector<2x64xf32>
    %944 = vector.extract_strided_slice %933 {offsets = [0, 0], sizes = [2, 64], strides = [1, 1]} : vector<2x128xf32> to vector<2x64xf32>
    %945 = arith.mulf %944, %935 : vector<2x64xf32>
    %946 = arith.addf %943, %945 : vector<2x64xf32>
    %947 = math.tanh %946 : vector<2x64xf32>
    %948 = arith.mulf %941, %947 : vector<2x64xf32>
    %949 = arith.truncf %948 : vector<2x64xf32> to vector<2x64xbf16>
    %cst_191 = arith.constant dense<0.000000e+00> : vector<2x16xf32>
    %950 = tpu.matmul %949, %441, %cst_191 {dimension_numbers = #tpu.dot_dimension_numbers<[1], [0], [0], [1], [0, 0, 1, 1], [], []>} : vector<2x64xbf16>, vector<64x16xbf16>, vector<2x16xf32> -> vector<2x16xf32>
    %951 = vector.broadcast %442 : vector<1x16xf32> to vector<2x16xf32>
    %952 = arith.addf %950, %951 : vector<2x16xf32>
    %953 = tpu.concatenate %448, %520, %592, %664, %736, %808, %880, %952 in 1 : vector<2x16xf32>, vector<2x16xf32>, vector<2x16xf32>, vector<2x16xf32>, vector<2x16xf32>, vector<2x16xf32>, vector<2x16xf32>, vector<2x16xf32> -> vector<2x128xf32>
    %c0_192 = arith.constant 0 : index
    %c0_193 = arith.constant 0 : index
    %954 = vector.load %arg15[%c0_192, %c0_193] : memref<2x128xf32, #tpu.memory_space<vmem>>, vector<2x128xf32>
    tpu.vector_store %arg15[%c0_192, %c0_193], %953 {strides = array<i32>} : memref<2x128xf32, #tpu.memory_space<vmem>>, vector<2x128xf32>,
    return
  }
}

</mosaic_0001>

<llo_original>
// kernel: seq2seq_forward.1
$region0: #{seq2seq_forward.1}
  #allocation0 [shape = 'u32[]', space=smem, size = 0x4, offset = 0x4, fixed_abs, tag = 'smem constant byte address 0x4 - core index']
  #allocation1 [shape = 'u32[72,128]{1,0:T(1,128)}', space=vmem, size = 0x9000, scoped, tag = 'internal scratch']
  #allocation2 [shape = 'f32[16,128]{1,0:T(8,128)}', space=vmem, size = 0x2000, scoped, tag = 'scratch operand']
  %s0 = inlined_call_operand.vmem [shape: bf16[16,64], index: 0, kind: input, shape index: {}]
  %s1 = inlined_call_operand.hbm [shape: bf16[64,256], index: 1, kind: input, shape index: {}]
  %s2 = inlined_call_operand.vmem [shape: f32[1,256], index: 2, kind: input, shape index: {}]
  %s3 = inlined_call_operand.hbm [shape: bf16[64,256], index: 3, kind: input, shape index: {}]
  %s4 = inlined_call_operand.vmem [shape: bf16[128,256], index: 4, kind: input, shape index: {}]
  %s5 = inlined_call_operand.vmem [shape: f32[1,256], index: 5, kind: input, shape index: {}]
  %s6 = inlined_call_operand.hbm [shape: bf16[64,256], index: 6, kind: input, shape index: {}]
  %s7 = inlined_call_operand.vmem [shape: bf16[16,256], index: 7, kind: input, shape index: {}]
  %s8 = inlined_call_operand.hbm [shape: bf16[64,256], index: 8, kind: input, shape index: {}]
  %s9 = inlined_call_operand.vmem [shape: f32[1,256], index: 9, kind: input, shape index: {}]
  %s10 = inlined_call_operand.hbm [shape: bf16[64,256], index: 10, kind: input, shape index: {}]
  %s11 = inlined_call_operand.hbm [shape: bf16[64,256], index: 11, kind: input, shape index: {}]
  %s12 = inlined_call_operand.vmem [shape: f32[1,256], index: 12, kind: input, shape index: {}]
  %s13 = inlined_call_operand.vmem [shape: bf16[64,16], index: 13, kind: input, shape index: {}]
  %s14 = inlined_call_operand.vmem [shape: f32[1,16], index: 14, kind: input, shape index: {}]
  %s15 = inlined_call_operand.vmem [shape: f32[2,128], index: 15, kind: output, shape index: {}]
  %s16 = sld [smem:[#allocation0]]
  $region94: #{seq2seq_forward.1} parent=0
    _
  %s18 = ssub.s32 1, %s16
  %s19 = scalar_select 0, %s18, %s16
  $region1: #{seq2seq_forward.1} parent=0
    #allocation3 [shape = 'u8[32768]{0}', space=vmem, size = 0x8000, scoped, tag = 'input window, operand 1, single buffered']
    #allocation4 [shape = 's32[1]{0}', space=sflag, size = 0x4, scoped, tag = 'scoped memory for seq2seq_forward.1']
    #allocation5 [shape = 'u8[32768]{0}', space=vmem, size = 0x8000, scoped, tag = 'input window, operand 3, single buffered']
    #allocation6 [shape = 's32[1]{0}', space=sflag, size = 0x4, scoped, tag = 'scoped memory for seq2seq_forward.1']
    #allocation7 [shape = 'u8[32768]{0}', space=vmem, size = 0x8000, scoped, tag = 'input window, operand 6, single buffered']
    #allocation8 [shape = 'u8[32768]{0}', space=vmem, size = 0x8000, scoped, tag = 'input window, operand 8, single buffered']
    #allocation9 [shape = 's32[1]{0}', space=sflag, size = 0x4, scoped, tag = 'scoped memory for seq2seq_forward.1']
    #allocation10 [shape = 'u8[32768]{0}', space=vmem, size = 0x8000, scoped, tag = 'input window, operand 10, single buffered']
    #allocation11 [shape = 'u8[32768]{0}', space=vmem, size = 0x8000, scoped, tag = 'input window, operand 11, single buffered']
    #allocation12 [shape = 's32[1]{0}', space=sflag, size = 0x4, scoped, tag = 'scoped memory for seq2seq_forward.1']
    %20 = vsyncpa [#allocation4], 0
    %21 = vsyncpa [#allocation6], 0
    %22 = vsyncpa [#allocation9], 0
    %23 = vsyncpa [#allocation12], 0
    // Predicated region
    $region2: #{seq2seq_forward.1} parent=1 // pred_check
      _
    $region3: #{seq2seq_forward.1} parent=1 // pred_check_branch
      %25 = sbr.rel (0) target = $region5
    $region4: #{seq2seq_forward.1} parent=1 // pred_region
      _
    $region5: #{seq2seq_forward.1} parent=1 // pred_fallthru
      _
    // Predicated region
    $region6: #{seq2seq_forward.1} parent=1 // pred_check
      _
    $region7: #{seq2seq_forward.1} parent=1 // pred_check_branch
      %27 = sbr.rel (0) target = $region9
    $region8: #{seq2seq_forward.1} parent=1 // pred_region
      %29 = vsyncadd [#allocation4], 0
      %s30 = sshll.u32 %s1, 4
      %s31 = int_to_ptr.hbm [resolvable:$true] %s30
      %s32 = sshll.u32 [#allocation3], 4
      %s33 = int_to_ptr.vmem [resolvable:$true] %s32
      %38 = dma.hbm_to_vmem [thread:$0]  %s31, 1024, %s33, [#allocation4], 128, 128, 8
    $region9: #{seq2seq_forward.1} parent=1 // pred_fallthru
      _
    // Predicated region
    $region10: #{seq2seq_forward.1} parent=1 // pred_check
      _
    $region11: #{seq2seq_forward.1} parent=1 // pred_check_branch
      %40 = sbr.rel (0) target = $region13
    $region12: #{seq2seq_forward.1} parent=1 // pred_region
      _
    $region13: #{seq2seq_forward.1} parent=1 // pred_fallthru
      _
    // Predicated region
    $region14: #{seq2seq_forward.1} parent=1 // pred_check
      _
    $region15: #{seq2seq_forward.1} parent=1 // pred_check_branch
      %42 = sbr.rel (0) target = $region17
    $region16: #{seq2seq_forward.1} parent=1 // pred_region
      %44 = vsyncadd [#allocation6], 0
      %s45 = sshll.u32 %s3, 4
      %s46 = int_to_ptr.hbm [resolvable:$true] %s45
      %s47 = sshll.u32 [#allocation5], 4
      %s48 = int_to_ptr.vmem [resolvable:$true] %s47
      %53 = dma.hbm_to_vmem [thread:$0]  %s46, 1024, %s48, [#allocation6], 128, 128, 8
    $region17: #{seq2seq_forward.1} parent=1 // pred_fallthru
      _
    // Predicated region
    $region18: #{seq2seq_forward.1} parent=1 // pred_check
      _
    $region19: #{seq2seq_forward.1} parent=1 // pred_check_branch
      %55 = sbr.rel (0) target = $region21
    $region20: #{seq2seq_forward.1} parent=1 // pred_region
      _
    $region21: #{seq2seq_forward.1} parent=1 // pred_fallthru
      _
    // Predicated region
    $region22: #{seq2seq_forward.1} parent=1 // pred_check
      _
    $region23: #{seq2seq_forward.1} parent=1 // pred_check_branch
      %57 = sbr.rel (0) target = $region25
    $region24: #{seq2seq_forward.1} parent=1 // pred_region
      _
    $region25: #{seq2seq_forward.1} parent=1 // pred_fallthru
      _
    // Predicated region
    $region26: #{seq2seq_forward.1} parent=1 // pred_check
      _
    $region27: #{seq2seq_forward.1} parent=1 // pred_check_branch
      %59 = sbr.rel (0) target = $region29
    $region28: #{seq2seq_forward.1} parent=1 // pred_region
      %61 = vsyncadd [#allocation6], 0
      %s62 = sshll.u32 %s6, 4
      %s63 = int_to_ptr.hbm [resolvable:$true] %s62
      %s64 = sshll.u32 [#allocation7], 4
      %s65 = int_to_ptr.vmem [resolvable:$true] %s64
      %70 = dma.hbm_to_vmem [thread:$0]  %s63, 1024, %s65, [#allocation6], 128, 128, 8
    $region29: #{seq2seq_forward.1} parent=1 // pred_fallthru
      _
    // Predicated region
    $region30: #{seq2seq_forward.1} parent=1 // pred_check
      _
    $region31: #{seq2seq_forward.1} parent=1 // pred_check_branch
      %72 = sbr.rel (0) target = $region33
    $region32: #{seq2seq_forward.1} parent=1 // pred_region
      _
    $region33: #{seq2seq_forward.1} parent=1 // pred_fallthru
      _
    // Predicated region
    $region34: #{seq2seq_forward.1} parent=1 // pred_check
      _
    $region35: #{seq2seq_forward.1} parent=1 // pred_check_branch
      %74 = sbr.rel (0) target = $region37
    $region36: #{seq2seq_forward.1} parent=1 // pred_region
      %76 = vsyncadd [#allocation9], 0
      %s77 = sshll.u32 %s8, 4
      %s78 = int_to_ptr.hbm [resolvable:$true] %s77
      %s79 = sshll.u32 [#allocation8], 4
      %s80 = int_to_ptr.vmem [resolvable:$true] %s79
      %85 = dma.hbm_to_vmem [thread:$0]  %s78, 1024, %s80, [#allocation9], 128, 128, 8
    $region37: #{seq2seq_forward.1} parent=1 // pred_fallthru
      _
    // Predicated region
    $region38: #{seq2seq_forward.1} parent=1 // pred_check
      _
    $region39: #{seq2seq_forward.1} parent=1 // pred_check_branch
      %87 = sbr.rel (0) target = $region41
    $region40: #{seq2seq_forward.1} parent=1 // pred_region
      _
    $region41: #{seq2seq_forward.1} parent=1 // pred_fallthru
      _
    // Predicated region
    $region42: #{seq2seq_forward.1} parent=1 // pred_check
      _
    $region43: #{seq2seq_forward.1} parent=1 // pred_check_branch
      %89 = sbr.rel (0) target = $region45
    $region44: #{seq2seq_forward.1} parent=1 // pred_region
      %91 = vsyncadd [#allocation9], 0
      %s92 = sshll.u32 %s10, 4
      %s93 = int_to_ptr.hbm [resolvable:$true] %s92
      %s94 = sshll.u32 [#allocation10], 4
      %s95 = int_to_ptr.vmem [resolvable:$true] %s94
      %100 = dma.hbm_to_vmem [thread:$0]  %s93, 1024, %s95, [#allocation9], 128, 128, 8
    $region45: #{seq2seq_forward.1} parent=1 // pred_fallthru
      _
    // Predicated region
    $region46: #{seq2seq_forward.1} parent=1 // pred_check
      _
    $region47: #{seq2seq_forward.1} parent=1 // pred_check_branch
      %102 = sbr.rel (0) target = $region49
    $region48: #{seq2seq_forward.1} parent=1 // pred_region
      %104 = vsyncadd [#allocation12], 0
      %s105 = sshll.u32 %s11, 4
      %s106 = int_to_ptr.hbm [resolvable:$true] %s105
      %s107 = sshll.u32 [#allocation11], 4
      %s108 = int_to_ptr.vmem [resolvable:$true] %s107
      %113 = dma.hbm_to_vmem [thread:$0]  %s106, 1024, %s108, [#allocation12], 128, 128, 8
    $region49: #{seq2seq_forward.1} parent=1 // pred_fallthru
      _
    // Predicated region
    $region50: #{seq2seq_forward.1} parent=1 // pred_check
      _
    $region51: #{seq2seq_forward.1} parent=1 // pred_check_branch
      %115 = sbr.rel (0) target = $region53
    $region52: #{seq2seq_forward.1} parent=1 // pred_region
      _
    $region53: #{seq2seq_forward.1} parent=1 // pred_fallthru
      _
    // Predicated region
    $region54: #{seq2seq_forward.1} parent=1 // pred_check
      _
    $region55: #{seq2seq_forward.1} parent=1 // pred_check_branch
      %117 = sbr.rel (0) target = $region57
    $region56: #{seq2seq_forward.1} parent=1 // pred_region
      _
    $region57: #{seq2seq_forward.1} parent=1 // pred_fallthru
      _
    // Predicated region
    $region58: #{seq2seq_forward.1} parent=1 // pred_check
      _
    $region59: #{seq2seq_forward.1} parent=1 // pred_check_branch
      %119 = sbr.rel (0) target = $region61
    $region60: #{seq2seq_forward.1} parent=1 // pred_region
      _
    $region61: #{seq2seq_forward.1} parent=1 // pred_fallthru
      _
    // Predicated region
    $region62: #{seq2seq_forward.1} parent=1 // pred_check
      _
    $region63: #{seq2seq_forward.1} parent=1 // pred_check_branch
      %121 = sbr.rel (0) target = $region65
    $region64: #{seq2seq_forward.1} parent=1 // pred_region
      %123 = dma.done [#allocation4], 1024
    $region65: #{seq2seq_forward.1} parent=1 // pred_fallthru
      _
    // Predicated region
    $region66: #{seq2seq_forward.1} parent=1 // pred_check
      _
    $region67: #{seq2seq_forward.1} parent=1 // pred_check_branch
      %125 = sbr.rel (0) target = $region69
    $region68: #{seq2seq_forward.1} parent=1 // pred_region
      %127 = dma.done [#allocation6], 1024
    $region69: #{seq2seq_forward.1} parent=1 // pred_fallthru
      _
    // Predicated region
    $region70: #{seq2seq_forward.1} parent=1 // pred_check
      _
    $region71: #{seq2seq_forward.1} parent=1 // pred_check_branch
      %129 = sbr.rel (0) target = $region73
    $region72: #{seq2seq_forward.1} parent=1 // pred_region
      %131 = dma.done [#allocation6], 1024
    $region73: #{seq2seq_forward.1} parent=1 // pred_fallthru
      _
    // Predicated region
    $region74: #{seq2seq_forward.1} parent=1 // pred_check
      _
    $region75: #{seq2seq_forward.1} parent=1 // pred_check_branch
      %133 = sbr.rel (0) target = $region77
    $region76: #{seq2seq_forward.1} parent=1 // pred_region
      %135 = dma.done [#allocation9], 1024
    $region77: #{seq2seq_forward.1} parent=1 // pred_fallthru
      _
    // Predicated region
    $region78: #{seq2seq_forward.1} parent=1 // pred_check
      _
    $region79: #{seq2seq_forward.1} parent=1 // pred_check_branch
      %137 = sbr.rel (0) target = $region81
    $region80: #{seq2seq_forward.1} parent=1 // pred_region
      %139 = dma.done [#allocation9], 1024
    $region81: #{seq2seq_forward.1} parent=1 // pred_fallthru
      _
    // Predicated region
    $region82: #{seq2seq_forward.1} parent=1 // pred_check
      _
    $region83: #{seq2seq_forward.1} parent=1 // pred_check_branch
      %141 = sbr.rel (0) target = $region85
    $region84: #{seq2seq_forward.1} parent=1 // pred_region
      %143 = dma.done [#allocation12], 1024
    $region85: #{seq2seq_forward.1} parent=1 // pred_fallthru
      _
    %v145 = vld [vmem:[%s0] sm:$0xf]
    %v146 = vld [vmem:[%s0 + $0x4] sm:$0xf]
    %v147 = vld [vmem:[#allocation3] sm:$0xff]
    %v148 = vld [vmem:[#allocation3 + $0x8] sm:$0xff]
    %v149 = vld [vmem:[#allocation3 + $0x10] sm:$0xff]
    %v150 = vld [vmem:[#allocation3 + $0x18] sm:$0xff]
    %v151 = vld [vmem:[#allocation3 + $0x20] sm:$0xff]
    %v152 = vld [vmem:[#allocation3 + $0x28] sm:$0xff]
    %v153 = vld [vmem:[#allocation3 + $0x30] sm:$0xff]
    %v154 = vld [vmem:[#allocation3 + $0x38] sm:$0xff]
    %v155 = vld [vmem:[%s2] sm:$0x3]
    %v157 = vperm.slane %v155, 0
    %v158 = vperm.slane %v155, 1
    %v163 = vunpack.c.l.b16 %v145
    %v164 = vunpack.c.l.b16 %v146
    %v165 = vpack.c.b16 %v164, %v163
    %v174 = vunpack.c.l.b16 %v147
    %v175 = vunpack.c.h.b16 %v147
    %v176 = vunpack.c.l.b16 %v148
    %v177 = vunpack.c.h.b16 %v148
    %v178 = vunpack.c.l.b16 %v149
    %v179 = vunpack.c.h.b16 %v149
    %v180 = vunpack.c.l.b16 %v150
    %v181 = vunpack.c.h.b16 %v150
    %v182 = vunpack.c.l.b16 %v151
    %v183 = vunpack.c.h.b16 %v151
    %v184 = vunpack.c.l.b16 %v152
    %v185 = vunpack.c.h.b16 %v152
    %v186 = vunpack.c.l.b16 %v153
    %v187 = vunpack.c.h.b16 %v153
    %v188 = vunpack.c.l.b16 %v154
    %v189 = vunpack.c.h.b16 %v154
    %v190 = vpack.c.b16 %v176, %v174
    %v191 = vpack.c.b16 %v177, %v175
    %v192 = vpack.c.b16 %v180, %v178
    %v193 = vpack.c.b16 %v181, %v179
    %v194 = vpack.c.b16 %v184, %v182
    %v195 = vpack.c.b16 %v185, %v183
    %v196 = vpack.c.b16 %v188, %v186
    %v197 = vpack.c.b16 %v189, %v187
    %vm206 = vcmask 523264
    %v208 = vsel %vm206, %v165, 0
    %210 = vmatpush.bf16.msra.mxu0 0
    %211 = vmatpush.bf16.msra.mxu0 0
    %212 = vmatpush.bf16.msra.mxu0 0
    %213 = vmatpush.bf16.msra.mxu0 0
    %214 = vmatpush.bf16.msra.mxu0 %v196
    %215 = vmatpush.bf16.msra.mxu0 %v194
    %216 = vmatpush.bf16.msra.mxu0 %v192
    %217 = vmatpush.bf16.msra.mxu0 %v190
    %218 = vmatmul.bf16.gmra.mxu0 %v208
    %v219 = vpop.f32.mrf.mxu0
    %v220 = vadd.f32 %v157, %v219
    %v221 = vpop.f32.mrf.mxu0
    %v222 = vadd.f32 %v157, %v221
    %223 = vdwg.mxu0
    %224 = vmatpush.bf16.msra.mxu0 0
    %225 = vmatpush.bf16.msra.mxu0 0
    %226 = vmatpush.bf16.msra.mxu0 0
    %227 = vmatpush.bf16.msra.mxu0 0
    %228 = vmatpush.bf16.msra.mxu0 %v197
    %229 = vmatpush.bf16.msra.mxu0 %v195
    %230 = vmatpush.bf16.msra.mxu0 %v193
    %231 = vmatpush.bf16.msra.mxu0 %v191
    %232 = vmatmul.bf16.gmra.mxu0 %v208
    %v233 = vpop.f32.mrf.mxu0
    %v234 = vadd.f32 %v158, %v233
    %v235 = vpop.f32.mrf.mxu0
    %v236 = vadd.f32 %v158, %v235
    %237 = vdwg.mxu0
    %v238 = vld [vmem:[#allocation5] sm:$0xff]
    %v239 = vld [vmem:[#allocation5 + $0x8] sm:$0xff]
    %v240 = vld [vmem:[#allocation5 + $0x10] sm:$0xff]
    %v241 = vld [vmem:[#allocation5 + $0x18] sm:$0xff]
    %v242 = vld [vmem:[#allocation5 + $0x20] sm:$0xff]
    %v243 = vld [vmem:[#allocation5 + $0x28] sm:$0xff]
    %v244 = vld [vmem:[#allocation5 + $0x30] sm:$0xff]
    %v245 = vld [vmem:[#allocation5 + $0x38] sm:$0xff]
    %v254 = vunpack.c.l.b16 %v238
    %v255 = vunpack.c.h.b16 %v238
    %v256 = vunpack.c.l.b16 %v239
    %v257 = vunpack.c.h.b16 %v239
    %v258 = vunpack.c.l.b16 %v240
    %v259 = vunpack.c.h.b16 %v240
    %v260 = vunpack.c.l.b16 %v241
    %v261 = vunpack.c.h.b16 %v241
    %v262 = vunpack.c.l.b16 %v242
    %v263 = vunpack.c.h.b16 %v242
    %v264 = vunpack.c.l.b16 %v243
    %v265 = vunpack.c.h.b16 %v243
    %v266 = vunpack.c.l.b16 %v244
    %v267 = vunpack.c.h.b16 %v244
    %v268 = vunpack.c.l.b16 %v245
    %v269 = vunpack.c.h.b16 %v245
    %v270 = vpack.c.b16 %v256, %v254
    %v271 = vpack.c.b16 %v257, %v255
    %v272 = vpack.c.b16 %v260, %v258
    %v273 = vpack.c.b16 %v261, %v259
    %v274 = vpack.c.b16 %v264, %v262
    %v275 = vpack.c.b16 %v265, %v263
    %v276 = vpack.c.b16 %v268, %v266
    %v277 = vpack.c.b16 %v269, %v267
    %v287 = vsel %vm206, 0, 0
    %289 = vmatpush.bf16.msra.mxu0 0
    %290 = vmatpush.bf16.msra.mxu0 0
    %291 = vmatpush.bf16.msra.mxu0 0
    %292 = vmatpush.bf16.msra.mxu0 0
    %293 = vmatpush.bf16.msra.mxu0 %v276
    %294 = vmatpush.bf16.msra.mxu0 %v274
    %295 = vmatpush.bf16.msra.mxu0 %v272
    %296 = vmatpush.bf16.msra.mxu0 %v270
    %297 = vmatmul.bf16.gmra.mxu0 %v287
    %v298 = vpop.f32.mrf.mxu0
    %v299 = vadd.f32 0.0, %v298
    %v300 = vpop.f32.mrf.mxu0
    %301 = vdwg.mxu0
    %302 = vmatpush.bf16.msra.mxu0 0
    %303 = vmatpush.bf16.msra.mxu0 0
    %304 = vmatpush.bf16.msra.mxu0 0
    %305 = vmatpush.bf16.msra.mxu0 0
    %306 = vmatpush.bf16.msra.mxu0 %v277
    %307 = vmatpush.bf16.msra.mxu0 %v275
    %308 = vmatpush.bf16.msra.mxu0 %v273
    %309 = vmatpush.bf16.msra.mxu0 %v271
    %310 = vmatmul.bf16.gmra.mxu0 %v287
    %v311 = vpop.f32.mrf.mxu0
    %v312 = vadd.f32 0.0, %v311
    %v313 = vpop.f32.mrf.mxu0
    %314 = vdwg.mxu0
    %v315 = vadd.f32 %v220, %v299
    %v316 = vadd.f32 %v234, %v312
    %v317 = vxor.u32 %v315, 2147483648
    %v318 = vmul.f32 %v317, 1.442695
    %v319 = vpow.pop %v318
    %v320 = vadd.f32 %v319, 1.0
    %v321 = vrcp.pop %v320
    %v322 = vmul.f32 %v320, %v321
    %v323 = vsub.f32 1.0, %v322
    %v324 = vmul.f32 %v321, %v323
    %v325 = vadd.f32 %v321, %v324
    %vm326 = vweird.f32 %v320
    %vm327 = vweird.f32 %v321
    %vm328 = vmor %vm326, %vm327
    %v329 = vsel %vm328, %v321, %v325
    %v330 = vand.u32 2147483647, %v320
    %vm331 = vcmp.eq.f32.partialorder %v330, 8.507059e+37
    %v332 = vand.u32 %v320, 2147483648
    %v333 = vor.u32 1.1754944e-38, %v332
    %v334 = vsel %vm331, %v333, %v329
    %v335 = vmul.f32 1.0, %v334
    %v336 = vtanh.pop %v316
    %v337 = vxor.u32 %v316, 2147483648
    %v338 = vmul.f32 %v337, 1.442695
    %v339 = vpow.pop %v338
    %v340 = vadd.f32 %v339, 1.0
    %v341 = vrcp.pop %v340
    %v342 = vmul.f32 %v340, %v341
    %v343 = vsub.f32 1.0, %v342
    %v344 = vmul.f32 %v341, %v343
    %v345 = vadd.f32 %v341, %v344
    %vm346 = vweird.f32 %v340
    %vm347 = vweird.f32 %v341
    %vm348 = vmor %vm346, %vm347
    %v349 = vsel %vm348, %v341, %v345
    %v350 = vand.u32 2147483647, %v340
    %vm351 = vcmp.eq.f32.partialorder %v350, 8.507059e+37
    %v352 = vand.u32 %v340, 2147483648
    %v353 = vor.u32 1.1754944e-38, %v352
    %v354 = vsel %vm351, %v353, %v349
    %v355 = vmul.f32 1.0, %v354
    %v356 = vmul.f32 %v335, 0.0
    %v357 = vmul.f32 %v335, %v336
    %359 = vrot.lane.b32.xlu0 %v357, 64
    %v360 = vpop.permute.xlu0 %359
    %v362 = vadd.f32 %v356, %v360
    %v363 = vtanh.pop %v362
    %v364 = vmul.f32 %v355, %v363
    %366 = vrot.lane.b32.xlu0 %v364, 64
    %v367 = vpop.permute.xlu0 %366
    %vm369 = vcmask 517120
    %370 = vst.msk [vmem:[#allocation2] sm:$0x3] %vm369, %v367
    %vm371 = vcmask 1041920
    %372 = vst.msk [vmem:[#allocation2 + $0xe] sm:$0x3] %vm371, %v364
    %v373 = vpack.c.bf16 %v364, %v364
    %375 = vrot.lane.b32.xlu0 %v373, 64
    %v376 = vpop.permute.xlu0 %375
    %v378 = vsel %vm206, %v376, 0
    %380 = vmatpush.bf16.msra.mxu0 0
    %381 = vmatpush.bf16.msra.mxu0 0
    %382 = vmatpush.bf16.msra.mxu0 0
    %383 = vmatpush.bf16.msra.mxu0 0
    %384 = vmatpush.bf16.msra.mxu0 %v276
    %385 = vmatpush.bf16.msra.mxu0 %v274
    %386 = vmatpush.bf16.msra.mxu0 %v272
    %387 = vmatpush.bf16.msra.mxu0 %v270
    %388 = vmatmul.bf16.gmra.mxu0 %v378
    %v389 = vpop.f32.mrf.mxu0
    %v390 = vadd.f32 0.0, %v389
    %v391 = vpop.f32.mrf.mxu0
    %392 = vdwg.mxu0
    %393 = vmatpush.bf16.msra.mxu0 0
    %394 = vmatpush.bf16.msra.mxu0 0
    %395 = vmatpush.bf16.msra.mxu0 0
    %396 = vmatpush.bf16.msra.mxu0 0
    %397 = vmatpush.bf16.msra.mxu0 %v277
    %398 = vmatpush.bf16.msra.mxu0 %v275
    %399 = vmatpush.bf16.msra.mxu0 %v273
    %400 = vmatpush.bf16.msra.mxu0 %v271
    %401 = vmatmul.bf16.gmra.mxu0 %v378
    %v402 = vpop.f32.mrf.mxu0
    %v403 = vadd.f32 0.0, %v402
    %v404 = vpop.f32.mrf.mxu0
    %405 = vdwg.mxu0
    %v408 = vrot.slane %v390, 6
    %v409 = vrot.slane %v403, 6
    %v412 = vadd.f32 %v220, %v408
    %v413 = vadd.f32 %v234, %v409
    %v414 = vxor.u32 %v412, 2147483648
    %v415 = vmul.f32 %v414, 1.442695
    %v416 = vpow.pop %v415
    %v417 = vadd.f32 %v416, 1.0
    %v418 = vrcp.pop %v417
    %v419 = vmul.f32 %v417, %v418
    %v420 = vsub.f32 1.0, %v419
    %v421 = vmul.f32 %v418, %v420
    %v422 = vadd.f32 %v418, %v421
    %vm423 = vweird.f32 %v417
    %vm424 = vweird.f32 %v418
    %vm425 = vmor %vm423, %vm424
    %v426 = vsel %vm425, %v418, %v422
    %v427 = vand.u32 2147483647, %v417
    %vm428 = vcmp.eq.f32.partialorder %v427, 8.507059e+37
    %v429 = vand.u32 %v417, 2147483648
    %v430 = vor.u32 1.1754944e-38, %v429
    %v431 = vsel %vm428, %v430, %v426
    %v432 = vmul.f32 1.0, %v431
    %v433 = vtanh.pop %v413
    %v434 = vxor.u32 %v413, 2147483648
    %v435 = vmul.f32 %v434, 1.442695
    %v436 = vpow.pop %v435
    %v437 = vadd.f32 %v436, 1.0
    %v438 = vrcp.pop %v437
    %v439 = vmul.f32 %v437, %v438
    %v440 = vsub.f32 1.0, %v439
    %v441 = vmul.f32 %v438, %v440
    %v442 = vadd.f32 %v438, %v441
    %vm443 = vweird.f32 %v437
    %vm444 = vweird.f32 %v438
    %vm445 = vmor %vm443, %vm444
    %v446 = vsel %vm445, %v438, %v442
    %v447 = vand.u32 2147483647, %v437
    %vm448 = vcmp.eq.f32.partialorder %v447, 8.507059e+37
    %v449 = vand.u32 %v437, 2147483648
    %v450 = vor.u32 1.1754944e-38, %v449
    %v451 = vsel %vm448, %v450, %v446
    %v452 = vmul.f32 1.0, %v451
    %v454 = vrot.slane %v362, 6
    %v456 = vmul.f32 %v432, %v454
    %v457 = vmul.f32 %v432, %v433
    %459 = vrot.lane.b32.xlu0 %v457, 64
    %v460 = vpop.permute.xlu0 %459
    %v462 = vadd.f32 %v456, %v460
    %v463 = vtanh.pop %v462
    %v464 = vmul.f32 %v452, %v463
    %466 = vrot.lane.b32.xlu0 %v464, 64
    %v467 = vpop.permute.xlu0 %466
    %vm469 = vcmask 519170
    %470 = vst.msk [vmem:[#allocation2] sm:$0xc] %vm469, %v467
    %vm471 = vcmask 1043970
    %472 = vst.msk [vmem:[#allocation2 + $0xa] sm:$0xc] %vm471, %v464
    %v473 = vpack.c.bf16 %v464, %v464
    %v475 = vrot.slane %v473, 1
    %476 = vrot.lane.b32.xlu0 %v475, 64
    %v477 = vpop.permute.xlu0 %476
    %v479 = vsel %vm206, %v477, 0
    %481 = vmatpush.bf16.msra.mxu0 0
    %482 = vmatpush.bf16.msra.mxu0 0
    %483 = vmatpush.bf16.msra.mxu0 0
    %484 = vmatpush.bf16.msra.mxu0 0
    %485 = vmatpush.bf16.msra.mxu0 %v276
    %486 = vmatpush.bf16.msra.mxu0 %v274
    %487 = vmatpush.bf16.msra.mxu0 %v272
    %488 = vmatpush.bf16.msra.mxu0 %v270
    %489 = vmatmul.bf16.gmra.mxu0 %v479
    %v490 = vpop.f32.mrf.mxu0
    %v491 = vadd.f32 0.0, %v490
    %v492 = vpop.f32.mrf.mxu0
    %493 = vdwg.mxu0
    %494 = vmatpush.bf16.msra.mxu0 0
    %495 = vmatpush.bf16.msra.mxu0 0
    %496 = vmatpush.bf16.msra.mxu0 0
    %497 = vmatpush.bf16.msra.mxu0 0
    %498 = vmatpush.bf16.msra.mxu0 %v277
    %499 = vmatpush.bf16.msra.mxu0 %v275
    %500 = vmatpush.bf16.msra.mxu0 %v273
    %501 = vmatpush.bf16.msra.mxu0 %v271
    %502 = vmatmul.bf16.gmra.mxu0 %v479
    %v503 = vpop.f32.mrf.mxu0
    %v504 = vadd.f32 0.0, %v503
    %v505 = vpop.f32.mrf.mxu0
    %506 = vdwg.mxu0
    %v509 = vrot.slane %v491, 4
    %v510 = vrot.slane %v504, 4
    %v513 = vadd.f32 %v220, %v509
    %v514 = vadd.f32 %v234, %v510
    %v515 = vxor.u32 %v513, 2147483648
    %v516 = vmul.f32 %v515, 1.442695
    %v517 = vpow.pop %v516
    %v518 = vadd.f32 %v517, 1.0
    %v519 = vrcp.pop %v518
    %v520 = vmul.f32 %v518, %v519
    %v521 = vsub.f32 1.0, %v520
    %v522 = vmul.f32 %v519, %v521
    %v523 = vadd.f32 %v519, %v522
    %vm524 = vweird.f32 %v518
    %vm525 = vweird.f32 %v519
    %vm526 = vmor %vm524, %vm525
    %v527 = vsel %vm526, %v519, %v523
    %v528 = vand.u32 2147483647, %v518
    %vm529 = vcmp.eq.f32.partialorder %v528, 8.507059e+37
    %v530 = vand.u32 %v518, 2147483648
    %v531 = vor.u32 1.1754944e-38, %v530
    %v532 = vsel %vm529, %v531, %v527
    %v533 = vmul.f32 1.0, %v532
    %v534 = vtanh.pop %v514
    %v535 = vxor.u32 %v514, 2147483648
    %v536 = vmul.f32 %v535, 1.442695
    %v537 = vpow.pop %v536
    %v538 = vadd.f32 %v537, 1.0
    %v539 = vrcp.pop %v538
    %v540 = vmul.f32 %v538, %v539
    %v541 = vsub.f32 1.0, %v540
    %v542 = vmul.f32 %v539, %v541
    %v543 = vadd.f32 %v539, %v542
    %vm544 = vweird.f32 %v538
    %vm545 = vweird.f32 %v539
    %vm546 = vmor %vm544, %vm545
    %v547 = vsel %vm546, %v539, %v543
    %v548 = vand.u32 2147483647, %v538
    %vm549 = vcmp.eq.f32.partialorder %v548, 8.507059e+37
    %v550 = vand.u32 %v538, 2147483648
    %v551 = vor.u32 1.1754944e-38, %v550
    %v552 = vsel %vm549, %v551, %v547
    %v553 = vmul.f32 1.0, %v552
    %v555 = vrot.slane %v462, 6
    %v557 = vmul.f32 %v533, %v555
    %v558 = vmul.f32 %v533, %v534
    %560 = vrot.lane.b32.xlu0 %v558, 64
    %v561 = vpop.permute.xlu0 %560
    %v563 = vadd.f32 %v557, %v561
    %v564 = vtanh.pop %v563
    %v565 = vmul.f32 %v553, %v564
    %567 = vrot.lane.b32.xlu0 %v565, 64
    %v568 = vpop.permute.xlu0 %567
    %vm570 = vcmask 521220
    %571 = vst.msk [vmem:[#allocation2] sm:$0x30] %vm570, %v568
    %vm572 = vcmask 1046020
    %573 = vst.msk [vmem:[#allocation2 + $0x6] sm:$0x30] %vm572, %v565
    %v574 = vpack.c.bf16 %v565, %v565
    %v576 = vrot.slane %v574, 2
    %577 = vrot.lane.b32.xlu0 %v576, 64
    %v578 = vpop.permute.xlu0 %577
    %v580 = vsel %vm206, %v578, 0
    %582 = vmatpush.bf16.msra.mxu0 0
    %583 = vmatpush.bf16.msra.mxu0 0
    %584 = vmatpush.bf16.msra.mxu0 0
    %585 = vmatpush.bf16.msra.mxu0 0
    %586 = vmatpush.bf16.msra.mxu0 %v276
    %587 = vmatpush.bf16.msra.mxu0 %v274
    %588 = vmatpush.bf16.msra.mxu0 %v272
    %589 = vmatpush.bf16.msra.mxu0 %v270
    %590 = vmatmul.bf16.gmra.mxu0 %v580
    %v591 = vpop.f32.mrf.mxu0
    %v592 = vadd.f32 0.0, %v591
    %v593 = vpop.f32.mrf.mxu0
    %594 = vdwg.mxu0
    %595 = vmatpush.bf16.msra.mxu0 0
    %596 = vmatpush.bf16.msra.mxu0 0
    %597 = vmatpush.bf16.msra.mxu0 0
    %598 = vmatpush.bf16.msra.mxu0 0
    %599 = vmatpush.bf16.msra.mxu0 %v277
    %600 = vmatpush.bf16.msra.mxu0 %v275
    %601 = vmatpush.bf16.msra.mxu0 %v273
    %602 = vmatpush.bf16.msra.mxu0 %v271
    %603 = vmatmul.bf16.gmra.mxu0 %v580
    %v604 = vpop.f32.mrf.mxu0
    %v605 = vadd.f32 0.0, %v604
    %v606 = vpop.f32.mrf.mxu0
    %607 = vdwg.mxu0
    %v610 = vrot.slane %v592, 2
    %v611 = vrot.slane %v605, 2
    %v614 = vadd.f32 %v220, %v610
    %v615 = vadd.f32 %v234, %v611
    %v616 = vxor.u32 %v614, 2147483648
    %v617 = vmul.f32 %v616, 1.442695
    %v618 = vpow.pop %v617
    %v619 = vadd.f32 %v618, 1.0
    %v620 = vrcp.pop %v619
    %v621 = vmul.f32 %v619, %v620
    %v622 = vsub.f32 1.0, %v621
    %v623 = vmul.f32 %v620, %v622
    %v624 = vadd.f32 %v620, %v623
    %vm625 = vweird.f32 %v619
    %vm626 = vweird.f32 %v620
    %vm627 = vmor %vm625, %vm626
    %v628 = vsel %vm627, %v620, %v624
    %v629 = vand.u32 2147483647, %v619
    %vm630 = vcmp.eq.f32.partialorder %v629, 8.507059e+37
    %v631 = vand.u32 %v619, 2147483648
    %v632 = vor.u32 1.1754944e-38, %v631
    %v633 = vsel %vm630, %v632, %v628
    %v634 = vmul.f32 1.0, %v633
    %v635 = vtanh.pop %v615
    %v636 = vxor.u32 %v615, 2147483648
    %v637 = vmul.f32 %v636, 1.442695
    %v638 = vpow.pop %v637
    %v639 = vadd.f32 %v638, 1.0
    %v640 = vrcp.pop %v639
    %v641 = vmul.f32 %v639, %v640
    %v642 = vsub.f32 1.0, %v641
    %v643 = vmul.f32 %v640, %v642
    %v644 = vadd.f32 %v640, %v643
    %vm645 = vweird.f32 %v639
    %vm646 = vweird.f32 %v640
    %vm647 = vmor %vm645, %vm646
    %v648 = vsel %vm647, %v640, %v644
    %v649 = vand.u32 2147483647, %v639
    %vm650 = vcmp.eq.f32.partialorder %v649, 8.507059e+37
    %v651 = vand.u32 %v639, 2147483648
    %v652 = vor.u32 1.1754944e-38, %v651
    %v653 = vsel %vm650, %v652, %v648
    %v654 = vmul.f32 1.0, %v653
    %v656 = vrot.slane %v563, 6
    %v658 = vmul.f32 %v634, %v656
    %v659 = vmul.f32 %v634, %v635
    %661 = vrot.lane.b32.xlu0 %v659, 64
    %v662 = vpop.permute.xlu0 %661
    %v664 = vadd.f32 %v658, %v662
    %v665 = vtanh.pop %v664
    %v666 = vmul.f32 %v654, %v665
    %668 = vrot.lane.b32.xlu0 %v666, 64
    %v669 = vpop.permute.xlu0 %668
    %vm671 = vcmask 523270
    %672 = vst.msk [vmem:[#allocation2] sm:$0xc0] %vm671, %v669
    %vm673 = vcmask 1048070
    %674 = vst.msk [vmem:[#allocation2 + $0x2] sm:$0xc0] %vm673, %v666
    %v675 = vpack.c.bf16 %v666, %v666
    %v677 = vrot.slane %v675, 3
    %678 = vrot.lane.b32.xlu0 %v677, 64
    %v679 = vpop.permute.xlu0 %678
    %v681 = vsel %vm206, %v679, 0
    %683 = vmatpush.bf16.msra.mxu0 0
    %684 = vmatpush.bf16.msra.mxu0 0
    %685 = vmatpush.bf16.msra.mxu0 0
    %686 = vmatpush.bf16.msra.mxu0 0
    %687 = vmatpush.bf16.msra.mxu0 %v276
    %688 = vmatpush.bf16.msra.mxu0 %v274
    %689 = vmatpush.bf16.msra.mxu0 %v272
    %690 = vmatpush.bf16.msra.mxu0 %v270
    %691 = vmatmul.bf16.gmra.mxu0 %v681
    %v692 = vpop.f32.mrf.mxu0
    %v693 = vadd.f32 0.0, %v692
    %v694 = vpop.f32.mrf.mxu0
    %695 = vdwg.mxu0
    %696 = vmatpush.bf16.msra.mxu0 0
    %697 = vmatpush.bf16.msra.mxu0 0
    %698 = vmatpush.bf16.msra.mxu0 0
    %699 = vmatpush.bf16.msra.mxu0 0
    %700 = vmatpush.bf16.msra.mxu0 %v277
    %701 = vmatpush.bf16.msra.mxu0 %v275
    %702 = vmatpush.bf16.msra.mxu0 %v273
    %703 = vmatpush.bf16.msra.mxu0 %v271
    %704 = vmatmul.bf16.gmra.mxu0 %v681
    %v705 = vpop.f32.mrf.mxu0
    %v706 = vadd.f32 0.0, %v705
    %v707 = vpop.f32.mrf.mxu0
    %708 = vdwg.mxu0
    %v709 = vadd.f32 %v222, %v693
    %v710 = vadd.f32 %v236, %v706
    %v711 = vxor.u32 %v709, 2147483648
    %v712 = vmul.f32 %v711, 1.442695
    %v713 = vpow.pop %v712
    %v714 = vadd.f32 %v713, 1.0
    %v715 = vrcp.pop %v714
    %v716 = vmul.f32 %v714, %v715
    %v717 = vsub.f32 1.0, %v716
    %v718 = vmul.f32 %v715, %v717
    %v719 = vadd.f32 %v715, %v718
    %vm720 = vweird.f32 %v714
    %vm721 = vweird.f32 %v715
    %vm722 = vmor %vm720, %vm721
    %v723 = vsel %vm722, %v715, %v719
    %v724 = vand.u32 2147483647, %v714
    %vm725 = vcmp.eq.f32.partialorder %v724, 8.507059e+37
    %v726 = vand.u32 %v714, 2147483648
    %v727 = vor.u32 1.1754944e-38, %v726
    %v728 = vsel %vm725, %v727, %v723
    %v729 = vmul.f32 1.0, %v728
    %v730 = vtanh.pop %v710
    %v731 = vxor.u32 %v710, 2147483648
    %v732 = vmul.f32 %v731, 1.442695
    %v733 = vpow.pop %v732
    %v734 = vadd.f32 %v733, 1.0
    %v735 = vrcp.pop %v734
    %v736 = vmul.f32 %v734, %v735
    %v737 = vsub.f32 1.0, %v736
    %v738 = vmul.f32 %v735, %v737
    %v739 = vadd.f32 %v735, %v738
    %vm740 = vweird.f32 %v734
    %vm741 = vweird.f32 %v735
    %vm742 = vmor %vm740, %vm741
    %v743 = vsel %vm742, %v735, %v739
    %v744 = vand.u32 2147483647, %v734
    %vm745 = vcmp.eq.f32.partialorder %v744, 8.507059e+37
    %v746 = vand.u32 %v734, 2147483648
    %v747 = vor.u32 1.1754944e-38, %v746
    %v748 = vsel %vm745, %v747, %v743
    %v749 = vmul.f32 1.0, %v748
    %v751 = vrot.slane %v664, 6
    %v753 = vmul.f32 %v729, %v751
    %v754 = vmul.f32 %v729, %v730
    %756 = vrot.lane.b32.xlu0 %v754, 64
    %v757 = vpop.permute.xlu0 %756
    %v759 = vadd.f32 %v753, %v757
    %v760 = vtanh.pop %v759
    %v761 = vmul.f32 %v749, %v760
    %763 = vrot.lane.b32.xlu0 %v761, 64
    %v764 = vpop.permute.xlu0 %763
    %766 = vst.msk [vmem:[#allocation2 + $0x8] sm:$0x3] %vm369, %v764
    %767 = vst.msk [vmem:[#allocation2 + $0x6] sm:$0x3] %vm371, %v761
    %v768 = vpack.c.bf16 %v761, %v761
    %770 = vrot.lane.b32.xlu0 %v768, 64
    %v771 = vpop.permute.xlu0 %770
    %v773 = vsel %vm206, %v771, 0
    %775 = vmatpush.bf16.msra.mxu0 0
    %776 = vmatpush.bf16.msra.mxu0 0
    %777 = vmatpush.bf16.msra.mxu0 0
    %778 = vmatpush.bf16.msra.mxu0 0
    %779 = vmatpush.bf16.msra.mxu0 %v276
    %780 = vmatpush.bf16.msra.mxu0 %v274
    %781 = vmatpush.bf16.msra.mxu0 %v272
    %782 = vmatpush.bf16.msra.mxu0 %v270
    %783 = vmatmul.bf16.gmra.mxu0 %v773
    %v784 = vpop.f32.mrf.mxu0
    %v785 = vadd.f32 0.0, %v784
    %v786 = vpop.f32.mrf.mxu0
    %787 = vdwg.mxu0
    %788 = vmatpush.bf16.msra.mxu0 0
    %789 = vmatpush.bf16.msra.mxu0 0
    %790 = vmatpush.bf16.msra.mxu0 0
    %791 = vmatpush.bf16.msra.mxu0 0
    %792 = vmatpush.bf16.msra.mxu0 %v277
    %793 = vmatpush.bf16.msra.mxu0 %v275
    %794 = vmatpush.bf16.msra.mxu0 %v273
    %795 = vmatpush.bf16.msra.mxu0 %v271
    %796 = vmatmul.bf16.gmra.mxu0 %v773
    %v797 = vpop.f32.mrf.mxu0
    %v798 = vadd.f32 0.0, %v797
    %v799 = vpop.f32.mrf.mxu0
    %800 = vdwg.mxu0
    %v803 = vrot.slane %v785, 6
    %v804 = vrot.slane %v798, 6
    %v807 = vadd.f32 %v222, %v803
    %v808 = vadd.f32 %v236, %v804
    %v809 = vxor.u32 %v807, 2147483648
    %v810 = vmul.f32 %v809, 1.442695
    %v811 = vpow.pop %v810
    %v812 = vadd.f32 %v811, 1.0
    %v813 = vrcp.pop %v812
    %v814 = vmul.f32 %v812, %v813
    %v815 = vsub.f32 1.0, %v814
    %v816 = vmul.f32 %v813, %v815
    %v817 = vadd.f32 %v813, %v816
    %vm818 = vweird.f32 %v812
    %vm819 = vweird.f32 %v813
    %vm820 = vmor %vm818, %vm819
    %v821 = vsel %vm820, %v813, %v817
    %v822 = vand.u32 2147483647, %v812
    %vm823 = vcmp.eq.f32.partialorder %v822, 8.507059e+37
    %v824 = vand.u32 %v812, 2147483648
    %v825 = vor.u32 1.1754944e-38, %v824
    %v826 = vsel %vm823, %v825, %v821
    %v827 = vmul.f32 1.0, %v826
    %v828 = vtanh.pop %v808
    %v829 = vxor.u32 %v808, 2147483648
    %v830 = vmul.f32 %v829, 1.442695
    %v831 = vpow.pop %v830
    %v832 = vadd.f32 %v831, 1.0
    %v833 = vrcp.pop %v832
    %v834 = vmul.f32 %v832, %v833
    %v835 = vsub.f32 1.0, %v834
    %v836 = vmul.f32 %v833, %v835
    %v837 = vadd.f32 %v833, %v836
    %vm838 = vweird.f32 %v832
    %vm839 = vweird.f32 %v833
    %vm840 = vmor %vm838, %vm839
    %v841 = vsel %vm840, %v833, %v837
    %v842 = vand.u32 2147483647, %v832
    %vm843 = vcmp.eq.f32.partialorder %v842, 8.507059e+37
    %v844 = vand.u32 %v832, 2147483648
    %v845 = vor.u32 1.1754944e-38, %v844
    %v846 = vsel %vm843, %v845, %v841
    %v847 = vmul.f32 1.0, %v846
    %v849 = vrot.slane %v759, 6
    %v851 = vmul.f32 %v827, %v849
    %v852 = vmul.f32 %v827, %v828
    %854 = vrot.lane.b32.xlu0 %v852, 64
    %v855 = vpop.permute.xlu0 %854
    %v857 = vadd.f32 %v851, %v855
    %v858 = vtanh.pop %v857
    %v859 = vmul.f32 %v847, %v858
    %861 = vrot.lane.b32.xlu0 %v859, 64
    %v862 = vpop.permute.xlu0 %861
    %864 = vst.msk [vmem:[#allocation2 + $0x8] sm:$0xc] %vm469, %v862
    %865 = vst.msk [vmem:[#allocation2 + $0x2] sm:$0xc] %vm471, %v859
    %v866 = vpack.c.bf16 %v859, %v859
    %v868 = vrot.slane %v866, 1
    %869 = vrot.lane.b32.xlu0 %v868, 64
    %v870 = vpop.permute.xlu0 %869
    %v872 = vsel %vm206, %v870, 0
    %874 = vmatpush.bf16.msra.mxu0 0
    %875 = vmatpush.bf16.msra.mxu0 0
    %876 = vmatpush.bf16.msra.mxu0 0
    %877 = vmatpush.bf16.msra.mxu0 0
    %878 = vmatpush.bf16.msra.mxu0 %v276
    %879 = vmatpush.bf16.msra.mxu0 %v274
    %880 = vmatpush.bf16.msra.mxu0 %v272
    %881 = vmatpush.bf16.msra.mxu0 %v270
    %882 = vmatmul.bf16.gmra.mxu0 %v872
    %v883 = vpop.f32.mrf.mxu0
    %v884 = vadd.f32 0.0, %v883
    %v885 = vpop.f32.mrf.mxu0
    %886 = vdwg.mxu0
    %887 = vmatpush.bf16.msra.mxu0 0
    %888 = vmatpush.bf16.msra.mxu0 0
    %889 = vmatpush.bf16.msra.mxu0 0
    %890 = vmatpush.bf16.msra.mxu0 0
    %891 = vmatpush.bf16.msra.mxu0 %v277
    %892 = vmatpush.bf16.msra.mxu0 %v275
    %893 = vmatpush.bf16.msra.mxu0 %v273
    %894 = vmatpush.bf16.msra.mxu0 %v271
    %895 = vmatmul.bf16.gmra.mxu0 %v872
    %v896 = vpop.f32.mrf.mxu0
    %v897 = vadd.f32 0.0, %v896
    %v898 = vpop.f32.mrf.mxu0
    %899 = vdwg.mxu0
    %v902 = vrot.slane %v884, 4
    %v903 = vrot.slane %v897, 4
    %v906 = vadd.f32 %v222, %v902
    %v907 = vadd.f32 %v236, %v903
    %v908 = vxor.u32 %v906, 2147483648
    %v909 = vmul.f32 %v908, 1.442695
    %v910 = vpow.pop %v909
    %v911 = vadd.f32 %v910, 1.0
    %v912 = vrcp.pop %v911
    %v913 = vmul.f32 %v911, %v912
    %v914 = vsub.f32 1.0, %v913
    %v915 = vmul.f32 %v912, %v914
    %v916 = vadd.f32 %v912, %v915
    %vm917 = vweird.f32 %v911
    %vm918 = vweird.f32 %v912
    %vm919 = vmor %vm917, %vm918
    %v920 = vsel %vm919, %v912, %v916
    %v921 = vand.u32 2147483647, %v911
    %vm922 = vcmp.eq.f32.partialorder %v921, 8.507059e+37
    %v923 = vand.u32 %v911, 2147483648
    %v924 = vor.u32 1.1754944e-38, %v923
    %v925 = vsel %vm922, %v924, %v920
    %v926 = vmul.f32 1.0, %v925
    %v927 = vtanh.pop %v907
    %v928 = vxor.u32 %v907, 2147483648
    %v929 = vmul.f32 %v928, 1.442695
    %v930 = vpow.pop %v929
    %v931 = vadd.f32 %v930, 1.0
    %v932 = vrcp.pop %v931
    %v933 = vmul.f32 %v931, %v932
    %v934 = vsub.f32 1.0, %v933
    %v935 = vmul.f32 %v932, %v934
    %v936 = vadd.f32 %v932, %v935
    %vm937 = vweird.f32 %v931
    %vm938 = vweird.f32 %v932
    %vm939 = vmor %vm937, %vm938
    %v940 = vsel %vm939, %v932, %v936
    %v941 = vand.u32 2147483647, %v931
    %vm942 = vcmp.eq.f32.partialorder %v941, 8.507059e+37
    %v943 = vand.u32 %v931, 2147483648
    %v944 = vor.u32 1.1754944e-38, %v943
    %v945 = vsel %vm942, %v944, %v940
    %v946 = vmul.f32 1.0, %v945
    %v948 = vrot.slane %v857, 6
    %v950 = vmul.f32 %v926, %v948
    %v951 = vmul.f32 %v926, %v927
    %953 = vrot.lane.b32.xlu0 %v951, 64
    %v954 = vpop.permute.xlu0 %953
    %v956 = vadd.f32 %v950, %v954
    %v957 = vtanh.pop %v956
    %v958 = vmul.f32 %v946, %v957
    %960 = vrot.lane.b32.xlu0 %v958, 64
    %v961 = vpop.permute.xlu0 %960
    %963 = vst.msk [vmem:[#allocation2 + $0x8] sm:$0x30] %vm570, %v961
    %964 = vst.msk [vmem:[#allocation2 - $0x2] sm:$0x30] %vm572, %v958
    %v965 = vpack.c.bf16 %v958, %v958
    %v967 = vrot.slane %v965, 2
    %968 = vrot.lane.b32.xlu0 %v967, 64
    %v969 = vpop.permute.xlu0 %968
    %v971 = vsel %vm206, %v969, 0
    %973 = vmatpush.bf16.msra.mxu0 0
    %974 = vmatpush.bf16.msra.mxu0 0
    %975 = vmatpush.bf16.msra.mxu0 0
    %976 = vmatpush.bf16.msra.mxu0 0
    %977 = vmatpush.bf16.msra.mxu0 %v276
    %978 = vmatpush.bf16.msra.mxu0 %v274
    %979 = vmatpush.bf16.msra.mxu0 %v272
    %980 = vmatpush.bf16.msra.mxu0 %v270
    %981 = vmatmul.bf16.gmra.mxu0 %v971
    %v982 = vpop.f32.mrf.mxu0
    %v983 = vadd.f32 0.0, %v982
    %v984 = vpop.f32.mrf.mxu0
    %985 = vdwg.mxu0
    %986 = vmatpush.bf16.msra.mxu0 0
    %987 = vmatpush.bf16.msra.mxu0 0
    %988 = vmatpush.bf16.msra.mxu0 0
    %989 = vmatpush.bf16.msra.mxu0 0
    %990 = vmatpush.bf16.msra.mxu0 %v277
    %991 = vmatpush.bf16.msra.mxu0 %v275
    %992 = vmatpush.bf16.msra.mxu0 %v273
    %993 = vmatpush.bf16.msra.mxu0 %v271
    %994 = vmatmul.bf16.gmra.mxu0 %v971
    %v995 = vpop.f32.mrf.mxu0
    %v996 = vadd.f32 0.0, %v995
    %v997 = vpop.f32.mrf.mxu0
    %998 = vdwg.mxu0
    %v1001 = vrot.slane %v983, 2
    %v1002 = vrot.slane %v996, 2
    %v1005 = vadd.f32 %v222, %v1001
    %v1006 = vadd.f32 %v236, %v1002
    %v1007 = vxor.u32 %v1005, 2147483648
    %v1008 = vmul.f32 %v1007, 1.442695
    %v1009 = vpow.pop %v1008
    %v1010 = vadd.f32 %v1009, 1.0
    %v1011 = vrcp.pop %v1010
    %v1012 = vmul.f32 %v1010, %v1011
    %v1013 = vsub.f32 1.0, %v1012
    %v1014 = vmul.f32 %v1011, %v1013
    %v1015 = vadd.f32 %v1011, %v1014
    %vm1016 = vweird.f32 %v1010
    %vm1017 = vweird.f32 %v1011
    %vm1018 = vmor %vm1016, %vm1017
    %v1019 = vsel %vm1018, %v1011, %v1015
    %v1020 = vand.u32 2147483647, %v1010
    %vm1021 = vcmp.eq.f32.partialorder %v1020, 8.507059e+37
    %v1022 = vand.u32 %v1010, 2147483648
    %v1023 = vor.u32 1.1754944e-38, %v1022
    %v1024 = vsel %vm1021, %v1023, %v1019
    %v1025 = vmul.f32 1.0, %v1024
    %v1026 = vtanh.pop %v1006
    %v1027 = vxor.u32 %v1006, 2147483648
    %v1028 = vmul.f32 %v1027, 1.442695
    %v1029 = vpow.pop %v1028
    %v1030 = vadd.f32 %v1029, 1.0
    %v1031 = vrcp.pop %v1030
    %v1032 = vmul.f32 %v1030, %v1031
    %v1033 = vsub.f32 1.0, %v1032
    %v1034 = vmul.f32 %v1031, %v1033
    %v1035 = vadd.f32 %v1031, %v1034
    %vm1036 = vweird.f32 %v1030
    %vm1037 = vweird.f32 %v1031
    %vm1038 = vmor %vm1036, %vm1037
    %v1039 = vsel %vm1038, %v1031, %v1035
    %v1040 = vand.u32 2147483647, %v1030
    %vm1041 = vcmp.eq.f32.partialorder %v1040, 8.507059e+37
    %v1042 = vand.u32 %v1030, 2147483648
    %v1043 = vor.u32 1.1754944e-38, %v1042
    %v1044 = vsel %vm1041, %v1043, %v1039
    %v1045 = vmul.f32 1.0, %v1044
    %v1047 = vrot.slane %v956, 6
    %v1049 = vmul.f32 %v1025, %v1047
    %v1050 = vmul.f32 %v1025, %v1026
    %1052 = vrot.lane.b32.xlu0 %v1050, 64
    %v1053 = vpop.permute.xlu0 %1052
    %v1055 = vadd.f32 %v1049, %v1053
    %v1056 = vtanh.pop %v1055
    %v1057 = vmul.f32 %v1045, %v1056
    %1059 = vrot.lane.b32.xlu0 %v1057, 64
    %v1060 = vpop.permute.xlu0 %1059
    %1062 = vst.msk [vmem:[#allocation2 + $0x8] sm:$0xc0] %vm671, %v1060
    %1063 = vst.msk [vmem:[#allocation2 - $0x6] sm:$0xc0] %vm673, %v1057
    %v1064 = vld [vmem:[#allocation2] sm:$0xff]
    %v1065 = vld [vmem:[#allocation2 + $0x8] sm:$0xff]
    %v1066 = vpack.c.bf16 %v1065, %v1064
    %v1067 = vld [vmem:[%s4] sm:$0xff]
    %v1068 = vld [vmem:[%s4 + $0x8] sm:$0xff]
    %v1069 = vld [vmem:[%s4 + $0x10] sm:$0xff]
    %v1070 = vld [vmem:[%s4 + $0x18] sm:$0xff]
    %v1071 = vld [vmem:[%s4 + $0x20] sm:$0xff]
    %v1072 = vld [vmem:[%s4 + $0x28] sm:$0xff]
    %v1073 = vld [vmem:[%s4 + $0x30] sm:$0xff]
    %v1074 = vld [vmem:[%s4 + $0x38] sm:$0xff]
    %v1075 = vld [vmem:[%s4 + $0x40] sm:$0xff]
    %v1076 = vld [vmem:[%s4 + $0x48] sm:$0xff]
    %v1077 = vld [vmem:[%s4 + $0x50] sm:$0xff]
    %v1078 = vld [vmem:[%s4 + $0x58] sm:$0xff]
    %v1079 = vld [vmem:[%s4 + $0x60] sm:$0xff]
    %v1080 = vld [vmem:[%s4 + $0x68] sm:$0xff]
    %v1081 = vld [vmem:[%s4 + $0x70] sm:$0xff]
    %v1082 = vld [vmem:[%s4 + $0x78] sm:$0xff]
    %v1083 = vld [vmem:[%s5] sm:$0x3]
    %v1085 = vperm.slane %v1083, 0
    %v1086 = vperm.slane %v1083, 1
    %v1105 = vunpack.c.l.b16 %v1067
    %v1106 = vunpack.c.h.b16 %v1067
    %v1107 = vunpack.c.l.b16 %v1068
    %v1108 = vunpack.c.h.b16 %v1068
    %v1109 = vunpack.c.l.b16 %v1069
    %v1110 = vunpack.c.h.b16 %v1069
    %v1111 = vunpack.c.l.b16 %v1070
    %v1112 = vunpack.c.h.b16 %v1070
    %v1113 = vunpack.c.l.b16 %v1071
    %v1114 = vunpack.c.h.b16 %v1071
    %v1115 = vunpack.c.l.b16 %v1072
    %v1116 = vunpack.c.h.b16 %v1072
    %v1117 = vunpack.c.l.b16 %v1073
    %v1118 = vunpack.c.h.b16 %v1073
    %v1119 = vunpack.c.l.b16 %v1074
    %v1120 = vunpack.c.h.b16 %v1074
    %v1121 = vunpack.c.l.b16 %v1075
    %v1122 = vunpack.c.h.b16 %v1075
    %v1123 = vunpack.c.l.b16 %v1076
    %v1124 = vunpack.c.h.b16 %v1076
    %v1125 = vunpack.c.l.b16 %v1077
    %v1126 = vunpack.c.h.b16 %v1077
    %v1127 = vunpack.c.l.b16 %v1078
    %v1128 = vunpack.c.h.b16 %v1078
    %v1129 = vunpack.c.l.b16 %v1079
    %v1130 = vunpack.c.h.b16 %v1079
    %v1131 = vunpack.c.l.b16 %v1080
    %v1132 = vunpack.c.h.b16 %v1080
    %v1133 = vunpack.c.l.b16 %v1081
    %v1134 = vunpack.c.h.b16 %v1081
    %v1135 = vunpack.c.l.b16 %v1082
    %v1136 = vunpack.c.h.b16 %v1082
    %v1137 = vpack.c.b16 %v1107, %v1105
    %v1138 = vpack.c.b16 %v1108, %v1106
    %v1139 = vpack.c.b16 %v1111, %v1109
    %v1140 = vpack.c.b16 %v1112, %v1110
    %v1141 = vpack.c.b16 %v1115, %v1113
    %v1142 = vpack.c.b16 %v1116, %v1114
    %v1143 = vpack.c.b16 %v1119, %v1117
    %v1144 = vpack.c.b16 %v1120, %v1118
    %v1145 = vpack.c.b16 %v1123, %v1121
    %v1146 = vpack.c.b16 %v1124, %v1122
    %v1147 = vpack.c.b16 %v1127, %v1125
    %v1148 = vpack.c.b16 %v1128, %v1126
    %v1149 = vpack.c.b16 %v1131, %v1129
    %v1150 = vpack.c.b16 %v1132, %v1130
    %v1151 = vpack.c.b16 %v1135, %v1133
    %v1152 = vpack.c.b16 %v1136, %v1134
    %1169 = vmatpush.bf16.msra.mxu0 %v1151
    %1170 = vmatpush.bf16.msra.mxu0 %v1149
    %1171 = vmatpush.bf16.msra.mxu0 %v1147
    %1172 = vmatpush.bf16.msra.mxu0 %v1145
    %1173 = vmatpush.bf16.msra.mxu0 %v1143
    %1174 = vmatpush.bf16.msra.mxu0 %v1141
    %1175 = vmatpush.bf16.msra.mxu0 %v1139
    %1176 = vmatpush.bf16.msra.mxu0 %v1137
    %1177 = vmatmul.bf16.gmra.mxu0 %v1066
    %v1178 = vpop.f32.mrf.mxu0
    %v1179 = vadd.f32 %v1085, %v1178
    %v1180 = vpop.f32.mrf.mxu0
    %v1181 = vadd.f32 %v1085, %v1180
    %1182 = vdwg.mxu0
    %1183 = vmatpush.bf16.msra.mxu0 %v1152
    %1184 = vmatpush.bf16.msra.mxu0 %v1150
    %1185 = vmatpush.bf16.msra.mxu0 %v1148
    %1186 = vmatpush.bf16.msra.mxu0 %v1146
    %1187 = vmatpush.bf16.msra.mxu0 %v1144
    %1188 = vmatpush.bf16.msra.mxu0 %v1142
    %1189 = vmatpush.bf16.msra.mxu0 %v1140
    %1190 = vmatpush.bf16.msra.mxu0 %v1138
    %1191 = vmatmul.bf16.gmra.mxu0 %v1066
    %v1192 = vpop.f32.mrf.mxu0
    %v1193 = vadd.f32 %v1086, %v1192
    %v1194 = vpop.f32.mrf.mxu0
    %v1195 = vadd.f32 %v1086, %v1194
    %1196 = vdwg.mxu0
    %v1197 = vld [vmem:[#allocation7] sm:$0xff]
    %v1198 = vld [vmem:[#allocation7 + $0x8] sm:$0xff]
    %v1199 = vld [vmem:[#allocation7 + $0x10] sm:$0xff]
    %v1200 = vld [vmem:[#allocation7 + $0x18] sm:$0xff]
    %v1201 = vld [vmem:[#allocation7 + $0x20] sm:$0xff]
    %v1202 = vld [vmem:[#allocation7 + $0x28] sm:$0xff]
    %v1203 = vld [vmem:[#allocation7 + $0x30] sm:$0xff]
    %v1204 = vld [vmem:[#allocation7 + $0x38] sm:$0xff]
    %v1213 = vunpack.c.l.b16 %v1197
    %v1214 = vunpack.c.h.b16 %v1197
    %v1215 = vunpack.c.l.b16 %v1198
    %v1216 = vunpack.c.h.b16 %v1198
    %v1217 = vunpack.c.l.b16 %v1199
    %v1218 = vunpack.c.h.b16 %v1199
    %v1219 = vunpack.c.l.b16 %v1200
    %v1220 = vunpack.c.h.b16 %v1200
    %v1221 = vunpack.c.l.b16 %v1201
    %v1222 = vunpack.c.h.b16 %v1201
    %v1223 = vunpack.c.l.b16 %v1202
    %v1224 = vunpack.c.h.b16 %v1202
    %v1225 = vunpack.c.l.b16 %v1203
    %v1226 = vunpack.c.h.b16 %v1203
    %v1227 = vunpack.c.l.b16 %v1204
    %v1228 = vunpack.c.h.b16 %v1204
    %v1229 = vpack.c.b16 %v1215, %v1213
    %v1230 = vpack.c.b16 %v1216, %v1214
    %v1231 = vpack.c.b16 %v1219, %v1217
    %v1232 = vpack.c.b16 %v1220, %v1218
    %v1233 = vpack.c.b16 %v1223, %v1221
    %v1234 = vpack.c.b16 %v1224, %v1222
    %v1235 = vpack.c.b16 %v1227, %v1225
    %v1236 = vpack.c.b16 %v1228, %v1226
    %1245 = vmatpush.bf16.msra.mxu0 0
    %1246 = vmatpush.bf16.msra.mxu0 0
    %1247 = vmatpush.bf16.msra.mxu0 0
    %1248 = vmatpush.bf16.msra.mxu0 0
    %1249 = vmatpush.bf16.msra.mxu0 %v1235
    %1250 = vmatpush.bf16.msra.mxu0 %v1233
    %1251 = vmatpush.bf16.msra.mxu0 %v1231
    %1252 = vmatpush.bf16.msra.mxu0 %v1229
    %1253 = vmatmul.bf16.gmra.mxu0 %v287
    %v1254 = vpop.f32.mrf.mxu0
    %v1255 = vadd.f32 0.0, %v1254
    %v1256 = vpop.f32.mrf.mxu0
    %1257 = vdwg.mxu0
    %1258 = vmatpush.bf16.msra.mxu0 0
    %1259 = vmatpush.bf16.msra.mxu0 0
    %1260 = vmatpush.bf16.msra.mxu0 0
    %1261 = vmatpush.bf16.msra.mxu0 0
    %1262 = vmatpush.bf16.msra.mxu0 %v1236
    %1263 = vmatpush.bf16.msra.mxu0 %v1234
    %1264 = vmatpush.bf16.msra.mxu0 %v1232
    %1265 = vmatpush.bf16.msra.mxu0 %v1230
    %1266 = vmatmul.bf16.gmra.mxu0 %v287
    %v1267 = vpop.f32.mrf.mxu0
    %v1268 = vadd.f32 0.0, %v1267
    %v1269 = vpop.f32.mrf.mxu0
    %1270 = vdwg.mxu0
    %v1271 = vadd.f32 %v1179, %v1255
    %v1272 = vadd.f32 %v1193, %v1268
    %v1273 = vxor.u32 %v1271, 2147483648
    %v1274 = vmul.f32 %v1273, 1.442695
    %v1275 = vpow.pop %v1274
    %v1276 = vadd.f32 %v1275, 1.0
    %v1277 = vrcp.pop %v1276
    %v1278 = vmul.f32 %v1276, %v1277
    %v1279 = vsub.f32 1.0, %v1278
    %v1280 = vmul.f32 %v1277, %v1279
    %v1281 = vadd.f32 %v1277, %v1280
    %vm1282 = vweird.f32 %v1276
    %vm1283 = vweird.f32 %v1277
    %vm1284 = vmor %vm1282, %vm1283
    %v1285 = vsel %vm1284, %v1277, %v1281
    %v1286 = vand.u32 2147483647, %v1276
    %vm1287 = vcmp.eq.f32.partialorder %v1286, 8.507059e+37
    %v1288 = vand.u32 %v1276, 2147483648
    %v1289 = vor.u32 1.1754944e-38, %v1288
    %v1290 = vsel %vm1287, %v1289, %v1285
    %v1291 = vmul.f32 1.0, %v1290
    %v1292 = vtanh.pop %v1272
    %v1293 = vxor.u32 %v1272, 2147483648
    %v1294 = vmul.f32 %v1293, 1.442695
    %v1295 = vpow.pop %v1294
    %v1296 = vadd.f32 %v1295, 1.0
    %v1297 = vrcp.pop %v1296
    %v1298 = vmul.f32 %v1296, %v1297
    %v1299 = vsub.f32 1.0, %v1298
    %v1300 = vmul.f32 %v1297, %v1299
    %v1301 = vadd.f32 %v1297, %v1300
    %vm1302 = vweird.f32 %v1296
    %vm1303 = vweird.f32 %v1297
    %vm1304 = vmor %vm1302, %vm1303
    %v1305 = vsel %vm1304, %v1297, %v1301
    %v1306 = vand.u32 2147483647, %v1296
    %vm1307 = vcmp.eq.f32.partialorder %v1306, 8.507059e+37
    %v1308 = vand.u32 %v1296, 2147483648
    %v1309 = vor.u32 1.1754944e-38, %v1308
    %v1310 = vsel %vm1307, %v1309, %v1305
    %v1311 = vmul.f32 1.0, %v1310
    %v1312 = vmul.f32 %v1291, 0.0
    %v1313 = vmul.f32 %v1291, %v1292
    %1315 = vrot.lane.b32.xlu0 %v1313, 64
    %v1316 = vpop.permute.xlu0 %1315
    %v1318 = vadd.f32 %v1312, %v1316
    %v1319 = vtanh.pop %v1318
    %v1320 = vmul.f32 %v1311, %v1319
    %v1321 = vpack.c.bf16 %v1320, %v1320
    %1323 = vrot.lane.b32.xlu0 %v1321, 64
    %v1324 = vpop.permute.xlu0 %1323
    %v1326 = vsel %vm206, %v1324, 0
    %1328 = vmatpush.bf16.msra.mxu0 0
    %1329 = vmatpush.bf16.msra.mxu0 0
    %1330 = vmatpush.bf16.msra.mxu0 0
    %1331 = vmatpush.bf16.msra.mxu0 0
    %1332 = vmatpush.bf16.msra.mxu0 %v1235
    %1333 = vmatpush.bf16.msra.mxu0 %v1233
    %1334 = vmatpush.bf16.msra.mxu0 %v1231
    %1335 = vmatpush.bf16.msra.mxu0 %v1229
    %1336 = vmatmul.bf16.gmra.mxu0 %v1326
    %v1337 = vpop.f32.mrf.mxu0
    %v1338 = vadd.f32 0.0, %v1337
    %v1339 = vpop.f32.mrf.mxu0
    %1340 = vdwg.mxu0
    %1341 = vmatpush.bf16.msra.mxu0 0
    %1342 = vmatpush.bf16.msra.mxu0 0
    %1343 = vmatpush.bf16.msra.mxu0 0
    %1344 = vmatpush.bf16.msra.mxu0 0
    %1345 = vmatpush.bf16.msra.mxu0 %v1236
    %1346 = vmatpush.bf16.msra.mxu0 %v1234
    %1347 = vmatpush.bf16.msra.mxu0 %v1232
    %1348 = vmatpush.bf16.msra.mxu0 %v1230
    %1349 = vmatmul.bf16.gmra.mxu0 %v1326
    %v1350 = vpop.f32.mrf.mxu0
    %v1351 = vadd.f32 0.0, %v1350
    %v1352 = vpop.f32.mrf.mxu0
    %1353 = vdwg.mxu0
    %v1356 = vrot.slane %v1338, 6
    %v1357 = vrot.slane %v1351, 6
    %v1360 = vadd.f32 %v1179, %v1356
    %v1361 = vadd.f32 %v1193, %v1357
    %v1362 = vxor.u32 %v1360, 2147483648
    %v1363 = vmul.f32 %v1362, 1.442695
    %v1364 = vpow.pop %v1363
    %v1365 = vadd.f32 %v1364, 1.0
    %v1366 = vrcp.pop %v1365
    %v1367 = vmul.f32 %v1365, %v1366
    %v1368 = vsub.f32 1.0, %v1367
    %v1369 = vmul.f32 %v1366, %v1368
    %v1370 = vadd.f32 %v1366, %v1369
    %vm1371 = vweird.f32 %v1365
    %vm1372 = vweird.f32 %v1366
    %vm1373 = vmor %vm1371, %vm1372
    %v1374 = vsel %vm1373, %v1366, %v1370
    %v1375 = vand.u32 2147483647, %v1365
    %vm1376 = vcmp.eq.f32.partialorder %v1375, 8.507059e+37
    %v1377 = vand.u32 %v1365, 2147483648
    %v1378 = vor.u32 1.1754944e-38, %v1377
    %v1379 = vsel %vm1376, %v1378, %v1374
    %v1380 = vmul.f32 1.0, %v1379
    %v1381 = vtanh.pop %v1361
    %v1382 = vxor.u32 %v1361, 2147483648
    %v1383 = vmul.f32 %v1382, 1.442695
    %v1384 = vpow.pop %v1383
    %v1385 = vadd.f32 %v1384, 1.0
    %v1386 = vrcp.pop %v1385
    %v1387 = vmul.f32 %v1385, %v1386
    %v1388 = vsub.f32 1.0, %v1387
    %v1389 = vmul.f32 %v1386, %v1388
    %v1390 = vadd.f32 %v1386, %v1389
    %vm1391 = vweird.f32 %v1385
    %vm1392 = vweird.f32 %v1386
    %vm1393 = vmor %vm1391, %vm1392
    %v1394 = vsel %vm1393, %v1386, %v1390
    %v1395 = vand.u32 2147483647, %v1385
    %vm1396 = vcmp.eq.f32.partialorder %v1395, 8.507059e+37
    %v1397 = vand.u32 %v1385, 2147483648
    %v1398 = vor.u32 1.1754944e-38, %v1397
    %v1399 = vsel %vm1396, %v1398, %v1394
    %v1400 = vmul.f32 1.0, %v1399
    %v1402 = vrot.slane %v1318, 6
    %v1404 = vmul.f32 %v1380, %v1402
    %v1405 = vmul.f32 %v1380, %v1381
    %1407 = vrot.lane.b32.xlu0 %v1405, 64
    %v1408 = vpop.permute.xlu0 %1407
    %v1410 = vadd.f32 %v1404, %v1408
    %v1411 = vtanh.pop %v1410
    %v1412 = vmul.f32 %v1400, %v1411
    %v1413 = vpack.c.bf16 %v1412, %v1412
    %v1415 = vrot.slane %v1413, 1
    %1416 = vrot.lane.b32.xlu0 %v1415, 64
    %v1417 = vpop.permute.xlu0 %1416
    %v1419 = vsel %vm206, %v1417, 0
    %1421 = vmatpush.bf16.msra.mxu0 0
    %1422 = vmatpush.bf16.msra.mxu0 0
    %1423 = vmatpush.bf16.msra.mxu0 0
    %1424 = vmatpush.bf16.msra.mxu0 0
    %1425 = vmatpush.bf16.msra.mxu0 %v1235
    %1426 = vmatpush.bf16.msra.mxu0 %v1233
    %1427 = vmatpush.bf16.msra.mxu0 %v1231
    %1428 = vmatpush.bf16.msra.mxu0 %v1229
    %1429 = vmatmul.bf16.gmra.mxu0 %v1419
    %v1430 = vpop.f32.mrf.mxu0
    %v1431 = vadd.f32 0.0, %v1430
    %v1432 = vpop.f32.mrf.mxu0
    %1433 = vdwg.mxu0
    %1434 = vmatpush.bf16.msra.mxu0 0
    %1435 = vmatpush.bf16.msra.mxu0 0
    %1436 = vmatpush.bf16.msra.mxu0 0
    %1437 = vmatpush.bf16.msra.mxu0 0
    %1438 = vmatpush.bf16.msra.mxu0 %v1236
    %1439 = vmatpush.bf16.msra.mxu0 %v1234
    %1440 = vmatpush.bf16.msra.mxu0 %v1232
    %1441 = vmatpush.bf16.msra.mxu0 %v1230
    %1442 = vmatmul.bf16.gmra.mxu0 %v1419
    %v1443 = vpop.f32.mrf.mxu0
    %v1444 = vadd.f32 0.0, %v1443
    %v1445 = vpop.f32.mrf.mxu0
    %1446 = vdwg.mxu0
    %v1449 = vrot.slane %v1431, 4
    %v1450 = vrot.slane %v1444, 4
    %v1453 = vadd.f32 %v1179, %v1449
    %v1454 = vadd.f32 %v1193, %v1450
    %v1455 = vxor.u32 %v1453, 2147483648
    %v1456 = vmul.f32 %v1455, 1.442695
    %v1457 = vpow.pop %v1456
    %v1458 = vadd.f32 %v1457, 1.0
    %v1459 = vrcp.pop %v1458
    %v1460 = vmul.f32 %v1458, %v1459
    %v1461 = vsub.f32 1.0, %v1460
    %v1462 = vmul.f32 %v1459, %v1461
    %v1463 = vadd.f32 %v1459, %v1462
    %vm1464 = vweird.f32 %v1458
    %vm1465 = vweird.f32 %v1459
    %vm1466 = vmor %vm1464, %vm1465
    %v1467 = vsel %vm1466, %v1459, %v1463
    %v1468 = vand.u32 2147483647, %v1458
    %vm1469 = vcmp.eq.f32.partialorder %v1468, 8.507059e+37
    %v1470 = vand.u32 %v1458, 2147483648
    %v1471 = vor.u32 1.1754944e-38, %v1470
    %v1472 = vsel %vm1469, %v1471, %v1467
    %v1473 = vmul.f32 1.0, %v1472
    %v1474 = vtanh.pop %v1454
    %v1475 = vxor.u32 %v1454, 2147483648
    %v1476 = vmul.f32 %v1475, 1.442695
    %v1477 = vpow.pop %v1476
    %v1478 = vadd.f32 %v1477, 1.0
    %v1479 = vrcp.pop %v1478
    %v1480 = vmul.f32 %v1478, %v1479
    %v1481 = vsub.f32 1.0, %v1480
    %v1482 = vmul.f32 %v1479, %v1481
    %v1483 = vadd.f32 %v1479, %v1482
    %vm1484 = vweird.f32 %v1478
    %vm1485 = vweird.f32 %v1479
    %vm1486 = vmor %vm1484, %vm1485
    %v1487 = vsel %vm1486, %v1479, %v1483
    %v1488 = vand.u32 2147483647, %v1478
    %vm1489 = vcmp.eq.f32.partialorder %v1488, 8.507059e+37
    %v1490 = vand.u32 %v1478, 2147483648
    %v1491 = vor.u32 1.1754944e-38, %v1490
    %v1492 = vsel %vm1489, %v1491, %v1487
    %v1493 = vmul.f32 1.0, %v1492
    %v1495 = vrot.slane %v1410, 6
    %v1497 = vmul.f32 %v1473, %v1495
    %v1498 = vmul.f32 %v1473, %v1474
    %1500 = vrot.lane.b32.xlu0 %v1498, 64
    %v1501 = vpop.permute.xlu0 %1500
    %v1503 = vadd.f32 %v1497, %v1501
    %v1504 = vtanh.pop %v1503
    %v1505 = vmul.f32 %v1493, %v1504
    %v1506 = vpack.c.bf16 %v1505, %v1505
    %v1508 = vrot.slane %v1506, 2
    %1509 = vrot.lane.b32.xlu0 %v1508, 64
    %v1510 = vpop.permute.xlu0 %1509
    %v1512 = vsel %vm206, %v1510, 0
    %1514 = vmatpush.bf16.msra.mxu0 0
    %1515 = vmatpush.bf16.msra.mxu0 0
    %1516 = vmatpush.bf16.msra.mxu0 0
    %1517 = vmatpush.bf16.msra.mxu0 0
    %1518 = vmatpush.bf16.msra.mxu0 %v1235
    %1519 = vmatpush.bf16.msra.mxu0 %v1233
    %1520 = vmatpush.bf16.msra.mxu0 %v1231
    %1521 = vmatpush.bf16.msra.mxu0 %v1229
    %1522 = vmatmul.bf16.gmra.mxu0 %v1512
    %v1523 = vpop.f32.mrf.mxu0
    %v1524 = vadd.f32 0.0, %v1523
    %v1525 = vpop.f32.mrf.mxu0
    %1526 = vdwg.mxu0
    %1527 = vmatpush.bf16.msra.mxu0 0
    %1528 = vmatpush.bf16.msra.mxu0 0
    %1529 = vmatpush.bf16.msra.mxu0 0
    %1530 = vmatpush.bf16.msra.mxu0 0
    %1531 = vmatpush.bf16.msra.mxu0 %v1236
    %1532 = vmatpush.bf16.msra.mxu0 %v1234
    %1533 = vmatpush.bf16.msra.mxu0 %v1232
    %1534 = vmatpush.bf16.msra.mxu0 %v1230
    %1535 = vmatmul.bf16.gmra.mxu0 %v1512
    %v1536 = vpop.f32.mrf.mxu0
    %v1537 = vadd.f32 0.0, %v1536
    %v1538 = vpop.f32.mrf.mxu0
    %1539 = vdwg.mxu0
    %v1542 = vrot.slane %v1524, 2
    %v1543 = vrot.slane %v1537, 2
    %v1546 = vadd.f32 %v1179, %v1542
    %v1547 = vadd.f32 %v1193, %v1543
    %v1548 = vxor.u32 %v1546, 2147483648
    %v1549 = vmul.f32 %v1548, 1.442695
    %v1550 = vpow.pop %v1549
    %v1551 = vadd.f32 %v1550, 1.0
    %v1552 = vrcp.pop %v1551
    %v1553 = vmul.f32 %v1551, %v1552
    %v1554 = vsub.f32 1.0, %v1553
    %v1555 = vmul.f32 %v1552, %v1554
    %v1556 = vadd.f32 %v1552, %v1555
    %vm1557 = vweird.f32 %v1551
    %vm1558 = vweird.f32 %v1552
    %vm1559 = vmor %vm1557, %vm1558
    %v1560 = vsel %vm1559, %v1552, %v1556
    %v1561 = vand.u32 2147483647, %v1551
    %vm1562 = vcmp.eq.f32.partialorder %v1561, 8.507059e+37
    %v1563 = vand.u32 %v1551, 2147483648
    %v1564 = vor.u32 1.1754944e-38, %v1563
    %v1565 = vsel %vm1562, %v1564, %v1560
    %v1566 = vmul.f32 1.0, %v1565
    %v1567 = vtanh.pop %v1547
    %v1568 = vxor.u32 %v1547, 2147483648
    %v1569 = vmul.f32 %v1568, 1.442695
    %v1570 = vpow.pop %v1569
    %v1571 = vadd.f32 %v1570, 1.0
    %v1572 = vrcp.pop %v1571
    %v1573 = vmul.f32 %v1571, %v1572
    %v1574 = vsub.f32 1.0, %v1573
    %v1575 = vmul.f32 %v1572, %v1574
    %v1576 = vadd.f32 %v1572, %v1575
    %vm1577 = vweird.f32 %v1571
    %vm1578 = vweird.f32 %v1572
    %vm1579 = vmor %vm1577, %vm1578
    %v1580 = vsel %vm1579, %v1572, %v1576
    %v1581 = vand.u32 2147483647, %v1571
    %vm1582 = vcmp.eq.f32.partialorder %v1581, 8.507059e+37
    %v1583 = vand.u32 %v1571, 2147483648
    %v1584 = vor.u32 1.1754944e-38, %v1583
    %v1585 = vsel %vm1582, %v1584, %v1580
    %v1586 = vmul.f32 1.0, %v1585
    %v1588 = vrot.slane %v1503, 6
    %v1590 = vmul.f32 %v1566, %v1588
    %v1591 = vmul.f32 %v1566, %v1567
    %1593 = vrot.lane.b32.xlu0 %v1591, 64
    %v1594 = vpop.permute.xlu0 %1593
    %v1596 = vadd.f32 %v1590, %v1594
    %v1597 = vtanh.pop %v1596
    %v1598 = vmul.f32 %v1586, %v1597
    %v1599 = vpack.c.bf16 %v1598, %v1598
    %v1601 = vrot.slane %v1599, 3
    %1602 = vrot.lane.b32.xlu0 %v1601, 64
    %v1603 = vpop.permute.xlu0 %1602
    %v1605 = vsel %vm206, %v1603, 0
    %1607 = vmatpush.bf16.msra.mxu0 0
    %1608 = vmatpush.bf16.msra.mxu0 0
    %1609 = vmatpush.bf16.msra.mxu0 0
    %1610 = vmatpush.bf16.msra.mxu0 0
    %1611 = vmatpush.bf16.msra.mxu0 %v1235
    %1612 = vmatpush.bf16.msra.mxu0 %v1233
    %1613 = vmatpush.bf16.msra.mxu0 %v1231
    %1614 = vmatpush.bf16.msra.mxu0 %v1229
    %1615 = vmatmul.bf16.gmra.mxu0 %v1605
    %v1616 = vpop.f32.mrf.mxu0
    %v1617 = vadd.f32 0.0, %v1616
    %v1618 = vpop.f32.mrf.mxu0
    %1619 = vdwg.mxu0
    %1620 = vmatpush.bf16.msra.mxu0 0
    %1621 = vmatpush.bf16.msra.mxu0 0
    %1622 = vmatpush.bf16.msra.mxu0 0
    %1623 = vmatpush.bf16.msra.mxu0 0
    %1624 = vmatpush.bf16.msra.mxu0 %v1236
    %1625 = vmatpush.bf16.msra.mxu0 %v1234
    %1626 = vmatpush.bf16.msra.mxu0 %v1232
    %1627 = vmatpush.bf16.msra.mxu0 %v1230
    %1628 = vmatmul.bf16.gmra.mxu0 %v1605
    %v1629 = vpop.f32.mrf.mxu0
    %v1630 = vadd.f32 0.0, %v1629
    %v1631 = vpop.f32.mrf.mxu0
    %1632 = vdwg.mxu0
    %v1633 = vadd.f32 %v1181, %v1617
    %v1634 = vadd.f32 %v1195, %v1630
    %v1635 = vxor.u32 %v1633, 2147483648
    %v1636 = vmul.f32 %v1635, 1.442695
    %v1637 = vpow.pop %v1636
    %v1638 = vadd.f32 %v1637, 1.0
    %v1639 = vrcp.pop %v1638
    %v1640 = vmul.f32 %v1638, %v1639
    %v1641 = vsub.f32 1.0, %v1640
    %v1642 = vmul.f32 %v1639, %v1641
    %v1643 = vadd.f32 %v1639, %v1642
    %vm1644 = vweird.f32 %v1638
    %vm1645 = vweird.f32 %v1639
    %vm1646 = vmor %vm1644, %vm1645
    %v1647 = vsel %vm1646, %v1639, %v1643
    %v1648 = vand.u32 2147483647, %v1638
    %vm1649 = vcmp.eq.f32.partialorder %v1648, 8.507059e+37
    %v1650 = vand.u32 %v1638, 2147483648
    %v1651 = vor.u32 1.1754944e-38, %v1650
    %v1652 = vsel %vm1649, %v1651, %v1647
    %v1653 = vmul.f32 1.0, %v1652
    %v1654 = vtanh.pop %v1634
    %v1655 = vxor.u32 %v1634, 2147483648
    %v1656 = vmul.f32 %v1655, 1.442695
    %v1657 = vpow.pop %v1656
    %v1658 = vadd.f32 %v1657, 1.0
    %v1659 = vrcp.pop %v1658
    %v1660 = vmul.f32 %v1658, %v1659
    %v1661 = vsub.f32 1.0, %v1660
    %v1662 = vmul.f32 %v1659, %v1661
    %v1663 = vadd.f32 %v1659, %v1662
    %vm1664 = vweird.f32 %v1658
    %vm1665 = vweird.f32 %v1659
    %vm1666 = vmor %vm1664, %vm1665
    %v1667 = vsel %vm1666, %v1659, %v1663
    %v1668 = vand.u32 2147483647, %v1658
    %vm1669 = vcmp.eq.f32.partialorder %v1668, 8.507059e+37
    %v1670 = vand.u32 %v1658, 2147483648
    %v1671 = vor.u32 1.1754944e-38, %v1670
    %v1672 = vsel %vm1669, %v1671, %v1667
    %v1673 = vmul.f32 1.0, %v1672
    %v1675 = vrot.slane %v1596, 6
    %v1677 = vmul.f32 %v1653, %v1675
    %v1678 = vmul.f32 %v1653, %v1654
    %1680 = vrot.lane.b32.xlu0 %v1678, 64
    %v1681 = vpop.permute.xlu0 %1680
    %v1683 = vadd.f32 %v1677, %v1681
    %v1684 = vtanh.pop %v1683
    %v1685 = vmul.f32 %v1673, %v1684
    %v1686 = vpack.c.bf16 %v1685, %v1685
    %1688 = vrot.lane.b32.xlu0 %v1686, 64
    %v1689 = vpop.permute.xlu0 %1688
    %v1691 = vsel %vm206, %v1689, 0
    %1693 = vmatpush.bf16.msra.mxu0 0
    %1694 = vmatpush.bf16.msra.mxu0 0
    %1695 = vmatpush.bf16.msra.mxu0 0
    %1696 = vmatpush.bf16.msra.mxu0 0
    %1697 = vmatpush.bf16.msra.mxu0 %v1235
    %1698 = vmatpush.bf16.msra.mxu0 %v1233
    %1699 = vmatpush.bf16.msra.mxu0 %v1231
    %1700 = vmatpush.bf16.msra.mxu0 %v1229
    %1701 = vmatmul.bf16.gmra.mxu0 %v1691
    %v1702 = vpop.f32.mrf.mxu0
    %v1703 = vadd.f32 0.0, %v1702
    %v1704 = vpop.f32.mrf.mxu0
    %1705 = vdwg.mxu0
    %1706 = vmatpush.bf16.msra.mxu0 0
    %1707 = vmatpush.bf16.msra.mxu0 0
    %1708 = vmatpush.bf16.msra.mxu0 0
    %1709 = vmatpush.bf16.msra.mxu0 0
    %1710 = vmatpush.bf16.msra.mxu0 %v1236
    %1711 = vmatpush.bf16.msra.mxu0 %v1234
    %1712 = vmatpush.bf16.msra.mxu0 %v1232
    %1713 = vmatpush.bf16.msra.mxu0 %v1230
    %1714 = vmatmul.bf16.gmra.mxu0 %v1691
    %v1715 = vpop.f32.mrf.mxu0
    %v1716 = vadd.f32 0.0, %v1715
    %v1717 = vpop.f32.mrf.mxu0
    %1718 = vdwg.mxu0
    %v1721 = vrot.slane %v1703, 6
    %v1722 = vrot.slane %v1716, 6
    %v1725 = vadd.f32 %v1181, %v1721
    %v1726 = vadd.f32 %v1195, %v1722
    %v1727 = vxor.u32 %v1725, 2147483648
    %v1728 = vmul.f32 %v1727, 1.442695
    %v1729 = vpow.pop %v1728
    %v1730 = vadd.f32 %v1729, 1.0
    %v1731 = vrcp.pop %v1730
    %v1732 = vmul.f32 %v1730, %v1731
    %v1733 = vsub.f32 1.0, %v1732
    %v1734 = vmul.f32 %v1731, %v1733
    %v1735 = vadd.f32 %v1731, %v1734
    %vm1736 = vweird.f32 %v1730
    %vm1737 = vweird.f32 %v1731
    %vm1738 = vmor %vm1736, %vm1737
    %v1739 = vsel %vm1738, %v1731, %v1735
    %v1740 = vand.u32 2147483647, %v1730
    %vm1741 = vcmp.eq.f32.partialorder %v1740, 8.507059e+37
    %v1742 = vand.u32 %v1730, 2147483648
    %v1743 = vor.u32 1.1754944e-38, %v1742
    %v1744 = vsel %vm1741, %v1743, %v1739
    %v1745 = vmul.f32 1.0, %v1744
    %v1746 = vtanh.pop %v1726
    %v1747 = vxor.u32 %v1726, 2147483648
    %v1748 = vmul.f32 %v1747, 1.442695
    %v1749 = vpow.pop %v1748
    %v1750 = vadd.f32 %v1749, 1.0
    %v1751 = vrcp.pop %v1750
    %v1752 = vmul.f32 %v1750, %v1751
    %v1753 = vsub.f32 1.0, %v1752
    %v1754 = vmul.f32 %v1751, %v1753
    %v1755 = vadd.f32 %v1751, %v1754
    %vm1756 = vweird.f32 %v1750
    %vm1757 = vweird.f32 %v1751
    %vm1758 = vmor %vm1756, %vm1757
    %v1759 = vsel %vm1758, %v1751, %v1755
    %v1760 = vand.u32 2147483647, %v1750
    %vm1761 = vcmp.eq.f32.partialorder %v1760, 8.507059e+37
    %v1762 = vand.u32 %v1750, 2147483648
    %v1763 = vor.u32 1.1754944e-38, %v1762
    %v1764 = vsel %vm1761, %v1763, %v1759
    %v1765 = vmul.f32 1.0, %v1764
    %v1767 = vrot.slane %v1683, 6
    %v1769 = vmul.f32 %v1745, %v1767
    %v1770 = vmul.f32 %v1745, %v1746
    %1772 = vrot.lane.b32.xlu0 %v1770, 64
    %v1773 = vpop.permute.xlu0 %1772
    %v1775 = vadd.f32 %v1769, %v1773
    %v1776 = vtanh.pop %v1775
    %v1777 = vmul.f32 %v1765, %v1776
    %v1778 = vpack.c.bf16 %v1777, %v1777
    %v1780 = vrot.slane %v1778, 1
    %1781 = vrot.lane.b32.xlu0 %v1780, 64
    %v1782 = vpop.permute.xlu0 %1781
    %v1784 = vsel %vm206, %v1782, 0
    %1786 = vmatpush.bf16.msra.mxu0 0
    %1787 = vmatpush.bf16.msra.mxu0 0
    %1788 = vmatpush.bf16.msra.mxu0 0
    %1789 = vmatpush.bf16.msra.mxu0 0
    %1790 = vmatpush.bf16.msra.mxu0 %v1235
    %1791 = vmatpush.bf16.msra.mxu0 %v1233
    %1792 = vmatpush.bf16.msra.mxu0 %v1231
    %1793 = vmatpush.bf16.msra.mxu0 %v1229
    %1794 = vmatmul.bf16.gmra.mxu0 %v1784
    %v1795 = vpop.f32.mrf.mxu0
    %v1796 = vadd.f32 0.0, %v1795
    %v1797 = vpop.f32.mrf.mxu0
    %1798 = vdwg.mxu0
    %1799 = vmatpush.bf16.msra.mxu0 0
    %1800 = vmatpush.bf16.msra.mxu0 0
    %1801 = vmatpush.bf16.msra.mxu0 0
    %1802 = vmatpush.bf16.msra.mxu0 0
    %1803 = vmatpush.bf16.msra.mxu0 %v1236
    %1804 = vmatpush.bf16.msra.mxu0 %v1234
    %1805 = vmatpush.bf16.msra.mxu0 %v1232
    %1806 = vmatpush.bf16.msra.mxu0 %v1230
    %1807 = vmatmul.bf16.gmra.mxu0 %v1784
    %v1808 = vpop.f32.mrf.mxu0
    %v1809 = vadd.f32 0.0, %v1808
    %v1810 = vpop.f32.mrf.mxu0
    %1811 = vdwg.mxu0
    %v1814 = vrot.slane %v1796, 4
    %v1815 = vrot.slane %v1809, 4
    %v1818 = vadd.f32 %v1181, %v1814
    %v1819 = vadd.f32 %v1195, %v1815
    %v1820 = vxor.u32 %v1818, 2147483648
    %v1821 = vmul.f32 %v1820, 1.442695
    %v1822 = vpow.pop %v1821
    %v1823 = vadd.f32 %v1822, 1.0
    %v1824 = vrcp.pop %v1823
    %v1825 = vmul.f32 %v1823, %v1824
    %v1826 = vsub.f32 1.0, %v1825
    %v1827 = vmul.f32 %v1824, %v1826
    %v1828 = vadd.f32 %v1824, %v1827
    %vm1829 = vweird.f32 %v1823
    %vm1830 = vweird.f32 %v1824
    %vm1831 = vmor %vm1829, %vm1830
    %v1832 = vsel %vm1831, %v1824, %v1828
    %v1833 = vand.u32 2147483647, %v1823
    %vm1834 = vcmp.eq.f32.partialorder %v1833, 8.507059e+37
    %v1835 = vand.u32 %v1823, 2147483648
    %v1836 = vor.u32 1.1754944e-38, %v1835
    %v1837 = vsel %vm1834, %v1836, %v1832
    %v1838 = vmul.f32 1.0, %v1837
    %v1839 = vtanh.pop %v1819
    %v1840 = vxor.u32 %v1819, 2147483648
    %v1841 = vmul.f32 %v1840, 1.442695
    %v1842 = vpow.pop %v1841
    %v1843 = vadd.f32 %v1842, 1.0
    %v1844 = vrcp.pop %v1843
    %v1845 = vmul.f32 %v1843, %v1844
    %v1846 = vsub.f32 1.0, %v1845
    %v1847 = vmul.f32 %v1844, %v1846
    %v1848 = vadd.f32 %v1844, %v1847
    %vm1849 = vweird.f32 %v1843
    %vm1850 = vweird.f32 %v1844
    %vm1851 = vmor %vm1849, %vm1850
    %v1852 = vsel %vm1851, %v1844, %v1848
    %v1853 = vand.u32 2147483647, %v1843
    %vm1854 = vcmp.eq.f32.partialorder %v1853, 8.507059e+37
    %v1855 = vand.u32 %v1843, 2147483648
    %v1856 = vor.u32 1.1754944e-38, %v1855
    %v1857 = vsel %vm1854, %v1856, %v1852
    %v1858 = vmul.f32 1.0, %v1857
    %v1860 = vrot.slane %v1775, 6
    %v1862 = vmul.f32 %v1838, %v1860
    %v1863 = vmul.f32 %v1838, %v1839
    %1865 = vrot.lane.b32.xlu0 %v1863, 64
    %v1866 = vpop.permute.xlu0 %1865
    %v1868 = vadd.f32 %v1862, %v1866
    %v1869 = vtanh.pop %v1868
    %v1870 = vmul.f32 %v1858, %v1869
    %v1871 = vpack.c.bf16 %v1870, %v1870
    %v1873 = vrot.slane %v1871, 2
    %1874 = vrot.lane.b32.xlu0 %v1873, 64
    %v1875 = vpop.permute.xlu0 %1874
    %v1877 = vsel %vm206, %v1875, 0
    %1879 = vmatpush.bf16.msra.mxu0 0
    %1880 = vmatpush.bf16.msra.mxu0 0
    %1881 = vmatpush.bf16.msra.mxu0 0
    %1882 = vmatpush.bf16.msra.mxu0 0
    %1883 = vmatpush.bf16.msra.mxu0 %v1235
    %1884 = vmatpush.bf16.msra.mxu0 %v1233
    %1885 = vmatpush.bf16.msra.mxu0 %v1231
    %1886 = vmatpush.bf16.msra.mxu0 %v1229
    %1887 = vmatmul.bf16.gmra.mxu0 %v1877
    %v1888 = vpop.f32.mrf.mxu0
    %v1889 = vadd.f32 0.0, %v1888
    %v1890 = vpop.f32.mrf.mxu0
    %1891 = vdwg.mxu0
    %1892 = vmatpush.bf16.msra.mxu0 0
    %1893 = vmatpush.bf16.msra.mxu0 0
    %1894 = vmatpush.bf16.msra.mxu0 0
    %1895 = vmatpush.bf16.msra.mxu0 0
    %1896 = vmatpush.bf16.msra.mxu0 %v1236
    %1897 = vmatpush.bf16.msra.mxu0 %v1234
    %1898 = vmatpush.bf16.msra.mxu0 %v1232
    %1899 = vmatpush.bf16.msra.mxu0 %v1230
    %1900 = vmatmul.bf16.gmra.mxu0 %v1877
    %v1901 = vpop.f32.mrf.mxu0
    %v1902 = vadd.f32 0.0, %v1901
    %v1903 = vpop.f32.mrf.mxu0
    %1904 = vdwg.mxu0
    %v1907 = vrot.slane %v1889, 2
    %v1908 = vrot.slane %v1902, 2
    %v1911 = vadd.f32 %v1181, %v1907
    %v1912 = vadd.f32 %v1195, %v1908
    %v1913 = vxor.u32 %v1911, 2147483648
    %v1914 = vmul.f32 %v1913, 1.442695
    %v1915 = vpow.pop %v1914
    %v1916 = vadd.f32 %v1915, 1.0
    %v1917 = vrcp.pop %v1916
    %v1918 = vmul.f32 %v1916, %v1917
    %v1919 = vsub.f32 1.0, %v1918
    %v1920 = vmul.f32 %v1917, %v1919
    %v1921 = vadd.f32 %v1917, %v1920
    %vm1922 = vweird.f32 %v1916
    %vm1923 = vweird.f32 %v1917
    %vm1924 = vmor %vm1922, %vm1923
    %v1925 = vsel %vm1924, %v1917, %v1921
    %v1926 = vand.u32 2147483647, %v1916
    %vm1927 = vcmp.eq.f32.partialorder %v1926, 8.507059e+37
    %v1928 = vand.u32 %v1916, 2147483648
    %v1929 = vor.u32 1.1754944e-38, %v1928
    %v1930 = vsel %vm1927, %v1929, %v1925
    %v1931 = vmul.f32 1.0, %v1930
    %v1932 = vtanh.pop %v1912
    %v1933 = vxor.u32 %v1912, 2147483648
    %v1934 = vmul.f32 %v1933, 1.442695
    %v1935 = vpow.pop %v1934
    %v1936 = vadd.f32 %v1935, 1.0
    %v1937 = vrcp.pop %v1936
    %v1938 = vmul.f32 %v1936, %v1937
    %v1939 = vsub.f32 1.0, %v1938
    %v1940 = vmul.f32 %v1937, %v1939
    %v1941 = vadd.f32 %v1937, %v1940
    %vm1942 = vweird.f32 %v1936
    %vm1943 = vweird.f32 %v1937
    %vm1944 = vmor %vm1942, %vm1943
    %v1945 = vsel %vm1944, %v1937, %v1941
    %v1946 = vand.u32 2147483647, %v1936
    %vm1947 = vcmp.eq.f32.partialorder %v1946, 8.507059e+37
    %v1948 = vand.u32 %v1936, 2147483648
    %v1949 = vor.u32 1.1754944e-38, %v1948
    %v1950 = vsel %vm1947, %v1949, %v1945
    %v1951 = vmul.f32 1.0, %v1950
    %v1953 = vrot.slane %v1868, 6
    %v1955 = vmul.f32 %v1931, %v1953
    %v1956 = vmul.f32 %v1931, %v1932
    %1958 = vrot.lane.b32.xlu0 %v1956, 64
    %v1959 = vpop.permute.xlu0 %1958
    %v1961 = vadd.f32 %v1955, %v1959
    %v1962 = vtanh.pop %v1961
    %v1963 = vmul.f32 %v1951, %v1962
    %v1964 = vld [vmem:[%s7] sm:$0xff]
    %v1965 = vld [vmem:[%s7 + $0x8] sm:$0xff]
    %v1966 = vld [vmem:[#allocation8] sm:$0xff]
    %v1967 = vld [vmem:[#allocation8 + $0x8] sm:$0xff]
    %v1968 = vld [vmem:[#allocation8 + $0x10] sm:$0xff]
    %v1969 = vld [vmem:[#allocation8 + $0x18] sm:$0xff]
    %v1970 = vld [vmem:[#allocation8 + $0x20] sm:$0xff]
    %v1971 = vld [vmem:[#allocation8 + $0x28] sm:$0xff]
    %v1972 = vld [vmem:[#allocation8 + $0x30] sm:$0xff]
    %v1973 = vld [vmem:[#allocation8 + $0x38] sm:$0xff]
    %v1974 = vld [vmem:[%s9] sm:$0x3]
    %v1975 = vld [vmem:[#allocation10] sm:$0xff]
    %v1976 = vld [vmem:[#allocation10 + $0x8] sm:$0xff]
    %v1977 = vld [vmem:[#allocation10 + $0x10] sm:$0xff]
    %v1978 = vld [vmem:[#allocation10 + $0x18] sm:$0xff]
    %v1979 = vld [vmem:[#allocation10 + $0x20] sm:$0xff]
    %v1980 = vld [vmem:[#allocation10 + $0x28] sm:$0xff]
    %v1981 = vld [vmem:[#allocation10 + $0x30] sm:$0xff]
    %v1982 = vld [vmem:[#allocation10 + $0x38] sm:$0xff]
    %v1983 = vld [vmem:[#allocation11] sm:$0xff]
    %v1984 = vld [vmem:[#allocation11 + $0x8] sm:$0xff]
    %v1985 = vld [vmem:[#allocation11 + $0x10] sm:$0xff]
    %v1986 = vld [vmem:[#allocation11 + $0x18] sm:$0xff]
    %v1987 = vld [vmem:[#allocation11 + $0x20] sm:$0xff]
    %v1988 = vld [vmem:[#allocation11 + $0x28] sm:$0xff]
    %v1989 = vld [vmem:[#allocation11 + $0x30] sm:$0xff]
    %v1990 = vld [vmem:[#allocation11 + $0x38] sm:$0xff]
    %v1991 = vld [vmem:[%s12] sm:$0x3]
    %v1992 = vld [vmem:[%s13] sm:$0xf]
    %v1993 = vld [vmem:[%s13 + $0x4] sm:$0xf]
    %v1994 = vld [vmem:[%s13 + $0x8] sm:$0xf]
    %v1995 = vld [vmem:[%s13 + $0xc] sm:$0xf]
    %v1996 = vld [vmem:[%s13 + $0x10] sm:$0xf]
    %v1997 = vld [vmem:[%s13 + $0x14] sm:$0xf]
    %v1998 = vld [vmem:[%s13 + $0x18] sm:$0xf]
    %v1999 = vld [vmem:[%s13 + $0x1c] sm:$0xf]
    %v2000 = vld [vmem:[%s14] sm:$0x1]
    %v2001 = vlaneseq
    %v2002 = vand.u32 %v2001, 127
    %v2003 = vcvt.s32.f32 %v2002
    %vm2004 = vcmp.eq.s32.totalorder %v2002, 1
    %v2005 = vsel %vm2004, 1, 0
    %v2006 = vcvt.s32.f32 %v2005
    %vm2007 = vcmask 130048
    %v2008 = vsel %vm2007, %v2006, -inf
    %2009 = vmax.xlane.f32.xlu0 %v2008
    %v2010 = vpop.xlane.xlu0 %2009
    %vm2011 = vcmp.eq.f32.partialorder %v2006, %v2010
    %v2012 = vsel %vm2011, %v2003, 16.0
    %v2013 = vsel %vm2007, %v2012, inf
    %2014 = vmin.xlane.f32.xlu0 %v2013
    %v2015 = vpop.xlane.xlu0 %2014
    %vm2016 = vcmp.eq.f32.partialorder %v2003, %v2015
    %v2017 = vsel %vm2016, 1, 0
    %v2018 = vcvt.s32.f32 %v2017
    %v2019 = vpack.c.bf16 %v2018, %v2018
    %v2020 = vpack.c.bf16 %v1057, %v1057
    %v2022 = vrot.slane %v2020, 3
    %2023 = vrot.lane.b32.xlu0 %v2022, 64
    %v2024 = vpop.permute.xlu0 %2023
    %v2033 = vunpack.c.l.b16 %v1966
    %v2034 = vunpack.c.h.b16 %v1966
    %v2035 = vunpack.c.l.b16 %v1967
    %v2036 = vunpack.c.h.b16 %v1967
    %v2037 = vunpack.c.l.b16 %v1968
    %v2038 = vunpack.c.h.b16 %v1968
    %v2039 = vunpack.c.l.b16 %v1969
    %v2040 = vunpack.c.h.b16 %v1969
    %v2041 = vunpack.c.l.b16 %v1970
    %v2042 = vunpack.c.h.b16 %v1970
    %v2043 = vunpack.c.l.b16 %v1971
    %v2044 = vunpack.c.h.b16 %v1971
    %v2045 = vunpack.c.l.b16 %v1972
    %v2046 = vunpack.c.h.b16 %v1972
    %v2047 = vunpack.c.l.b16 %v1973
    %v2048 = vunpack.c.h.b16 %v1973
    %v2049 = vpack.c.b16 %v2035, %v2033
    %v2050 = vpack.c.b16 %v2036, %v2034
    %v2051 = vpack.c.b16 %v2039, %v2037
    %v2052 = vpack.c.b16 %v2040, %v2038
    %v2053 = vpack.c.b16 %v2043, %v2041
    %v2054 = vpack.c.b16 %v2044, %v2042
    %v2055 = vpack.c.b16 %v2047, %v2045
    %v2056 = vpack.c.b16 %v2048, %v2046
    %v2066 = vsel %vm206, %v2024, 0
    %2068 = vmatpush.bf16.msra.mxu0 0
    %2069 = vmatpush.bf16.msra.mxu0 0
    %2070 = vmatpush.bf16.msra.mxu0 0
    %2071 = vmatpush.bf16.msra.mxu0 0
    %2072 = vmatpush.bf16.msra.mxu0 %v2055
    %2073 = vmatpush.bf16.msra.mxu0 %v2053
    %2074 = vmatpush.bf16.msra.mxu0 %v2051
    %2075 = vmatpush.bf16.msra.mxu0 %v2049
    %2076 = vmatmul.bf16.gmra.mxu0 %v2066
    %v2077 = vpop.f32.mrf.mxu0
    %v2078 = vadd.f32 0.0, %v2077
    %v2079 = vpop.f32.mrf.mxu0
    %2080 = vdwg.mxu0
    %2081 = vmatpush.bf16.msra.mxu0 0
    %2082 = vmatpush.bf16.msra.mxu0 0
    %2083 = vmatpush.bf16.msra.mxu0 0
    %2084 = vmatpush.bf16.msra.mxu0 0
    %2085 = vmatpush.bf16.msra.mxu0 %v2056
    %2086 = vmatpush.bf16.msra.mxu0 %v2054
    %2087 = vmatpush.bf16.msra.mxu0 %v2052
    %2088 = vmatpush.bf16.msra.mxu0 %v2050
    %2089 = vmatmul.bf16.gmra.mxu0 %v2066
    %v2090 = vpop.f32.mrf.mxu0
    %v2091 = vadd.f32 0.0, %v2090
    %v2092 = vpop.f32.mrf.mxu0
    %2093 = vdwg.mxu0
    %v2096 = vunpack.c.l.b16 %v1964
    %v2097 = vunpack.c.h.b16 %v1964
    %v2098 = vunpack.c.l.b16 %v1965
    %v2099 = vunpack.c.h.b16 %v1965
    %v2100 = vpack.c.b16 %v2098, %v2096
    %v2101 = vpack.c.b16 %v2099, %v2097
    %v2105 = vsel %vm2007, %v2019, 0
    %2107 = vmatpush.bf16.msra.mxu0 0
    %2108 = vmatpush.bf16.msra.mxu0 0
    %2109 = vmatpush.bf16.msra.mxu0 0
    %2110 = vmatpush.bf16.msra.mxu0 0
    %2111 = vmatpush.bf16.msra.mxu0 0
    %2112 = vmatpush.bf16.msra.mxu0 0
    %2113 = vmatpush.bf16.msra.mxu0 0
    %2114 = vmatpush.bf16.msra.mxu0 %v2100
    %2115 = vmatmul.bf16.gmra.mxu0 %v2105
    %v2116 = vpop.f32.mrf.mxu0
    %v2117 = vadd.f32 %v2078, %v2116
    %v2118 = vpop.f32.mrf.mxu0
    %2119 = vdwg.mxu0
    %2120 = vmatpush.bf16.msra.mxu0 0
    %2121 = vmatpush.bf16.msra.mxu0 0
    %2122 = vmatpush.bf16.msra.mxu0 0
    %2123 = vmatpush.bf16.msra.mxu0 0
    %2124 = vmatpush.bf16.msra.mxu0 0
    %2125 = vmatpush.bf16.msra.mxu0 0
    %2126 = vmatpush.bf16.msra.mxu0 0
    %2127 = vmatpush.bf16.msra.mxu0 %v2101
    %2128 = vmatmul.bf16.gmra.mxu0 %v2105
    %v2129 = vpop.f32.mrf.mxu0
    %v2130 = vadd.f32 %v2091, %v2129
    %v2131 = vpop.f32.mrf.mxu0
    %2132 = vdwg.mxu0
    %v2134 = vperm.slane %v1974, 0
    %v2135 = vperm.slane %v1974, 1
    %v2138 = vadd.f32 %v2117, %v2134
    %v2139 = vadd.f32 %v2130, %v2135
    %v2140 = vxor.u32 %v2138, 2147483648
    %v2141 = vmul.f32 %v2140, 1.442695
    %v2142 = vpow.pop %v2141
    %v2143 = vadd.f32 %v2142, 1.0
    %v2144 = vrcp.pop %v2143
    %v2145 = vmul.f32 %v2143, %v2144
    %v2146 = vsub.f32 1.0, %v2145
    %v2147 = vmul.f32 %v2144, %v2146
    %v2148 = vadd.f32 %v2144, %v2147
    %vm2149 = vweird.f32 %v2143
    %vm2150 = vweird.f32 %v2144
    %vm2151 = vmor %vm2149, %vm2150
    %v2152 = vsel %vm2151, %v2144, %v2148
    %v2153 = vand.u32 2147483647, %v2143
    %vm2154 = vcmp.eq.f32.partialorder %v2153, 8.507059e+37
    %v2155 = vand.u32 %v2143, 2147483648
    %v2156 = vor.u32 1.1754944e-38, %v2155
    %v2157 = vsel %vm2154, %v2156, %v2152
    %v2158 = vmul.f32 1.0, %v2157
    %v2159 = vtanh.pop %v2139
    %v2160 = vxor.u32 %v2139, 2147483648
    %v2161 = vmul.f32 %v2160, 1.442695
    %v2162 = vpow.pop %v2161
    %v2163 = vadd.f32 %v2162, 1.0
    %v2164 = vrcp.pop %v2163
    %v2165 = vmul.f32 %v2163, %v2164
    %v2166 = vsub.f32 1.0, %v2165
    %v2167 = vmul.f32 %v2164, %v2166
    %v2168 = vadd.f32 %v2164, %v2167
    %vm2169 = vweird.f32 %v2163
    %vm2170 = vweird.f32 %v2164
    %vm2171 = vmor %vm2169, %vm2170
    %v2172 = vsel %vm2171, %v2164, %v2168
    %v2173 = vand.u32 2147483647, %v2163
    %vm2174 = vcmp.eq.f32.partialorder %v2173, 8.507059e+37
    %v2175 = vand.u32 %v2163, 2147483648
    %v2176 = vor.u32 1.1754944e-38, %v2175
    %v2177 = vsel %vm2174, %v2176, %v2172
    %v2178 = vmul.f32 1.0, %v2177
    %v2180 = vrot.slane %v1055, 6
    %v2182 = vmul.f32 %v2158, %v2180
    %v2183 = vmul.f32 %v2158, %v2159
    %2185 = vrot.lane.b32.xlu0 %v2183, 64
    %v2186 = vpop.permute.xlu0 %2185
    %v2188 = vadd.f32 %v2182, %v2186
    %v2189 = vtanh.pop %v2188
    %v2190 = vmul.f32 %v2178, %v2189
    %v2191 = vpack.c.bf16 %v2190, %v2190
    %v2192 = vpack.c.bf16 %v1963, %v1963
    %v2194 = vrot.slane %v2192, 3
    %2195 = vrot.lane.b32.xlu0 %v2194, 64
    %v2196 = vpop.permute.xlu0 %2195
    %v2205 = vunpack.c.l.b16 %v1983
    %v2206 = vunpack.c.h.b16 %v1983
    %v2207 = vunpack.c.l.b16 %v1984
    %v2208 = vunpack.c.h.b16 %v1984
    %v2209 = vunpack.c.l.b16 %v1985
    %v2210 = vunpack.c.h.b16 %v1985
    %v2211 = vunpack.c.l.b16 %v1986
    %v2212 = vunpack.c.h.b16 %v1986
    %v2213 = vunpack.c.l.b16 %v1987
    %v2214 = vunpack.c.h.b16 %v1987
    %v2215 = vunpack.c.l.b16 %v1988
    %v2216 = vunpack.c.h.b16 %v1988
    %v2217 = vunpack.c.l.b16 %v1989
    %v2218 = vunpack.c.h.b16 %v1989
    %v2219 = vunpack.c.l.b16 %v1990
    %v2220 = vunpack.c.h.b16 %v1990
    %v2221 = vpack.c.b16 %v2207, %v2205
    %v2222 = vpack.c.b16 %v2208, %v2206
    %v2223 = vpack.c.b16 %v2211, %v2209
    %v2224 = vpack.c.b16 %v2212, %v2210
    %v2225 = vpack.c.b16 %v2215, %v2213
    %v2226 = vpack.c.b16 %v2216, %v2214
    %v2227 = vpack.c.b16 %v2219, %v2217
    %v2228 = vpack.c.b16 %v2220, %v2218
    %v2238 = vsel %vm206, %v2196, 0
    %2240 = vmatpush.bf16.msra.mxu0 0
    %2241 = vmatpush.bf16.msra.mxu0 0
    %2242 = vmatpush.bf16.msra.mxu0 0
    %2243 = vmatpush.bf16.msra.mxu0 0
    %2244 = vmatpush.bf16.msra.mxu0 %v2227
    %2245 = vmatpush.bf16.msra.mxu0 %v2225
    %2246 = vmatpush.bf16.msra.mxu0 %v2223
    %2247 = vmatpush.bf16.msra.mxu0 %v2221
    %2248 = vmatmul.bf16.gmra.mxu0 %v2238
    %v2249 = vpop.f32.mrf.mxu0
    %v2250 = vadd.f32 0.0, %v2249
    %v2251 = vpop.f32.mrf.mxu0
    %2252 = vdwg.mxu0
    %2253 = vmatpush.bf16.msra.mxu0 0
    %2254 = vmatpush.bf16.msra.mxu0 0
    %2255 = vmatpush.bf16.msra.mxu0 0
    %2256 = vmatpush.bf16.msra.mxu0 0
    %2257 = vmatpush.bf16.msra.mxu0 %v2228
    %2258 = vmatpush.bf16.msra.mxu0 %v2226
    %2259 = vmatpush.bf16.msra.mxu0 %v2224
    %2260 = vmatpush.bf16.msra.mxu0 %v2222
    %2261 = vmatmul.bf16.gmra.mxu0 %v2238
    %v2262 = vpop.f32.mrf.mxu0
    %v2263 = vadd.f32 0.0, %v2262
    %v2264 = vpop.f32.mrf.mxu0
    %2265 = vdwg.mxu0
    %2267 = vrot.lane.b32.xlu0 %v2191, 64
    %v2268 = vpop.permute.xlu0 %2267
    %v2277 = vunpack.c.l.b16 %v1975
    %v2278 = vunpack.c.h.b16 %v1975
    %v2279 = vunpack.c.l.b16 %v1976
    %v2280 = vunpack.c.h.b16 %v1976
    %v2281 = vunpack.c.l.b16 %v1977
    %v2282 = vunpack.c.h.b16 %v1977
    %v2283 = vunpack.c.l.b16 %v1978
    %v2284 = vunpack.c.h.b16 %v1978
    %v2285 = vunpack.c.l.b16 %v1979
    %v2286 = vunpack.c.h.b16 %v1979
    %v2287 = vunpack.c.l.b16 %v1980
    %v2288 = vunpack.c.h.b16 %v1980
    %v2289 = vunpack.c.l.b16 %v1981
    %v2290 = vunpack.c.h.b16 %v1981
    %v2291 = vunpack.c.l.b16 %v1982
    %v2292 = vunpack.c.h.b16 %v1982
    %v2293 = vpack.c.b16 %v2279, %v2277
    %v2294 = vpack.c.b16 %v2280, %v2278
    %v2295 = vpack.c.b16 %v2283, %v2281
    %v2296 = vpack.c.b16 %v2284, %v2282
    %v2297 = vpack.c.b16 %v2287, %v2285
    %v2298 = vpack.c.b16 %v2288, %v2286
    %v2299 = vpack.c.b16 %v2291, %v2289
    %v2300 = vpack.c.b16 %v2292, %v2290
    %v2310 = vsel %vm206, %v2268, 0
    %2312 = vmatpush.bf16.msra.mxu0 0
    %2313 = vmatpush.bf16.msra.mxu0 0
    %2314 = vmatpush.bf16.msra.mxu0 0
    %2315 = vmatpush.bf16.msra.mxu0 0
    %2316 = vmatpush.bf16.msra.mxu0 %v2299
    %2317 = vmatpush.bf16.msra.mxu0 %v2297
    %2318 = vmatpush.bf16.msra.mxu0 %v2295
    %2319 = vmatpush.bf16.msra.mxu0 %v2293
    %2320 = vmatmul.bf16.gmra.mxu0 %v2310
    %v2321 = vpop.f32.mrf.mxu0
    %v2322 = vadd.f32 %v2250, %v2321
    %v2323 = vpop.f32.mrf.mxu0
    %2324 = vdwg.mxu0
    %2325 = vmatpush.bf16.msra.mxu0 0
    %2326 = vmatpush.bf16.msra.mxu0 0
    %2327 = vmatpush.bf16.msra.mxu0 0
    %2328 = vmatpush.bf16.msra.mxu0 0
    %2329 = vmatpush.bf16.msra.mxu0 %v2300
    %2330 = vmatpush.bf16.msra.mxu0 %v2298
    %2331 = vmatpush.bf16.msra.mxu0 %v2296
    %2332 = vmatpush.bf16.msra.mxu0 %v2294
    %2333 = vmatmul.bf16.gmra.mxu0 %v2310
    %v2334 = vpop.f32.mrf.mxu0
    %v2335 = vadd.f32 %v2263, %v2334
    %v2336 = vpop.f32.mrf.mxu0
    %2337 = vdwg.mxu0
    %v2339 = vperm.slane %v1991, 0
    %v2340 = vperm.slane %v1991, 1
    %v2343 = vadd.f32 %v2322, %v2339
    %v2344 = vadd.f32 %v2335, %v2340
    %v2345 = vxor.u32 %v2343, 2147483648
    %v2346 = vmul.f32 %v2345, 1.442695
    %v2347 = vpow.pop %v2346
    %v2348 = vadd.f32 %v2347, 1.0
    %v2349 = vrcp.pop %v2348
    %v2350 = vmul.f32 %v2348, %v2349
    %v2351 = vsub.f32 1.0, %v2350
    %v2352 = vmul.f32 %v2349, %v2351
    %v2353 = vadd.f32 %v2349, %v2352
    %vm2354 = vweird.f32 %v2348
    %vm2355 = vweird.f32 %v2349
    %vm2356 = vmor %vm2354, %vm2355
    %v2357 = vsel %vm2356, %v2349, %v2353
    %v2358 = vand.u32 2147483647, %v2348
    %vm2359 = vcmp.eq.f32.partialorder %v2358, 8.507059e+37
    %v2360 = vand.u32 %v2348, 2147483648
    %v2361 = vor.u32 1.1754944e-38, %v2360
    %v2362 = vsel %vm2359, %v2361, %v2357
    %v2363 = vmul.f32 1.0, %v2362
    %v2364 = vtanh.pop %v2344
    %v2365 = vxor.u32 %v2344, 2147483648
    %v2366 = vmul.f32 %v2365, 1.442695
    %v2367 = vpow.pop %v2366
    %v2368 = vadd.f32 %v2367, 1.0
    %v2369 = vrcp.pop %v2368
    %v2370 = vmul.f32 %v2368, %v2369
    %v2371 = vsub.f32 1.0, %v2370
    %v2372 = vmul.f32 %v2369, %v2371
    %v2373 = vadd.f32 %v2369, %v2372
    %vm2374 = vweird.f32 %v2368
    %vm2375 = vweird.f32 %v2369
    %vm2376 = vmor %vm2374, %vm2375
    %v2377 = vsel %vm2376, %v2369, %v2373
    %v2378 = vand.u32 2147483647, %v2368
    %vm2379 = vcmp.eq.f32.partialorder %v2378, 8.507059e+37
    %v2380 = vand.u32 %v2368, 2147483648
    %v2381 = vor.u32 1.1754944e-38, %v2380
    %v2382 = vsel %vm2379, %v2381, %v2377
    %v2383 = vmul.f32 1.0, %v2382
    %v2385 = vrot.slane %v1961, 6
    %v2387 = vmul.f32 %v2363, %v2385
    %v2388 = vmul.f32 %v2363, %v2364
    %2390 = vrot.lane.b32.xlu0 %v2388, 64
    %v2391 = vpop.permute.xlu0 %2390
    %v2393 = vadd.f32 %v2387, %v2391
    %v2394 = vtanh.pop %v2393
    %v2395 = vmul.f32 %v2383, %v2394
    %v2396 = vpack.c.bf16 %v2395, %v2395
    %v2398 = vperm.slane %v2000, 0
    %2401 = vrot.lane.b32.xlu0 %v2396, 64
    %v2402 = vpop.permute.xlu0 %2401
    %v2411 = vunpack.c.l.b16 %v1992
    %v2412 = vunpack.c.l.b16 %v1993
    %v2413 = vunpack.c.l.b16 %v1994
    %v2414 = vunpack.c.l.b16 %v1995
    %v2415 = vunpack.c.l.b16 %v1996
    %v2416 = vunpack.c.l.b16 %v1997
    %v2417 = vunpack.c.l.b16 %v1998
    %v2418 = vunpack.c.l.b16 %v1999
    %v2419 = vpack.c.b16 %v2412, %v2411
    %v2420 = vpack.c.b16 %v2414, %v2413
    %v2421 = vpack.c.b16 %v2416, %v2415
    %v2422 = vpack.c.b16 %v2418, %v2417
    %v2428 = vsel %vm206, %v2402, 0
    %2430 = vmatpush.bf16.msra.mxu0 0
    %2431 = vmatpush.bf16.msra.mxu0 0
    %2432 = vmatpush.bf16.msra.mxu0 0
    %2433 = vmatpush.bf16.msra.mxu0 0
    %2434 = vmatpush.bf16.msra.mxu0 %v2422
    %2435 = vmatpush.bf16.msra.mxu0 %v2421
    %2436 = vmatpush.bf16.msra.mxu0 %v2420
    %2437 = vmatpush.bf16.msra.mxu0 %v2419
    %2438 = vmatmul.bf16.gmra.mxu0 %v2428
    %v2439 = vpop.f32.mrf.mxu0
    %v2440 = vadd.f32 %v2398, %v2439
    %v2441 = vpop.f32.mrf.mxu0
    %2442 = vdwg.mxu0
    %vm2443 = vcmask 123904
    %v2444 = vsel %vm2443, %v2440, -inf
    %2445 = vmax.xlane.f32.xlu0 %v2444
    %v2446 = vpop.xlane.xlu0 %2445
    %vm2447 = vcmp.eq.f32.partialorder %v2440, %v2446
    %v2448 = vsel %vm2447, %v2003, 16.0
    %v2449 = vsel %vm2443, %v2448, inf
    %2450 = vmin.xlane.f32.xlu0 %v2449
    %v2451 = vpop.xlane.xlu0 %2450
    %vm2452 = vcmp.eq.f32.partialorder %v2003, %v2451
    %v2453 = vsel %vm2452, 1, 0
    %v2454 = vcvt.s32.f32 %v2453
    %v2455 = vpack.c.bf16 %v2454, %v2454
    %2456 = vmatpush.bf16.msra.mxu0 0
    %2457 = vmatpush.bf16.msra.mxu0 0
    %2458 = vmatpush.bf16.msra.mxu0 0
    %2459 = vmatpush.bf16.msra.mxu0 0
    %2460 = vmatpush.bf16.msra.mxu0 %v2055
    %2461 = vmatpush.bf16.msra.mxu0 %v2053
    %2462 = vmatpush.bf16.msra.mxu0 %v2051
    %2463 = vmatpush.bf16.msra.mxu0 %v2049
    %2464 = vmatmul.bf16.gmra.mxu0 %v2310
    %v2465 = vpop.f32.mrf.mxu0
    %v2466 = vadd.f32 0.0, %v2465
    %v2467 = vpop.f32.mrf.mxu0
    %2468 = vdwg.mxu0
    %2469 = vmatpush.bf16.msra.mxu0 0
    %2470 = vmatpush.bf16.msra.mxu0 0
    %2471 = vmatpush.bf16.msra.mxu0 0
    %2472 = vmatpush.bf16.msra.mxu0 0
    %2473 = vmatpush.bf16.msra.mxu0 %v2056
    %2474 = vmatpush.bf16.msra.mxu0 %v2054
    %2475 = vmatpush.bf16.msra.mxu0 %v2052
    %2476 = vmatpush.bf16.msra.mxu0 %v2050
    %2477 = vmatmul.bf16.gmra.mxu0 %v2310
    %v2478 = vpop.f32.mrf.mxu0
    %v2479 = vadd.f32 0.0, %v2478
    %v2480 = vpop.f32.mrf.mxu0
    %2481 = vdwg.mxu0
    %v2483 = vsel %vm2007, %v2455, 0
    %2485 = vmatpush.bf16.msra.mxu0 0
    %2486 = vmatpush.bf16.msra.mxu0 0
    %2487 = vmatpush.bf16.msra.mxu0 0
    %2488 = vmatpush.bf16.msra.mxu0 0
    %2489 = vmatpush.bf16.msra.mxu0 0
    %2490 = vmatpush.bf16.msra.mxu0 0
    %2491 = vmatpush.bf16.msra.mxu0 0
    %2492 = vmatpush.bf16.msra.mxu0 %v2100
    %2493 = vmatmul.bf16.gmra.mxu0 %v2483
    %v2494 = vpop.f32.mrf.mxu0
    %v2495 = vadd.f32 %v2466, %v2494
    %v2496 = vpop.f32.mrf.mxu0
    %2497 = vdwg.mxu0
    %2498 = vmatpush.bf16.msra.mxu0 0
    %2499 = vmatpush.bf16.msra.mxu0 0
    %2500 = vmatpush.bf16.msra.mxu0 0
    %2501 = vmatpush.bf16.msra.mxu0 0
    %2502 = vmatpush.bf16.msra.mxu0 0
    %2503 = vmatpush.bf16.msra.mxu0 0
    %2504 = vmatpush.bf16.msra.mxu0 0
    %2505 = vmatpush.bf16.msra.mxu0 %v2101
    %2506 = vmatmul.bf16.gmra.mxu0 %v2483
    %v2507 = vpop.f32.mrf.mxu0
    %v2508 = vadd.f32 %v2479, %v2507
    %v2509 = vpop.f32.mrf.mxu0
    %2510 = vdwg.mxu0
    %v2511 = vadd.f32 %v2495, %v2134
    %v2512 = vadd.f32 %v2508, %v2135
    %v2513 = vxor.u32 %v2511, 2147483648
    %v2514 = vmul.f32 %v2513, 1.442695
    %v2515 = vpow.pop %v2514
    %v2516 = vadd.f32 %v2515, 1.0
    %v2517 = vrcp.pop %v2516
    %v2518 = vmul.f32 %v2516, %v2517
    %v2519 = vsub.f32 1.0, %v2518
    %v2520 = vmul.f32 %v2517, %v2519
    %v2521 = vadd.f32 %v2517, %v2520
    %vm2522 = vweird.f32 %v2516
    %vm2523 = vweird.f32 %v2517
    %vm2524 = vmor %vm2522, %vm2523
    %v2525 = vsel %vm2524, %v2517, %v2521
    %v2526 = vand.u32 2147483647, %v2516
    %vm2527 = vcmp.eq.f32.partialorder %v2526, 8.507059e+37
    %v2528 = vand.u32 %v2516, 2147483648
    %v2529 = vor.u32 1.1754944e-38, %v2528
    %v2530 = vsel %vm2527, %v2529, %v2525
    %v2531 = vmul.f32 1.0, %v2530
    %v2532 = vtanh.pop %v2512
    %v2533 = vxor.u32 %v2512, 2147483648
    %v2534 = vmul.f32 %v2533, 1.442695
    %v2535 = vpow.pop %v2534
    %v2536 = vadd.f32 %v2535, 1.0
    %v2537 = vrcp.pop %v2536
    %v2538 = vmul.f32 %v2536, %v2537
    %v2539 = vsub.f32 1.0, %v2538
    %v2540 = vmul.f32 %v2537, %v2539
    %v2541 = vadd.f32 %v2537, %v2540
    %vm2542 = vweird.f32 %v2536
    %vm2543 = vweird.f32 %v2537
    %vm2544 = vmor %vm2542, %vm2543
    %v2545 = vsel %vm2544, %v2537, %v2541
    %v2546 = vand.u32 2147483647, %v2536
    %vm2547 = vcmp.eq.f32.partialorder %v2546, 8.507059e+37
    %v2548 = vand.u32 %v2536, 2147483648
    %v2549 = vor.u32 1.1754944e-38, %v2548
    %v2550 = vsel %vm2547, %v2549, %v2545
    %v2551 = vmul.f32 1.0, %v2550
    %v2552 = vmul.f32 %v2531, %v2188
    %v2553 = vmul.f32 %v2531, %v2532
    %2555 = vrot.lane.b32.xlu0 %v2553, 64
    %v2556 = vpop.permute.xlu0 %2555
    %v2558 = vadd.f32 %v2552, %v2556
    %v2559 = vtanh.pop %v2558
    %v2560 = vmul.f32 %v2551, %v2559
    %v2561 = vpack.c.bf16 %v2560, %v2560
    %2562 = vmatpush.bf16.msra.mxu0 0
    %2563 = vmatpush.bf16.msra.mxu0 0
    %2564 = vmatpush.bf16.msra.mxu0 0
    %2565 = vmatpush.bf16.msra.mxu0 0
    %2566 = vmatpush.bf16.msra.mxu0 %v2227
    %2567 = vmatpush.bf16.msra.mxu0 %v2225
    %2568 = vmatpush.bf16.msra.mxu0 %v2223
    %2569 = vmatpush.bf16.msra.mxu0 %v2221
    %2570 = vmatmul.bf16.gmra.mxu0 %v2428
    %v2571 = vpop.f32.mrf.mxu0
    %v2572 = vadd.f32 0.0, %v2571
    %v2573 = vpop.f32.mrf.mxu0
    %2574 = vdwg.mxu0
    %2575 = vmatpush.bf16.msra.mxu0 0
    %2576 = vmatpush.bf16.msra.mxu0 0
    %2577 = vmatpush.bf16.msra.mxu0 0
    %2578 = vmatpush.bf16.msra.mxu0 0
    %2579 = vmatpush.bf16.msra.mxu0 %v2228
    %2580 = vmatpush.bf16.msra.mxu0 %v2226
    %2581 = vmatpush.bf16.msra.mxu0 %v2224
    %2582 = vmatpush.bf16.msra.mxu0 %v2222
    %2583 = vmatmul.bf16.gmra.mxu0 %v2428
    %v2584 = vpop.f32.mrf.mxu0
    %v2585 = vadd.f32 0.0, %v2584
    %v2586 = vpop.f32.mrf.mxu0
    %2587 = vdwg.mxu0
    %2589 = vrot.lane.b32.xlu0 %v2561, 64
    %v2590 = vpop.permute.xlu0 %2589
    %v2592 = vsel %vm206, %v2590, 0
    %2594 = vmatpush.bf16.msra.mxu0 0
    %2595 = vmatpush.bf16.msra.mxu0 0
    %2596 = vmatpush.bf16.msra.mxu0 0
    %2597 = vmatpush.bf16.msra.mxu0 0
    %2598 = vmatpush.bf16.msra.mxu0 %v2299
    %2599 = vmatpush.bf16.msra.mxu0 %v2297
    %2600 = vmatpush.bf16.msra.mxu0 %v2295
    %2601 = vmatpush.bf16.msra.mxu0 %v2293
    %2602 = vmatmul.bf16.gmra.mxu0 %v2592
    %v2603 = vpop.f32.mrf.mxu0
    %v2604 = vadd.f32 %v2572, %v2603
    %v2605 = vpop.f32.mrf.mxu0
    %2606 = vdwg.mxu0
    %2607 = vmatpush.bf16.msra.mxu0 0
    %2608 = vmatpush.bf16.msra.mxu0 0
    %2609 = vmatpush.bf16.msra.mxu0 0
    %2610 = vmatpush.bf16.msra.mxu0 0
    %2611 = vmatpush.bf16.msra.mxu0 %v2300
    %2612 = vmatpush.bf16.msra.mxu0 %v2298
    %2613 = vmatpush.bf16.msra.mxu0 %v2296
    %2614 = vmatpush.bf16.msra.mxu0 %v2294
    %2615 = vmatmul.bf16.gmra.mxu0 %v2592
    %v2616 = vpop.f32.mrf.mxu0
    %v2617 = vadd.f32 %v2585, %v2616
    %v2618 = vpop.f32.mrf.mxu0
    %2619 = vdwg.mxu0
    %v2620 = vadd.f32 %v2604, %v2339
    %v2621 = vadd.f32 %v2617, %v2340
    %v2622 = vxor.u32 %v2620, 2147483648
    %v2623 = vmul.f32 %v2622, 1.442695
    %v2624 = vpow.pop %v2623
    %v2625 = vadd.f32 %v2624, 1.0
    %v2626 = vrcp.pop %v2625
    %v2627 = vmul.f32 %v2625, %v2626
    %v2628 = vsub.f32 1.0, %v2627
    %v2629 = vmul.f32 %v2626, %v2628
    %v2630 = vadd.f32 %v2626, %v2629
    %vm2631 = vweird.f32 %v2625
    %vm2632 = vweird.f32 %v2626
    %vm2633 = vmor %vm2631, %vm2632
    %v2634 = vsel %vm2633, %v2626, %v2630
    %v2635 = vand.u32 2147483647, %v2625
    %vm2636 = vcmp.eq.f32.partialorder %v2635, 8.507059e+37
    %v2637 = vand.u32 %v2625, 2147483648
    %v2638 = vor.u32 1.1754944e-38, %v2637
    %v2639 = vsel %vm2636, %v2638, %v2634
    %v2640 = vmul.f32 1.0, %v2639
    %v2641 = vtanh.pop %v2621
    %v2642 = vxor.u32 %v2621, 2147483648
    %v2643 = vmul.f32 %v2642, 1.442695
    %v2644 = vpow.pop %v2643
    %v2645 = vadd.f32 %v2644, 1.0
    %v2646 = vrcp.pop %v2645
    %v2647 = vmul.f32 %v2645, %v2646
    %v2648 = vsub.f32 1.0, %v2647
    %v2649 = vmul.f32 %v2646, %v2648
    %v2650 = vadd.f32 %v2646, %v2649
    %vm2651 = vweird.f32 %v2645
    %vm2652 = vweird.f32 %v2646
    %vm2653 = vmor %vm2651, %vm2652
    %v2654 = vsel %vm2653, %v2646, %v2650
    %v2655 = vand.u32 2147483647, %v2645
    %vm2656 = vcmp.eq.f32.partialorder %v2655, 8.507059e+37
    %v2657 = vand.u32 %v2645, 2147483648
    %v2658 = vor.u32 1.1754944e-38, %v2657
    %v2659 = vsel %vm2656, %v2658, %v2654
    %v2660 = vmul.f32 1.0, %v2659
    %v2661 = vmul.f32 %v2640, %v2393
    %v2662 = vmul.f32 %v2640, %v2641
    %2664 = vrot.lane.b32.xlu0 %v2662, 64
    %v2665 = vpop.permute.xlu0 %2664
    %v2667 = vadd.f32 %v2661, %v2665
    %v2668 = vtanh.pop %v2667
    %v2669 = vmul.f32 %v2660, %v2668
    %v2670 = vpack.c.bf16 %v2669, %v2669
    %2672 = vrot.lane.b32.xlu0 %v2670, 64
    %v2673 = vpop.permute.xlu0 %2672
    %v2675 = vsel %vm206, %v2673, 0
    %2677 = vmatpush.bf16.msra.mxu0 0
    %2678 = vmatpush.bf16.msra.mxu0 0
    %2679 = vmatpush.bf16.msra.mxu0 0
    %2680 = vmatpush.bf16.msra.mxu0 0
    %2681 = vmatpush.bf16.msra.mxu0 %v2422
    %2682 = vmatpush.bf16.msra.mxu0 %v2421
    %2683 = vmatpush.bf16.msra.mxu0 %v2420
    %2684 = vmatpush.bf16.msra.mxu0 %v2419
    %2685 = vmatmul.bf16.gmra.mxu0 %v2675
    %v2686 = vpop.f32.mrf.mxu0
    %v2687 = vadd.f32 %v2398, %v2686
    %v2688 = vpop.f32.mrf.mxu0
    %2689 = vdwg.mxu0
    %v2690 = vsel %vm2443, %v2687, -inf
    %2691 = vmax.xlane.f32.xlu0 %v2690
    %v2692 = vpop.xlane.xlu0 %2691
    %vm2693 = vcmp.eq.f32.partialorder %v2687, %v2692
    %v2694 = vsel %vm2693, %v2003, 16.0
    %v2695 = vsel %vm2443, %v2694, inf
    %2696 = vmin.xlane.f32.xlu0 %v2695
    %v2697 = vpop.xlane.xlu0 %2696
    %vm2698 = vcmp.eq.f32.partialorder %v2003, %v2697
    %v2699 = vsel %vm2698, 1, 0
    %v2700 = vcvt.s32.f32 %v2699
    %v2701 = vpack.c.bf16 %v2700, %v2700
    %2702 = vmatpush.bf16.msra.mxu0 0
    %2703 = vmatpush.bf16.msra.mxu0 0
    %2704 = vmatpush.bf16.msra.mxu0 0
    %2705 = vmatpush.bf16.msra.mxu0 0
    %2706 = vmatpush.bf16.msra.mxu0 %v2055
    %2707 = vmatpush.bf16.msra.mxu0 %v2053
    %2708 = vmatpush.bf16.msra.mxu0 %v2051
    %2709 = vmatpush.bf16.msra.mxu0 %v2049
    %2710 = vmatmul.bf16.gmra.mxu0 %v2592
    %v2711 = vpop.f32.mrf.mxu0
    %v2712 = vadd.f32 0.0, %v2711
    %v2713 = vpop.f32.mrf.mxu0
    %2714 = vdwg.mxu0
    %2715 = vmatpush.bf16.msra.mxu0 0
    %2716 = vmatpush.bf16.msra.mxu0 0
    %2717 = vmatpush.bf16.msra.mxu0 0
    %2718 = vmatpush.bf16.msra.mxu0 0
    %2719 = vmatpush.bf16.msra.mxu0 %v2056
    %2720 = vmatpush.bf16.msra.mxu0 %v2054
    %2721 = vmatpush.bf16.msra.mxu0 %v2052
    %2722 = vmatpush.bf16.msra.mxu0 %v2050
    %2723 = vmatmul.bf16.gmra.mxu0 %v2592
    %v2724 = vpop.f32.mrf.mxu0
    %v2725 = vadd.f32 0.0, %v2724
    %v2726 = vpop.f32.mrf.mxu0
    %2727 = vdwg.mxu0
    %v2729 = vsel %vm2007, %v2701, 0
    %2731 = vmatpush.bf16.msra.mxu0 0
    %2732 = vmatpush.bf16.msra.mxu0 0
    %2733 = vmatpush.bf16.msra.mxu0 0
    %2734 = vmatpush.bf16.msra.mxu0 0
    %2735 = vmatpush.bf16.msra.mxu0 0
    %2736 = vmatpush.bf16.msra.mxu0 0
    %2737 = vmatpush.bf16.msra.mxu0 0
    %2738 = vmatpush.bf16.msra.mxu0 %v2100
    %2739 = vmatmul.bf16.gmra.mxu0 %v2729
    %v2740 = vpop.f32.mrf.mxu0
    %v2741 = vadd.f32 %v2712, %v2740
    %v2742 = vpop.f32.mrf.mxu0
    %2743 = vdwg.mxu0
    %2744 = vmatpush.bf16.msra.mxu0 0
    %2745 = vmatpush.bf16.msra.mxu0 0
    %2746 = vmatpush.bf16.msra.mxu0 0
    %2747 = vmatpush.bf16.msra.mxu0 0
    %2748 = vmatpush.bf16.msra.mxu0 0
    %2749 = vmatpush.bf16.msra.mxu0 0
    %2750 = vmatpush.bf16.msra.mxu0 0
    %2751 = vmatpush.bf16.msra.mxu0 %v2101
    %2752 = vmatmul.bf16.gmra.mxu0 %v2729
    %v2753 = vpop.f32.mrf.mxu0
    %v2754 = vadd.f32 %v2725, %v2753
    %v2755 = vpop.f32.mrf.mxu0
    %2756 = vdwg.mxu0
    %v2757 = vadd.f32 %v2741, %v2134
    %v2758 = vadd.f32 %v2754, %v2135
    %v2759 = vxor.u32 %v2757, 2147483648
    %v2760 = vmul.f32 %v2759, 1.442695
    %v2761 = vpow.pop %v2760
    %v2762 = vadd.f32 %v2761, 1.0
    %v2763 = vrcp.pop %v2762
    %v2764 = vmul.f32 %v2762, %v2763
    %v2765 = vsub.f32 1.0, %v2764
    %v2766 = vmul.f32 %v2763, %v2765
    %v2767 = vadd.f32 %v2763, %v2766
    %vm2768 = vweird.f32 %v2762
    %vm2769 = vweird.f32 %v2763
    %vm2770 = vmor %vm2768, %vm2769
    %v2771 = vsel %vm2770, %v2763, %v2767
    %v2772 = vand.u32 2147483647, %v2762
    %vm2773 = vcmp.eq.f32.partialorder %v2772, 8.507059e+37
    %v2774 = vand.u32 %v2762, 2147483648
    %v2775 = vor.u32 1.1754944e-38, %v2774
    %v2776 = vsel %vm2773, %v2775, %v2771
    %v2777 = vmul.f32 1.0, %v2776
    %v2778 = vtanh.pop %v2758
    %v2779 = vxor.u32 %v2758, 2147483648
    %v2780 = vmul.f32 %v2779, 1.442695
    %v2781 = vpow.pop %v2780
    %v2782 = vadd.f32 %v2781, 1.0
    %v2783 = vrcp.pop %v2782
    %v2784 = vmul.f32 %v2782, %v2783
    %v2785 = vsub.f32 1.0, %v2784
    %v2786 = vmul.f32 %v2783, %v2785
    %v2787 = vadd.f32 %v2783, %v2786
    %vm2788 = vweird.f32 %v2782
    %vm2789 = vweird.f32 %v2783
    %vm2790 = vmor %vm2788, %vm2789
    %v2791 = vsel %vm2790, %v2783, %v2787
    %v2792 = vand.u32 2147483647, %v2782
    %vm2793 = vcmp.eq.f32.partialorder %v2792, 8.507059e+37
    %v2794 = vand.u32 %v2782, 2147483648
    %v2795 = vor.u32 1.1754944e-38, %v2794
    %v2796 = vsel %vm2793, %v2795, %v2791
    %v2797 = vmul.f32 1.0, %v2796
    %v2798 = vmul.f32 %v2777, %v2558
    %v2799 = vmul.f32 %v2777, %v2778
    %2801 = vrot.lane.b32.xlu0 %v2799, 64
    %v2802 = vpop.permute.xlu0 %2801
    %v2804 = vadd.f32 %v2798, %v2802
    %v2805 = vtanh.pop %v2804
    %v2806 = vmul.f32 %v2797, %v2805
    %v2807 = vpack.c.bf16 %v2806, %v2806
    %2808 = vmatpush.bf16.msra.mxu0 0
    %2809 = vmatpush.bf16.msra.mxu0 0
    %2810 = vmatpush.bf16.msra.mxu0 0
    %2811 = vmatpush.bf16.msra.mxu0 0
    %2812 = vmatpush.bf16.msra.mxu0 %v2227
    %2813 = vmatpush.bf16.msra.mxu0 %v2225
    %2814 = vmatpush.bf16.msra.mxu0 %v2223
    %2815 = vmatpush.bf16.msra.mxu0 %v2221
    %2816 = vmatmul.bf16.gmra.mxu0 %v2675
    %v2817 = vpop.f32.mrf.mxu0
    %v2818 = vadd.f32 0.0, %v2817
    %v2819 = vpop.f32.mrf.mxu0
    %2820 = vdwg.mxu0
    %2821 = vmatpush.bf16.msra.mxu0 0
    %2822 = vmatpush.bf16.msra.mxu0 0
    %2823 = vmatpush.bf16.msra.mxu0 0
    %2824 = vmatpush.bf16.msra.mxu0 0
    %2825 = vmatpush.bf16.msra.mxu0 %v2228
    %2826 = vmatpush.bf16.msra.mxu0 %v2226
    %2827 = vmatpush.bf16.msra.mxu0 %v2224
    %2828 = vmatpush.bf16.msra.mxu0 %v2222
    %2829 = vmatmul.bf16.gmra.mxu0 %v2675
    %v2830 = vpop.f32.mrf.mxu0
    %v2831 = vadd.f32 0.0, %v2830
    %v2832 = vpop.f32.mrf.mxu0
    %2833 = vdwg.mxu0
    %2835 = vrot.lane.b32.xlu0 %v2807, 64
    %v2836 = vpop.permute.xlu0 %2835
    %v2838 = vsel %vm206, %v2836, 0
    %2840 = vmatpush.bf16.msra.mxu0 0
    %2841 = vmatpush.bf16.msra.mxu0 0
    %2842 = vmatpush.bf16.msra.mxu0 0
    %2843 = vmatpush.bf16.msra.mxu0 0
    %2844 = vmatpush.bf16.msra.mxu0 %v2299
    %2845 = vmatpush.bf16.msra.mxu0 %v2297
    %2846 = vmatpush.bf16.msra.mxu0 %v2295
    %2847 = vmatpush.bf16.msra.mxu0 %v2293
    %2848 = vmatmul.bf16.gmra.mxu0 %v2838
    %v2849 = vpop.f32.mrf.mxu0
    %v2850 = vadd.f32 %v2818, %v2849
    %v2851 = vpop.f32.mrf.mxu0
    %2852 = vdwg.mxu0
    %2853 = vmatpush.bf16.msra.mxu0 0
    %2854 = vmatpush.bf16.msra.mxu0 0
    %2855 = vmatpush.bf16.msra.mxu0 0
    %2856 = vmatpush.bf16.msra.mxu0 0
    %2857 = vmatpush.bf16.msra.mxu0 %v2300
    %2858 = vmatpush.bf16.msra.mxu0 %v2298
    %2859 = vmatpush.bf16.msra.mxu0 %v2296
    %2860 = vmatpush.bf16.msra.mxu0 %v2294
    %2861 = vmatmul.bf16.gmra.mxu0 %v2838
    %v2862 = vpop.f32.mrf.mxu0
    %v2863 = vadd.f32 %v2831, %v2862
    %v2864 = vpop.f32.mrf.mxu0
    %2865 = vdwg.mxu0
    %v2866 = vadd.f32 %v2850, %v2339
    %v2867 = vadd.f32 %v2863, %v2340
    %v2868 = vxor.u32 %v2866, 2147483648
    %v2869 = vmul.f32 %v2868, 1.442695
    %v2870 = vpow.pop %v2869
    %v2871 = vadd.f32 %v2870, 1.0
    %v2872 = vrcp.pop %v2871
    %v2873 = vmul.f32 %v2871, %v2872
    %v2874 = vsub.f32 1.0, %v2873
    %v2875 = vmul.f32 %v2872, %v2874
    %v2876 = vadd.f32 %v2872, %v2875
    %vm2877 = vweird.f32 %v2871
    %vm2878 = vweird.f32 %v2872
    %vm2879 = vmor %vm2877, %vm2878
    %v2880 = vsel %vm2879, %v2872, %v2876
    %v2881 = vand.u32 2147483647, %v2871
    %vm2882 = vcmp.eq.f32.partialorder %v2881, 8.507059e+37
    %v2883 = vand.u32 %v2871, 2147483648
    %v2884 = vor.u32 1.1754944e-38, %v2883
    %v2885 = vsel %vm2882, %v2884, %v2880
    %v2886 = vmul.f32 1.0, %v2885
    %v2887 = vtanh.pop %v2867
    %v2888 = vxor.u32 %v2867, 2147483648
    %v2889 = vmul.f32 %v2888, 1.442695
    %v2890 = vpow.pop %v2889
    %v2891 = vadd.f32 %v2890, 1.0
    %v2892 = vrcp.pop %v2891
    %v2893 = vmul.f32 %v2891, %v2892
    %v2894 = vsub.f32 1.0, %v2893
    %v2895 = vmul.f32 %v2892, %v2894
    %v2896 = vadd.f32 %v2892, %v2895
    %vm2897 = vweird.f32 %v2891
    %vm2898 = vweird.f32 %v2892
    %vm2899 = vmor %vm2897, %vm2898
    %v2900 = vsel %vm2899, %v2892, %v2896
    %v2901 = vand.u32 2147483647, %v2891
    %vm2902 = vcmp.eq.f32.partialorder %v2901, 8.507059e+37
    %v2903 = vand.u32 %v2891, 2147483648
    %v2904 = vor.u32 1.1754944e-38, %v2903
    %v2905 = vsel %vm2902, %v2904, %v2900
    %v2906 = vmul.f32 1.0, %v2905
    %v2907 = vmul.f32 %v2886, %v2667
    %v2908 = vmul.f32 %v2886, %v2887
    %2910 = vrot.lane.b32.xlu0 %v2908, 64
    %v2911 = vpop.permute.xlu0 %2910
    %v2913 = vadd.f32 %v2907, %v2911
    %v2914 = vtanh.pop %v2913
    %v2915 = vmul.f32 %v2906, %v2914
    %v2916 = vpack.c.bf16 %v2915, %v2915
    %2918 = vrot.lane.b32.xlu0 %v2916, 64
    %v2919 = vpop.permute.xlu0 %2918
    %v2921 = vsel %vm206, %v2919, 0
    %2923 = vmatpush.bf16.msra.mxu0 0
    %2924 = vmatpush.bf16.msra.mxu0 0
    %2925 = vmatpush.bf16.msra.mxu0 0
    %2926 = vmatpush.bf16.msra.mxu0 0
    %2927 = vmatpush.bf16.msra.mxu0 %v2422
    %2928 = vmatpush.bf16.msra.mxu0 %v2421
    %2929 = vmatpush.bf16.msra.mxu0 %v2420
    %2930 = vmatpush.bf16.msra.mxu0 %v2419
    %2931 = vmatmul.bf16.gmra.mxu0 %v2921
    %v2932 = vpop.f32.mrf.mxu0
    %v2933 = vadd.f32 %v2398, %v2932
    %v2934 = vpop.f32.mrf.mxu0
    %2935 = vdwg.mxu0
    %v2936 = vsel %vm2443, %v2933, -inf
    %2937 = vmax.xlane.f32.xlu0 %v2936
    %v2938 = vpop.xlane.xlu0 %2937
    %vm2939 = vcmp.eq.f32.partialorder %v2933, %v2938
    %v2940 = vsel %vm2939, %v2003, 16.0
    %v2941 = vsel %vm2443, %v2940, inf
    %2942 = vmin.xlane.f32.xlu0 %v2941
    %v2943 = vpop.xlane.xlu0 %2942
    %vm2944 = vcmp.eq.f32.partialorder %v2003, %v2943
    %v2945 = vsel %vm2944, 1, 0
    %v2946 = vcvt.s32.f32 %v2945
    %v2947 = vpack.c.bf16 %v2946, %v2946
    %2948 = vmatpush.bf16.msra.mxu0 0
    %2949 = vmatpush.bf16.msra.mxu0 0
    %2950 = vmatpush.bf16.msra.mxu0 0
    %2951 = vmatpush.bf16.msra.mxu0 0
    %2952 = vmatpush.bf16.msra.mxu0 %v2055
    %2953 = vmatpush.bf16.msra.mxu0 %v2053
    %2954 = vmatpush.bf16.msra.mxu0 %v2051
    %2955 = vmatpush.bf16.msra.mxu0 %v2049
    %2956 = vmatmul.bf16.gmra.mxu0 %v2838
    %v2957 = vpop.f32.mrf.mxu0
    %v2958 = vadd.f32 0.0, %v2957
    %v2959 = vpop.f32.mrf.mxu0
    %2960 = vdwg.mxu0
    %2961 = vmatpush.bf16.msra.mxu0 0
    %2962 = vmatpush.bf16.msra.mxu0 0
    %2963 = vmatpush.bf16.msra.mxu0 0
    %2964 = vmatpush.bf16.msra.mxu0 0
    %2965 = vmatpush.bf16.msra.mxu0 %v2056
    %2966 = vmatpush.bf16.msra.mxu0 %v2054
    %2967 = vmatpush.bf16.msra.mxu0 %v2052
    %2968 = vmatpush.bf16.msra.mxu0 %v2050
    %2969 = vmatmul.bf16.gmra.mxu0 %v2838
    %v2970 = vpop.f32.mrf.mxu0
    %v2971 = vadd.f32 0.0, %v2970
    %v2972 = vpop.f32.mrf.mxu0
    %2973 = vdwg.mxu0
    %v2975 = vsel %vm2007, %v2947, 0
    %2977 = vmatpush.bf16.msra.mxu0 0
    %2978 = vmatpush.bf16.msra.mxu0 0
    %2979 = vmatpush.bf16.msra.mxu0 0
    %2980 = vmatpush.bf16.msra.mxu0 0
    %2981 = vmatpush.bf16.msra.mxu0 0
    %2982 = vmatpush.bf16.msra.mxu0 0
    %2983 = vmatpush.bf16.msra.mxu0 0
    %2984 = vmatpush.bf16.msra.mxu0 %v2100
    %2985 = vmatmul.bf16.gmra.mxu0 %v2975
    %v2986 = vpop.f32.mrf.mxu0
    %v2987 = vadd.f32 %v2958, %v2986
    %v2988 = vpop.f32.mrf.mxu0
    %2989 = vdwg.mxu0
    %2990 = vmatpush.bf16.msra.mxu0 0
    %2991 = vmatpush.bf16.msra.mxu0 0
    %2992 = vmatpush.bf16.msra.mxu0 0
    %2993 = vmatpush.bf16.msra.mxu0 0
    %2994 = vmatpush.bf16.msra.mxu0 0
    %2995 = vmatpush.bf16.msra.mxu0 0
    %2996 = vmatpush.bf16.msra.mxu0 0
    %2997 = vmatpush.bf16.msra.mxu0 %v2101
    %2998 = vmatmul.bf16.gmra.mxu0 %v2975
    %v2999 = vpop.f32.mrf.mxu0
    %v3000 = vadd.f32 %v2971, %v2999
    %v3001 = vpop.f32.mrf.mxu0
    %3002 = vdwg.mxu0
    %v3003 = vadd.f32 %v2987, %v2134
    %v3004 = vadd.f32 %v3000, %v2135
    %v3005 = vxor.u32 %v3003, 2147483648
    %v3006 = vmul.f32 %v3005, 1.442695
    %v3007 = vpow.pop %v3006
    %v3008 = vadd.f32 %v3007, 1.0
    %v3009 = vrcp.pop %v3008
    %v3010 = vmul.f32 %v3008, %v3009
    %v3011 = vsub.f32 1.0, %v3010
    %v3012 = vmul.f32 %v3009, %v3011
    %v3013 = vadd.f32 %v3009, %v3012
    %vm3014 = vweird.f32 %v3008
    %vm3015 = vweird.f32 %v3009
    %vm3016 = vmor %vm3014, %vm3015
    %v3017 = vsel %vm3016, %v3009, %v3013
    %v3018 = vand.u32 2147483647, %v3008
    %vm3019 = vcmp.eq.f32.partialorder %v3018, 8.507059e+37
    %v3020 = vand.u32 %v3008, 2147483648
    %v3021 = vor.u32 1.1754944e-38, %v3020
    %v3022 = vsel %vm3019, %v3021, %v3017
    %v3023 = vmul.f32 1.0, %v3022
    %v3024 = vtanh.pop %v3004
    %v3025 = vxor.u32 %v3004, 2147483648
    %v3026 = vmul.f32 %v3025, 1.442695
    %v3027 = vpow.pop %v3026
    %v3028 = vadd.f32 %v3027, 1.0
    %v3029 = vrcp.pop %v3028
    %v3030 = vmul.f32 %v3028, %v3029
    %v3031 = vsub.f32 1.0, %v3030
    %v3032 = vmul.f32 %v3029, %v3031
    %v3033 = vadd.f32 %v3029, %v3032
    %vm3034 = vweird.f32 %v3028
    %vm3035 = vweird.f32 %v3029
    %vm3036 = vmor %vm3034, %vm3035
    %v3037 = vsel %vm3036, %v3029, %v3033
    %v3038 = vand.u32 2147483647, %v3028
    %vm3039 = vcmp.eq.f32.partialorder %v3038, 8.507059e+37
    %v3040 = vand.u32 %v3028, 2147483648
    %v3041 = vor.u32 1.1754944e-38, %v3040
    %v3042 = vsel %vm3039, %v3041, %v3037
    %v3043 = vmul.f32 1.0, %v3042
    %v3044 = vmul.f32 %v3023, %v2804
    %v3045 = vmul.f32 %v3023, %v3024
    %3047 = vrot.lane.b32.xlu0 %v3045, 64
    %v3048 = vpop.permute.xlu0 %3047
    %v3050 = vadd.f32 %v3044, %v3048
    %v3051 = vtanh.pop %v3050
    %v3052 = vmul.f32 %v3043, %v3051
    %v3053 = vpack.c.bf16 %v3052, %v3052
    %3054 = vmatpush.bf16.msra.mxu0 0
    %3055 = vmatpush.bf16.msra.mxu0 0
    %3056 = vmatpush.bf16.msra.mxu0 0
    %3057 = vmatpush.bf16.msra.mxu0 0
    %3058 = vmatpush.bf16.msra.mxu0 %v2227
    %3059 = vmatpush.bf16.msra.mxu0 %v2225
    %3060 = vmatpush.bf16.msra.mxu0 %v2223
    %3061 = vmatpush.bf16.msra.mxu0 %v2221
    %3062 = vmatmul.bf16.gmra.mxu0 %v2921
    %v3063 = vpop.f32.mrf.mxu0
    %v3064 = vadd.f32 0.0, %v3063
    %v3065 = vpop.f32.mrf.mxu0
    %3066 = vdwg.mxu0
    %3067 = vmatpush.bf16.msra.mxu0 0
    %3068 = vmatpush.bf16.msra.mxu0 0
    %3069 = vmatpush.bf16.msra.mxu0 0
    %3070 = vmatpush.bf16.msra.mxu0 0
    %3071 = vmatpush.bf16.msra.mxu0 %v2228
    %3072 = vmatpush.bf16.msra.mxu0 %v2226
    %3073 = vmatpush.bf16.msra.mxu0 %v2224
    %3074 = vmatpush.bf16.msra.mxu0 %v2222
    %3075 = vmatmul.bf16.gmra.mxu0 %v2921
    %v3076 = vpop.f32.mrf.mxu0
    %v3077 = vadd.f32 0.0, %v3076
    %v3078 = vpop.f32.mrf.mxu0
    %3079 = vdwg.mxu0
    %3081 = vrot.lane.b32.xlu0 %v3053, 64
    %v3082 = vpop.permute.xlu0 %3081
    %v3084 = vsel %vm206, %v3082, 0
    %3086 = vmatpush.bf16.msra.mxu0 0
    %3087 = vmatpush.bf16.msra.mxu0 0
    %3088 = vmatpush.bf16.msra.mxu0 0
    %3089 = vmatpush.bf16.msra.mxu0 0
    %3090 = vmatpush.bf16.msra.mxu0 %v2299
    %3091 = vmatpush.bf16.msra.mxu0 %v2297
    %3092 = vmatpush.bf16.msra.mxu0 %v2295
    %3093 = vmatpush.bf16.msra.mxu0 %v2293
    %3094 = vmatmul.bf16.gmra.mxu0 %v3084
    %v3095 = vpop.f32.mrf.mxu0
    %v3096 = vadd.f32 %v3064, %v3095
    %v3097 = vpop.f32.mrf.mxu0
    %3098 = vdwg.mxu0
    %3099 = vmatpush.bf16.msra.mxu0 0
    %3100 = vmatpush.bf16.msra.mxu0 0
    %3101 = vmatpush.bf16.msra.mxu0 0
    %3102 = vmatpush.bf16.msra.mxu0 0
    %3103 = vmatpush.bf16.msra.mxu0 %v2300
    %3104 = vmatpush.bf16.msra.mxu0 %v2298
    %3105 = vmatpush.bf16.msra.mxu0 %v2296
    %3106 = vmatpush.bf16.msra.mxu0 %v2294
    %3107 = vmatmul.bf16.gmra.mxu0 %v3084
    %v3108 = vpop.f32.mrf.mxu0
    %v3109 = vadd.f32 %v3077, %v3108
    %v3110 = vpop.f32.mrf.mxu0
    %3111 = vdwg.mxu0
    %v3112 = vadd.f32 %v3096, %v2339
    %v3113 = vadd.f32 %v3109, %v2340
    %v3114 = vxor.u32 %v3112, 2147483648
    %v3115 = vmul.f32 %v3114, 1.442695
    %v3116 = vpow.pop %v3115
    %v3117 = vadd.f32 %v3116, 1.0
    %v3118 = vrcp.pop %v3117
    %v3119 = vmul.f32 %v3117, %v3118
    %v3120 = vsub.f32 1.0, %v3119
    %v3121 = vmul.f32 %v3118, %v3120
    %v3122 = vadd.f32 %v3118, %v3121
    %vm3123 = vweird.f32 %v3117
    %vm3124 = vweird.f32 %v3118
    %vm3125 = vmor %vm3123, %vm3124
    %v3126 = vsel %vm3125, %v3118, %v3122
    %v3127 = vand.u32 2147483647, %v3117
    %vm3128 = vcmp.eq.f32.partialorder %v3127, 8.507059e+37
    %v3129 = vand.u32 %v3117, 2147483648
    %v3130 = vor.u32 1.1754944e-38, %v3129
    %v3131 = vsel %vm3128, %v3130, %v3126
    %v3132 = vmul.f32 1.0, %v3131
    %v3133 = vtanh.pop %v3113
    %v3134 = vxor.u32 %v3113, 2147483648
    %v3135 = vmul.f32 %v3134, 1.442695
    %v3136 = vpow.pop %v3135
    %v3137 = vadd.f32 %v3136, 1.0
    %v3138 = vrcp.pop %v3137
    %v3139 = vmul.f32 %v3137, %v3138
    %v3140 = vsub.f32 1.0, %v3139
    %v3141 = vmul.f32 %v3138, %v3140
    %v3142 = vadd.f32 %v3138, %v3141
    %vm3143 = vweird.f32 %v3137
    %vm3144 = vweird.f32 %v3138
    %vm3145 = vmor %vm3143, %vm3144
    %v3146 = vsel %vm3145, %v3138, %v3142
    %v3147 = vand.u32 2147483647, %v3137
    %vm3148 = vcmp.eq.f32.partialorder %v3147, 8.507059e+37
    %v3149 = vand.u32 %v3137, 2147483648
    %v3150 = vor.u32 1.1754944e-38, %v3149
    %v3151 = vsel %vm3148, %v3150, %v3146
    %v3152 = vmul.f32 1.0, %v3151
    %v3153 = vmul.f32 %v3132, %v2913
    %v3154 = vmul.f32 %v3132, %v3133
    %3156 = vrot.lane.b32.xlu0 %v3154, 64
    %v3157 = vpop.permute.xlu0 %3156
    %v3159 = vadd.f32 %v3153, %v3157
    %v3160 = vtanh.pop %v3159
    %v3161 = vmul.f32 %v3152, %v3160
    %v3162 = vpack.c.bf16 %v3161, %v3161
    %3164 = vrot.lane.b32.xlu0 %v3162, 64
    %v3165 = vpop.permute.xlu0 %3164
    %v3167 = vsel %vm206, %v3165, 0
    %3169 = vmatpush.bf16.msra.mxu0 0
    %3170 = vmatpush.bf16.msra.mxu0 0
    %3171 = vmatpush.bf16.msra.mxu0 0
    %3172 = vmatpush.bf16.msra.mxu0 0
    %3173 = vmatpush.bf16.msra.mxu0 %v2422
    %3174 = vmatpush.bf16.msra.mxu0 %v2421
    %3175 = vmatpush.bf16.msra.mxu0 %v2420
    %3176 = vmatpush.bf16.msra.mxu0 %v2419
    %3177 = vmatmul.bf16.gmra.mxu0 %v3167
    %v3178 = vpop.f32.mrf.mxu0
    %v3179 = vadd.f32 %v2398, %v3178
    %v3180 = vpop.f32.mrf.mxu0
    %3181 = vdwg.mxu0
    %v3182 = vsel %vm2443, %v3179, -inf
    %3183 = vmax.xlane.f32.xlu0 %v3182
    %v3184 = vpop.xlane.xlu0 %3183
    %vm3185 = vcmp.eq.f32.partialorder %v3179, %v3184
    %v3186 = vsel %vm3185, %v2003, 16.0
    %v3187 = vsel %vm2443, %v3186, inf
    %3188 = vmin.xlane.f32.xlu0 %v3187
    %v3189 = vpop.xlane.xlu0 %3188
    %vm3190 = vcmp.eq.f32.partialorder %v2003, %v3189
    %v3191 = vsel %vm3190, 1, 0
    %v3192 = vcvt.s32.f32 %v3191
    %v3193 = vpack.c.bf16 %v3192, %v3192
    %3194 = vmatpush.bf16.msra.mxu0 0
    %3195 = vmatpush.bf16.msra.mxu0 0
    %3196 = vmatpush.bf16.msra.mxu0 0
    %3197 = vmatpush.bf16.msra.mxu0 0
    %3198 = vmatpush.bf16.msra.mxu0 %v2055
    %3199 = vmatpush.bf16.msra.mxu0 %v2053
    %3200 = vmatpush.bf16.msra.mxu0 %v2051
    %3201 = vmatpush.bf16.msra.mxu0 %v2049
    %3202 = vmatmul.bf16.gmra.mxu0 %v3084
    %v3203 = vpop.f32.mrf.mxu0
    %v3204 = vadd.f32 0.0, %v3203
    %v3205 = vpop.f32.mrf.mxu0
    %3206 = vdwg.mxu0
    %3207 = vmatpush.bf16.msra.mxu0 0
    %3208 = vmatpush.bf16.msra.mxu0 0
    %3209 = vmatpush.bf16.msra.mxu0 0
    %3210 = vmatpush.bf16.msra.mxu0 0
    %3211 = vmatpush.bf16.msra.mxu0 %v2056
    %3212 = vmatpush.bf16.msra.mxu0 %v2054
    %3213 = vmatpush.bf16.msra.mxu0 %v2052
    %3214 = vmatpush.bf16.msra.mxu0 %v2050
    %3215 = vmatmul.bf16.gmra.mxu0 %v3084
    %v3216 = vpop.f32.mrf.mxu0
    %v3217 = vadd.f32 0.0, %v3216
    %v3218 = vpop.f32.mrf.mxu0
    %3219 = vdwg.mxu0
    %v3221 = vsel %vm2007, %v3193, 0
    %3223 = vmatpush.bf16.msra.mxu0 0
    %3224 = vmatpush.bf16.msra.mxu0 0
    %3225 = vmatpush.bf16.msra.mxu0 0
    %3226 = vmatpush.bf16.msra.mxu0 0
    %3227 = vmatpush.bf16.msra.mxu0 0
    %3228 = vmatpush.bf16.msra.mxu0 0
    %3229 = vmatpush.bf16.msra.mxu0 0
    %3230 = vmatpush.bf16.msra.mxu0 %v2100
    %3231 = vmatmul.bf16.gmra.mxu0 %v3221
    %v3232 = vpop.f32.mrf.mxu0
    %v3233 = vadd.f32 %v3204, %v3232
    %v3234 = vpop.f32.mrf.mxu0
    %3235 = vdwg.mxu0
    %3236 = vmatpush.bf16.msra.mxu0 0
    %3237 = vmatpush.bf16.msra.mxu0 0
    %3238 = vmatpush.bf16.msra.mxu0 0
    %3239 = vmatpush.bf16.msra.mxu0 0
    %3240 = vmatpush.bf16.msra.mxu0 0
    %3241 = vmatpush.bf16.msra.mxu0 0
    %3242 = vmatpush.bf16.msra.mxu0 0
    %3243 = vmatpush.bf16.msra.mxu0 %v2101
    %3244 = vmatmul.bf16.gmra.mxu0 %v3221
    %v3245 = vpop.f32.mrf.mxu0
    %v3246 = vadd.f32 %v3217, %v3245
    %v3247 = vpop.f32.mrf.mxu0
    %3248 = vdwg.mxu0
    %v3249 = vadd.f32 %v3233, %v2134
    %v3250 = vadd.f32 %v3246, %v2135
    %v3251 = vxor.u32 %v3249, 2147483648
    %v3252 = vmul.f32 %v3251, 1.442695
    %v3253 = vpow.pop %v3252
    %v3254 = vadd.f32 %v3253, 1.0
    %v3255 = vrcp.pop %v3254
    %v3256 = vmul.f32 %v3254, %v3255
    %v3257 = vsub.f32 1.0, %v3256
    %v3258 = vmul.f32 %v3255, %v3257
    %v3259 = vadd.f32 %v3255, %v3258
    %vm3260 = vweird.f32 %v3254
    %vm3261 = vweird.f32 %v3255
    %vm3262 = vmor %vm3260, %vm3261
    %v3263 = vsel %vm3262, %v3255, %v3259
    %v3264 = vand.u32 2147483647, %v3254
    %vm3265 = vcmp.eq.f32.partialorder %v3264, 8.507059e+37
    %v3266 = vand.u32 %v3254, 2147483648
    %v3267 = vor.u32 1.1754944e-38, %v3266
    %v3268 = vsel %vm3265, %v3267, %v3263
    %v3269 = vmul.f32 1.0, %v3268
    %v3270 = vtanh.pop %v3250
    %v3271 = vxor.u32 %v3250, 2147483648
    %v3272 = vmul.f32 %v3271, 1.442695
    %v3273 = vpow.pop %v3272
    %v3274 = vadd.f32 %v3273, 1.0
    %v3275 = vrcp.pop %v3274
    %v3276 = vmul.f32 %v3274, %v3275
    %v3277 = vsub.f32 1.0, %v3276
    %v3278 = vmul.f32 %v3275, %v3277
    %v3279 = vadd.f32 %v3275, %v3278
    %vm3280 = vweird.f32 %v3274
    %vm3281 = vweird.f32 %v3275
    %vm3282 = vmor %vm3280, %vm3281
    %v3283 = vsel %vm3282, %v3275, %v3279
    %v3284 = vand.u32 2147483647, %v3274
    %vm3285 = vcmp.eq.f32.partialorder %v3284, 8.507059e+37
    %v3286 = vand.u32 %v3274, 2147483648
    %v3287 = vor.u32 1.1754944e-38, %v3286
    %v3288 = vsel %vm3285, %v3287, %v3283
    %v3289 = vmul.f32 1.0, %v3288
    %v3290 = vmul.f32 %v3269, %v3050
    %v3291 = vmul.f32 %v3269, %v3270
    %3293 = vrot.lane.b32.xlu0 %v3291, 64
    %v3294 = vpop.permute.xlu0 %3293
    %v3296 = vadd.f32 %v3290, %v3294
    %v3297 = vtanh.pop %v3296
    %v3298 = vmul.f32 %v3289, %v3297
    %v3299 = vpack.c.bf16 %v3298, %v3298
    %3300 = vmatpush.bf16.msra.mxu0 0
    %3301 = vmatpush.bf16.msra.mxu0 0
    %3302 = vmatpush.bf16.msra.mxu0 0
    %3303 = vmatpush.bf16.msra.mxu0 0
    %3304 = vmatpush.bf16.msra.mxu0 %v2227
    %3305 = vmatpush.bf16.msra.mxu0 %v2225
    %3306 = vmatpush.bf16.msra.mxu0 %v2223
    %3307 = vmatpush.bf16.msra.mxu0 %v2221
    %3308 = vmatmul.bf16.gmra.mxu0 %v3167
    %v3309 = vpop.f32.mrf.mxu0
    %v3310 = vadd.f32 0.0, %v3309
    %v3311 = vpop.f32.mrf.mxu0
    %3312 = vdwg.mxu0
    %3313 = vmatpush.bf16.msra.mxu0 0
    %3314 = vmatpush.bf16.msra.mxu0 0
    %3315 = vmatpush.bf16.msra.mxu0 0
    %3316 = vmatpush.bf16.msra.mxu0 0
    %3317 = vmatpush.bf16.msra.mxu0 %v2228
    %3318 = vmatpush.bf16.msra.mxu0 %v2226
    %3319 = vmatpush.bf16.msra.mxu0 %v2224
    %3320 = vmatpush.bf16.msra.mxu0 %v2222
    %3321 = vmatmul.bf16.gmra.mxu0 %v3167
    %v3322 = vpop.f32.mrf.mxu0
    %v3323 = vadd.f32 0.0, %v3322
    %v3324 = vpop.f32.mrf.mxu0
    %3325 = vdwg.mxu0
    %3327 = vrot.lane.b32.xlu0 %v3299, 64
    %v3328 = vpop.permute.xlu0 %3327
    %v3330 = vsel %vm206, %v3328, 0
    %3332 = vmatpush.bf16.msra.mxu0 0
    %3333 = vmatpush.bf16.msra.mxu0 0
    %3334 = vmatpush.bf16.msra.mxu0 0
    %3335 = vmatpush.bf16.msra.mxu0 0
    %3336 = vmatpush.bf16.msra.mxu0 %v2299
    %3337 = vmatpush.bf16.msra.mxu0 %v2297
    %3338 = vmatpush.bf16.msra.mxu0 %v2295
    %3339 = vmatpush.bf16.msra.mxu0 %v2293
    %3340 = vmatmul.bf16.gmra.mxu0 %v3330
    %v3341 = vpop.f32.mrf.mxu0
    %v3342 = vadd.f32 %v3310, %v3341
    %v3343 = vpop.f32.mrf.mxu0
    %3344 = vdwg.mxu0
    %3345 = vmatpush.bf16.msra.mxu0 0
    %3346 = vmatpush.bf16.msra.mxu0 0
    %3347 = vmatpush.bf16.msra.mxu0 0
    %3348 = vmatpush.bf16.msra.mxu0 0
    %3349 = vmatpush.bf16.msra.mxu0 %v2300
    %3350 = vmatpush.bf16.msra.mxu0 %v2298
    %3351 = vmatpush.bf16.msra.mxu0 %v2296
    %3352 = vmatpush.bf16.msra.mxu0 %v2294
    %3353 = vmatmul.bf16.gmra.mxu0 %v3330
    %v3354 = vpop.f32.mrf.mxu0
    %v3355 = vadd.f32 %v3323, %v3354
    %v3356 = vpop.f32.mrf.mxu0
    %3357 = vdwg.mxu0
    %v3358 = vadd.f32 %v3342, %v2339
    %v3359 = vadd.f32 %v3355, %v2340
    %v3360 = vxor.u32 %v3358, 2147483648
    %v3361 = vmul.f32 %v3360, 1.442695
    %v3362 = vpow.pop %v3361
    %v3363 = vadd.f32 %v3362, 1.0
    %v3364 = vrcp.pop %v3363
    %v3365 = vmul.f32 %v3363, %v3364
    %v3366 = vsub.f32 1.0, %v3365
    %v3367 = vmul.f32 %v3364, %v3366
    %v3368 = vadd.f32 %v3364, %v3367
    %vm3369 = vweird.f32 %v3363
    %vm3370 = vweird.f32 %v3364
    %vm3371 = vmor %vm3369, %vm3370
    %v3372 = vsel %vm3371, %v3364, %v3368
    %v3373 = vand.u32 2147483647, %v3363
    %vm3374 = vcmp.eq.f32.partialorder %v3373, 8.507059e+37
    %v3375 = vand.u32 %v3363, 2147483648
    %v3376 = vor.u32 1.1754944e-38, %v3375
    %v3377 = vsel %vm3374, %v3376, %v3372
    %v3378 = vmul.f32 1.0, %v3377
    %v3379 = vtanh.pop %v3359
    %v3380 = vxor.u32 %v3359, 2147483648
    %v3381 = vmul.f32 %v3380, 1.442695
    %v3382 = vpow.pop %v3381
    %v3383 = vadd.f32 %v3382, 1.0
    %v3384 = vrcp.pop %v3383
    %v3385 = vmul.f32 %v3383, %v3384
    %v3386 = vsub.f32 1.0, %v3385
    %v3387 = vmul.f32 %v3384, %v3386
    %v3388 = vadd.f32 %v3384, %v3387
    %vm3389 = vweird.f32 %v3383
    %vm3390 = vweird.f32 %v3384
    %vm3391 = vmor %vm3389, %vm3390
    %v3392 = vsel %vm3391, %v3384, %v3388
    %v3393 = vand.u32 2147483647, %v3383
    %vm3394 = vcmp.eq.f32.partialorder %v3393, 8.507059e+37
    %v3395 = vand.u32 %v3383, 2147483648
    %v3396 = vor.u32 1.1754944e-38, %v3395
    %v3397 = vsel %vm3394, %v3396, %v3392
    %v3398 = vmul.f32 1.0, %v3397
    %v3399 = vmul.f32 %v3378, %v3159
    %v3400 = vmul.f32 %v3378, %v3379
    %3402 = vrot.lane.b32.xlu0 %v3400, 64
    %v3403 = vpop.permute.xlu0 %3402
    %v3405 = vadd.f32 %v3399, %v3403
    %v3406 = vtanh.pop %v3405
    %v3407 = vmul.f32 %v3398, %v3406
    %v3408 = vpack.c.bf16 %v3407, %v3407
    %3410 = vrot.lane.b32.xlu0 %v3408, 64
    %v3411 = vpop.permute.xlu0 %3410
    %v3413 = vsel %vm206, %v3411, 0
    %3415 = vmatpush.bf16.msra.mxu0 0
    %3416 = vmatpush.bf16.msra.mxu0 0
    %3417 = vmatpush.bf16.msra.mxu0 0
    %3418 = vmatpush.bf16.msra.mxu0 0
    %3419 = vmatpush.bf16.msra.mxu0 %v2422
    %3420 = vmatpush.bf16.msra.mxu0 %v2421
    %3421 = vmatpush.bf16.msra.mxu0 %v2420
    %3422 = vmatpush.bf16.msra.mxu0 %v2419
    %3423 = vmatmul.bf16.gmra.mxu0 %v3413
    %v3424 = vpop.f32.mrf.mxu0
    %v3425 = vadd.f32 %v2398, %v3424
    %v3426 = vpop.f32.mrf.mxu0
    %3427 = vdwg.mxu0
    %v3428 = vsel %vm2443, %v3425, -inf
    %3429 = vmax.xlane.f32.xlu0 %v3428
    %v3430 = vpop.xlane.xlu0 %3429
    %vm3431 = vcmp.eq.f32.partialorder %v3425, %v3430
    %v3432 = vsel %vm3431, %v2003, 16.0
    %v3433 = vsel %vm2443, %v3432, inf
    %3434 = vmin.xlane.f32.xlu0 %v3433
    %v3435 = vpop.xlane.xlu0 %3434
    %vm3436 = vcmp.eq.f32.partialorder %v2003, %v3435
    %v3437 = vsel %vm3436, 1, 0
    %v3438 = vcvt.s32.f32 %v3437
    %v3439 = vpack.c.bf16 %v3438, %v3438
    %3440 = vmatpush.bf16.msra.mxu0 0
    %3441 = vmatpush.bf16.msra.mxu0 0
    %3442 = vmatpush.bf16.msra.mxu0 0
    %3443 = vmatpush.bf16.msra.mxu0 0
    %3444 = vmatpush.bf16.msra.mxu0 %v2055
    %3445 = vmatpush.bf16.msra.mxu0 %v2053
    %3446 = vmatpush.bf16.msra.mxu0 %v2051
    %3447 = vmatpush.bf16.msra.mxu0 %v2049
    %3448 = vmatmul.bf16.gmra.mxu0 %v3330
    %v3449 = vpop.f32.mrf.mxu0
    %v3450 = vadd.f32 0.0, %v3449
    %v3451 = vpop.f32.mrf.mxu0
    %3452 = vdwg.mxu0
    %3453 = vmatpush.bf16.msra.mxu0 0
    %3454 = vmatpush.bf16.msra.mxu0 0
    %3455 = vmatpush.bf16.msra.mxu0 0
    %3456 = vmatpush.bf16.msra.mxu0 0
    %3457 = vmatpush.bf16.msra.mxu0 %v2056
    %3458 = vmatpush.bf16.msra.mxu0 %v2054
    %3459 = vmatpush.bf16.msra.mxu0 %v2052
    %3460 = vmatpush.bf16.msra.mxu0 %v2050
    %3461 = vmatmul.bf16.gmra.mxu0 %v3330
    %v3462 = vpop.f32.mrf.mxu0
    %v3463 = vadd.f32 0.0, %v3462
    %v3464 = vpop.f32.mrf.mxu0
    %3465 = vdwg.mxu0
    %v3467 = vsel %vm2007, %v3439, 0
    %3469 = vmatpush.bf16.msra.mxu0 0
    %3470 = vmatpush.bf16.msra.mxu0 0
    %3471 = vmatpush.bf16.msra.mxu0 0
    %3472 = vmatpush.bf16.msra.mxu0 0
    %3473 = vmatpush.bf16.msra.mxu0 0
    %3474 = vmatpush.bf16.msra.mxu0 0
    %3475 = vmatpush.bf16.msra.mxu0 0
    %3476 = vmatpush.bf16.msra.mxu0 %v2100
    %3477 = vmatmul.bf16.gmra.mxu0 %v3467
    %v3478 = vpop.f32.mrf.mxu0
    %v3479 = vadd.f32 %v3450, %v3478
    %v3480 = vpop.f32.mrf.mxu0
    %3481 = vdwg.mxu0
    %3482 = vmatpush.bf16.msra.mxu0 0
    %3483 = vmatpush.bf16.msra.mxu0 0
    %3484 = vmatpush.bf16.msra.mxu0 0
    %3485 = vmatpush.bf16.msra.mxu0 0
    %3486 = vmatpush.bf16.msra.mxu0 0
    %3487 = vmatpush.bf16.msra.mxu0 0
    %3488 = vmatpush.bf16.msra.mxu0 0
    %3489 = vmatpush.bf16.msra.mxu0 %v2101
    %3490 = vmatmul.bf16.gmra.mxu0 %v3467
    %v3491 = vpop.f32.mrf.mxu0
    %v3492 = vadd.f32 %v3463, %v3491
    %v3493 = vpop.f32.mrf.mxu0
    %3494 = vdwg.mxu0
    %v3495 = vadd.f32 %v3479, %v2134
    %v3496 = vadd.f32 %v3492, %v2135
    %v3497 = vxor.u32 %v3495, 2147483648
    %v3498 = vmul.f32 %v3497, 1.442695
    %v3499 = vpow.pop %v3498
    %v3500 = vadd.f32 %v3499, 1.0
    %v3501 = vrcp.pop %v3500
    %v3502 = vmul.f32 %v3500, %v3501
    %v3503 = vsub.f32 1.0, %v3502
    %v3504 = vmul.f32 %v3501, %v3503
    %v3505 = vadd.f32 %v3501, %v3504
    %vm3506 = vweird.f32 %v3500
    %vm3507 = vweird.f32 %v3501
    %vm3508 = vmor %vm3506, %vm3507
    %v3509 = vsel %vm3508, %v3501, %v3505
    %v3510 = vand.u32 2147483647, %v3500
    %vm3511 = vcmp.eq.f32.partialorder %v3510, 8.507059e+37
    %v3512 = vand.u32 %v3500, 2147483648
    %v3513 = vor.u32 1.1754944e-38, %v3512
    %v3514 = vsel %vm3511, %v3513, %v3509
    %v3515 = vmul.f32 1.0, %v3514
    %v3516 = vtanh.pop %v3496
    %v3517 = vxor.u32 %v3496, 2147483648
    %v3518 = vmul.f32 %v3517, 1.442695
    %v3519 = vpow.pop %v3518
    %v3520 = vadd.f32 %v3519, 1.0
    %v3521 = vrcp.pop %v3520
    %v3522 = vmul.f32 %v3520, %v3521
    %v3523 = vsub.f32 1.0, %v3522
    %v3524 = vmul.f32 %v3521, %v3523
    %v3525 = vadd.f32 %v3521, %v3524
    %vm3526 = vweird.f32 %v3520
    %vm3527 = vweird.f32 %v3521
    %vm3528 = vmor %vm3526, %vm3527
    %v3529 = vsel %vm3528, %v3521, %v3525
    %v3530 = vand.u32 2147483647, %v3520
    %vm3531 = vcmp.eq.f32.partialorder %v3530, 8.507059e+37
    %v3532 = vand.u32 %v3520, 2147483648
    %v3533 = vor.u32 1.1754944e-38, %v3532
    %v3534 = vsel %vm3531, %v3533, %v3529
    %v3535 = vmul.f32 1.0, %v3534
    %v3536 = vmul.f32 %v3515, %v3296
    %v3537 = vmul.f32 %v3515, %v3516
    %3539 = vrot.lane.b32.xlu0 %v3537, 64
    %v3540 = vpop.permute.xlu0 %3539
    %v3542 = vadd.f32 %v3536, %v3540
    %v3543 = vtanh.pop %v3542
    %v3544 = vmul.f32 %v3535, %v3543
    %v3545 = vpack.c.bf16 %v3544, %v3544
    %3546 = vmatpush.bf16.msra.mxu0 0
    %3547 = vmatpush.bf16.msra.mxu0 0
    %3548 = vmatpush.bf16.msra.mxu0 0
    %3549 = vmatpush.bf16.msra.mxu0 0
    %3550 = vmatpush.bf16.msra.mxu0 %v2227
    %3551 = vmatpush.bf16.msra.mxu0 %v2225
    %3552 = vmatpush.bf16.msra.mxu0 %v2223
    %3553 = vmatpush.bf16.msra.mxu0 %v2221
    %3554 = vmatmul.bf16.gmra.mxu0 %v3413
    %v3555 = vpop.f32.mrf.mxu0
    %v3556 = vadd.f32 0.0, %v3555
    %v3557 = vpop.f32.mrf.mxu0
    %3558 = vdwg.mxu0
    %3559 = vmatpush.bf16.msra.mxu0 0
    %3560 = vmatpush.bf16.msra.mxu0 0
    %3561 = vmatpush.bf16.msra.mxu0 0
    %3562 = vmatpush.bf16.msra.mxu0 0
    %3563 = vmatpush.bf16.msra.mxu0 %v2228
    %3564 = vmatpush.bf16.msra.mxu0 %v2226
    %3565 = vmatpush.bf16.msra.mxu0 %v2224
    %3566 = vmatpush.bf16.msra.mxu0 %v2222
    %3567 = vmatmul.bf16.gmra.mxu0 %v3413
    %v3568 = vpop.f32.mrf.mxu0
    %v3569 = vadd.f32 0.0, %v3568
    %v3570 = vpop.f32.mrf.mxu0
    %3571 = vdwg.mxu0
    %3573 = vrot.lane.b32.xlu0 %v3545, 64
    %v3574 = vpop.permute.xlu0 %3573
    %v3576 = vsel %vm206, %v3574, 0
    %3578 = vmatpush.bf16.msra.mxu0 0
    %3579 = vmatpush.bf16.msra.mxu0 0
    %3580 = vmatpush.bf16.msra.mxu0 0
    %3581 = vmatpush.bf16.msra.mxu0 0
    %3582 = vmatpush.bf16.msra.mxu0 %v2299
    %3583 = vmatpush.bf16.msra.mxu0 %v2297
    %3584 = vmatpush.bf16.msra.mxu0 %v2295
    %3585 = vmatpush.bf16.msra.mxu0 %v2293
    %3586 = vmatmul.bf16.gmra.mxu0 %v3576
    %v3587 = vpop.f32.mrf.mxu0
    %v3588 = vadd.f32 %v3556, %v3587
    %v3589 = vpop.f32.mrf.mxu0
    %3590 = vdwg.mxu0
    %3591 = vmatpush.bf16.msra.mxu0 0
    %3592 = vmatpush.bf16.msra.mxu0 0
    %3593 = vmatpush.bf16.msra.mxu0 0
    %3594 = vmatpush.bf16.msra.mxu0 0
    %3595 = vmatpush.bf16.msra.mxu0 %v2300
    %3596 = vmatpush.bf16.msra.mxu0 %v2298
    %3597 = vmatpush.bf16.msra.mxu0 %v2296
    %3598 = vmatpush.bf16.msra.mxu0 %v2294
    %3599 = vmatmul.bf16.gmra.mxu0 %v3576
    %v3600 = vpop.f32.mrf.mxu0
    %v3601 = vadd.f32 %v3569, %v3600
    %v3602 = vpop.f32.mrf.mxu0
    %3603 = vdwg.mxu0
    %v3604 = vadd.f32 %v3588, %v2339
    %v3605 = vadd.f32 %v3601, %v2340
    %v3606 = vxor.u32 %v3604, 2147483648
    %v3607 = vmul.f32 %v3606, 1.442695
    %v3608 = vpow.pop %v3607
    %v3609 = vadd.f32 %v3608, 1.0
    %v3610 = vrcp.pop %v3609
    %v3611 = vmul.f32 %v3609, %v3610
    %v3612 = vsub.f32 1.0, %v3611
    %v3613 = vmul.f32 %v3610, %v3612
    %v3614 = vadd.f32 %v3610, %v3613
    %vm3615 = vweird.f32 %v3609
    %vm3616 = vweird.f32 %v3610
    %vm3617 = vmor %vm3615, %vm3616
    %v3618 = vsel %vm3617, %v3610, %v3614
    %v3619 = vand.u32 2147483647, %v3609
    %vm3620 = vcmp.eq.f32.partialorder %v3619, 8.507059e+37
    %v3621 = vand.u32 %v3609, 2147483648
    %v3622 = vor.u32 1.1754944e-38, %v3621
    %v3623 = vsel %vm3620, %v3622, %v3618
    %v3624 = vmul.f32 1.0, %v3623
    %v3625 = vtanh.pop %v3605
    %v3626 = vxor.u32 %v3605, 2147483648
    %v3627 = vmul.f32 %v3626, 1.442695
    %v3628 = vpow.pop %v3627
    %v3629 = vadd.f32 %v3628, 1.0
    %v3630 = vrcp.pop %v3629
    %v3631 = vmul.f32 %v3629, %v3630
    %v3632 = vsub.f32 1.0, %v3631
    %v3633 = vmul.f32 %v3630, %v3632
    %v3634 = vadd.f32 %v3630, %v3633
    %vm3635 = vweird.f32 %v3629
    %vm3636 = vweird.f32 %v3630
    %vm3637 = vmor %vm3635, %vm3636
    %v3638 = vsel %vm3637, %v3630, %v3634
    %v3639 = vand.u32 2147483647, %v3629
    %vm3640 = vcmp.eq.f32.partialorder %v3639, 8.507059e+37
    %v3641 = vand.u32 %v3629, 2147483648
    %v3642 = vor.u32 1.1754944e-38, %v3641
    %v3643 = vsel %vm3640, %v3642, %v3638
    %v3644 = vmul.f32 1.0, %v3643
    %v3645 = vmul.f32 %v3624, %v3405
    %v3646 = vmul.f32 %v3624, %v3625
    %3648 = vrot.lane.b32.xlu0 %v3646, 64
    %v3649 = vpop.permute.xlu0 %3648
    %v3651 = vadd.f32 %v3645, %v3649
    %v3652 = vtanh.pop %v3651
    %v3653 = vmul.f32 %v3644, %v3652
    %v3654 = vpack.c.bf16 %v3653, %v3653
    %3656 = vrot.lane.b32.xlu0 %v3654, 64
    %v3657 = vpop.permute.xlu0 %3656
    %v3659 = vsel %vm206, %v3657, 0
    %3661 = vmatpush.bf16.msra.mxu0 0
    %3662 = vmatpush.bf16.msra.mxu0 0
    %3663 = vmatpush.bf16.msra.mxu0 0
    %3664 = vmatpush.bf16.msra.mxu0 0
    %3665 = vmatpush.bf16.msra.mxu0 %v2422
    %3666 = vmatpush.bf16.msra.mxu0 %v2421
    %3667 = vmatpush.bf16.msra.mxu0 %v2420
    %3668 = vmatpush.bf16.msra.mxu0 %v2419
    %3669 = vmatmul.bf16.gmra.mxu0 %v3659
    %v3670 = vpop.f32.mrf.mxu0
    %v3671 = vadd.f32 %v2398, %v3670
    %v3672 = vpop.f32.mrf.mxu0
    %3673 = vdwg.mxu0
    %v3674 = vsel %vm2443, %v3671, -inf
    %3675 = vmax.xlane.f32.xlu0 %v3674
    %v3676 = vpop.xlane.xlu0 %3675
    %vm3677 = vcmp.eq.f32.partialorder %v3671, %v3676
    %v3678 = vsel %vm3677, %v2003, 16.0
    %v3679 = vsel %vm2443, %v3678, inf
    %3680 = vmin.xlane.f32.xlu0 %v3679
    %v3681 = vpop.xlane.xlu0 %3680
    %vm3682 = vcmp.eq.f32.partialorder %v2003, %v3681
    %v3683 = vsel %vm3682, 1, 0
    %v3684 = vcvt.s32.f32 %v3683
    %v3685 = vpack.c.bf16 %v3684, %v3684
    %3686 = vmatpush.bf16.msra.mxu0 0
    %3687 = vmatpush.bf16.msra.mxu0 0
    %3688 = vmatpush.bf16.msra.mxu0 0
    %3689 = vmatpush.bf16.msra.mxu0 0
    %3690 = vmatpush.bf16.msra.mxu0 %v2055
    %3691 = vmatpush.bf16.msra.mxu0 %v2053
    %3692 = vmatpush.bf16.msra.mxu0 %v2051
    %3693 = vmatpush.bf16.msra.mxu0 %v2049
    %3694 = vmatmul.bf16.gmra.mxu0 %v3576
    %v3695 = vpop.f32.mrf.mxu0
    %v3696 = vadd.f32 0.0, %v3695
    %v3697 = vpop.f32.mrf.mxu0
    %3698 = vdwg.mxu0
    %3699 = vmatpush.bf16.msra.mxu0 0
    %3700 = vmatpush.bf16.msra.mxu0 0
    %3701 = vmatpush.bf16.msra.mxu0 0
    %3702 = vmatpush.bf16.msra.mxu0 0
    %3703 = vmatpush.bf16.msra.mxu0 %v2056
    %3704 = vmatpush.bf16.msra.mxu0 %v2054
    %3705 = vmatpush.bf16.msra.mxu0 %v2052
    %3706 = vmatpush.bf16.msra.mxu0 %v2050
    %3707 = vmatmul.bf16.gmra.mxu0 %v3576
    %v3708 = vpop.f32.mrf.mxu0
    %v3709 = vadd.f32 0.0, %v3708
    %v3710 = vpop.f32.mrf.mxu0
    %3711 = vdwg.mxu0
    %v3713 = vsel %vm2007, %v3685, 0
    %3715 = vmatpush.bf16.msra.mxu0 0
    %3716 = vmatpush.bf16.msra.mxu0 0
    %3717 = vmatpush.bf16.msra.mxu0 0
    %3718 = vmatpush.bf16.msra.mxu0 0
    %3719 = vmatpush.bf16.msra.mxu0 0
    %3720 = vmatpush.bf16.msra.mxu0 0
    %3721 = vmatpush.bf16.msra.mxu0 0
    %3722 = vmatpush.bf16.msra.mxu0 %v2100
    %3723 = vmatmul.bf16.gmra.mxu0 %v3713
    %v3724 = vpop.f32.mrf.mxu0
    %v3725 = vadd.f32 %v3696, %v3724
    %v3726 = vpop.f32.mrf.mxu0
    %3727 = vdwg.mxu0
    %3728 = vmatpush.bf16.msra.mxu0 0
    %3729 = vmatpush.bf16.msra.mxu0 0
    %3730 = vmatpush.bf16.msra.mxu0 0
    %3731 = vmatpush.bf16.msra.mxu0 0
    %3732 = vmatpush.bf16.msra.mxu0 0
    %3733 = vmatpush.bf16.msra.mxu0 0
    %3734 = vmatpush.bf16.msra.mxu0 0
    %3735 = vmatpush.bf16.msra.mxu0 %v2101
    %3736 = vmatmul.bf16.gmra.mxu0 %v3713
    %v3737 = vpop.f32.mrf.mxu0
    %v3738 = vadd.f32 %v3709, %v3737
    %v3739 = vpop.f32.mrf.mxu0
    %3740 = vdwg.mxu0
    %v3741 = vadd.f32 %v3725, %v2134
    %v3742 = vadd.f32 %v3738, %v2135
    %v3743 = vxor.u32 %v3741, 2147483648
    %v3744 = vmul.f32 %v3743, 1.442695
    %v3745 = vpow.pop %v3744
    %v3746 = vadd.f32 %v3745, 1.0
    %v3747 = vrcp.pop %v3746
    %v3748 = vmul.f32 %v3746, %v3747
    %v3749 = vsub.f32 1.0, %v3748
    %v3750 = vmul.f32 %v3747, %v3749
    %v3751 = vadd.f32 %v3747, %v3750
    %vm3752 = vweird.f32 %v3746
    %vm3753 = vweird.f32 %v3747
    %vm3754 = vmor %vm3752, %vm3753
    %v3755 = vsel %vm3754, %v3747, %v3751
    %v3756 = vand.u32 2147483647, %v3746
    %vm3757 = vcmp.eq.f32.partialorder %v3756, 8.507059e+37
    %v3758 = vand.u32 %v3746, 2147483648
    %v3759 = vor.u32 1.1754944e-38, %v3758
    %v3760 = vsel %vm3757, %v3759, %v3755
    %v3761 = vmul.f32 1.0, %v3760
    %v3762 = vtanh.pop %v3742
    %v3763 = vxor.u32 %v3742, 2147483648
    %v3764 = vmul.f32 %v3763, 1.442695
    %v3765 = vpow.pop %v3764
    %v3766 = vadd.f32 %v3765, 1.0
    %v3767 = vrcp.pop %v3766
    %v3768 = vmul.f32 %v3766, %v3767
    %v3769 = vsub.f32 1.0, %v3768
    %v3770 = vmul.f32 %v3767, %v3769
    %v3771 = vadd.f32 %v3767, %v3770
    %vm3772 = vweird.f32 %v3766
    %vm3773 = vweird.f32 %v3767
    %vm3774 = vmor %vm3772, %vm3773
    %v3775 = vsel %vm3774, %v3767, %v3771
    %v3776 = vand.u32 2147483647, %v3766
    %vm3777 = vcmp.eq.f32.partialorder %v3776, 8.507059e+37
    %v3778 = vand.u32 %v3766, 2147483648
    %v3779 = vor.u32 1.1754944e-38, %v3778
    %v3780 = vsel %vm3777, %v3779, %v3775
    %v3781 = vmul.f32 1.0, %v3780
    %v3782 = vmul.f32 %v3761, %v3542
    %v3783 = vmul.f32 %v3761, %v3762
    %3785 = vrot.lane.b32.xlu0 %v3783, 64
    %v3786 = vpop.permute.xlu0 %3785
    %v3788 = vadd.f32 %v3782, %v3786
    %v3789 = vtanh.pop %v3788
    %v3790 = vmul.f32 %v3781, %v3789
    %v3791 = vpack.c.bf16 %v3790, %v3790
    %3792 = vmatpush.bf16.msra.mxu0 0
    %3793 = vmatpush.bf16.msra.mxu0 0
    %3794 = vmatpush.bf16.msra.mxu0 0
    %3795 = vmatpush.bf16.msra.mxu0 0
    %3796 = vmatpush.bf16.msra.mxu0 %v2227
    %3797 = vmatpush.bf16.msra.mxu0 %v2225
    %3798 = vmatpush.bf16.msra.mxu0 %v2223
    %3799 = vmatpush.bf16.msra.mxu0 %v2221
    %3800 = vmatmul.bf16.gmra.mxu0 %v3659
    %v3801 = vpop.f32.mrf.mxu0
    %v3802 = vadd.f32 0.0, %v3801
    %v3803 = vpop.f32.mrf.mxu0
    %3804 = vdwg.mxu0
    %3805 = vmatpush.bf16.msra.mxu0 0
    %3806 = vmatpush.bf16.msra.mxu0 0
    %3807 = vmatpush.bf16.msra.mxu0 0
    %3808 = vmatpush.bf16.msra.mxu0 0
    %3809 = vmatpush.bf16.msra.mxu0 %v2228
    %3810 = vmatpush.bf16.msra.mxu0 %v2226
    %3811 = vmatpush.bf16.msra.mxu0 %v2224
    %3812 = vmatpush.bf16.msra.mxu0 %v2222
    %3813 = vmatmul.bf16.gmra.mxu0 %v3659
    %v3814 = vpop.f32.mrf.mxu0
    %v3815 = vadd.f32 0.0, %v3814
    %v3816 = vpop.f32.mrf.mxu0
    %3817 = vdwg.mxu0
    %3819 = vrot.lane.b32.xlu0 %v3791, 64
    %v3820 = vpop.permute.xlu0 %3819
    %v3822 = vsel %vm206, %v3820, 0
    %3824 = vmatpush.bf16.msra.mxu0 0
    %3825 = vmatpush.bf16.msra.mxu0 0
    %3826 = vmatpush.bf16.msra.mxu0 0
    %3827 = vmatpush.bf16.msra.mxu0 0
    %3828 = vmatpush.bf16.msra.mxu0 %v2299
    %3829 = vmatpush.bf16.msra.mxu0 %v2297
    %3830 = vmatpush.bf16.msra.mxu0 %v2295
    %3831 = vmatpush.bf16.msra.mxu0 %v2293
    %3832 = vmatmul.bf16.gmra.mxu0 %v3822
    %v3833 = vpop.f32.mrf.mxu0
    %v3834 = vadd.f32 %v3802, %v3833
    %v3835 = vpop.f32.mrf.mxu0
    %3836 = vdwg.mxu0
    %3837 = vmatpush.bf16.msra.mxu0 0
    %3838 = vmatpush.bf16.msra.mxu0 0
    %3839 = vmatpush.bf16.msra.mxu0 0
    %3840 = vmatpush.bf16.msra.mxu0 0
    %3841 = vmatpush.bf16.msra.mxu0 %v2300
    %3842 = vmatpush.bf16.msra.mxu0 %v2298
    %3843 = vmatpush.bf16.msra.mxu0 %v2296
    %3844 = vmatpush.bf16.msra.mxu0 %v2294
    %3845 = vmatmul.bf16.gmra.mxu0 %v3822
    %v3846 = vpop.f32.mrf.mxu0
    %v3847 = vadd.f32 %v3815, %v3846
    %v3848 = vpop.f32.mrf.mxu0
    %3849 = vdwg.mxu0
    %v3850 = vadd.f32 %v3834, %v2339
    %v3851 = vadd.f32 %v3847, %v2340
    %v3852 = vxor.u32 %v3850, 2147483648
    %v3853 = vmul.f32 %v3852, 1.442695
    %v3854 = vpow.pop %v3853
    %v3855 = vadd.f32 %v3854, 1.0
    %v3856 = vrcp.pop %v3855
    %v3857 = vmul.f32 %v3855, %v3856
    %v3858 = vsub.f32 1.0, %v3857
    %v3859 = vmul.f32 %v3856, %v3858
    %v3860 = vadd.f32 %v3856, %v3859
    %vm3861 = vweird.f32 %v3855
    %vm3862 = vweird.f32 %v3856
    %vm3863 = vmor %vm3861, %vm3862
    %v3864 = vsel %vm3863, %v3856, %v3860
    %v3865 = vand.u32 2147483647, %v3855
    %vm3866 = vcmp.eq.f32.partialorder %v3865, 8.507059e+37
    %v3867 = vand.u32 %v3855, 2147483648
    %v3868 = vor.u32 1.1754944e-38, %v3867
    %v3869 = vsel %vm3866, %v3868, %v3864
    %v3870 = vmul.f32 1.0, %v3869
    %v3871 = vtanh.pop %v3851
    %v3872 = vxor.u32 %v3851, 2147483648
    %v3873 = vmul.f32 %v3872, 1.442695
    %v3874 = vpow.pop %v3873
    %v3875 = vadd.f32 %v3874, 1.0
    %v3876 = vrcp.pop %v3875
    %v3877 = vmul.f32 %v3875, %v3876
    %v3878 = vsub.f32 1.0, %v3877
    %v3879 = vmul.f32 %v3876, %v3878
    %v3880 = vadd.f32 %v3876, %v3879
    %vm3881 = vweird.f32 %v3875
    %vm3882 = vweird.f32 %v3876
    %vm3883 = vmor %vm3881, %vm3882
    %v3884 = vsel %vm3883, %v3876, %v3880
    %v3885 = vand.u32 2147483647, %v3875
    %vm3886 = vcmp.eq.f32.partialorder %v3885, 8.507059e+37
    %v3887 = vand.u32 %v3875, 2147483648
    %v3888 = vor.u32 1.1754944e-38, %v3887
    %v3889 = vsel %vm3886, %v3888, %v3884
    %v3890 = vmul.f32 1.0, %v3889
    %v3891 = vmul.f32 %v3870, %v3651
    %v3892 = vmul.f32 %v3870, %v3871
    %3894 = vrot.lane.b32.xlu0 %v3892, 64
    %v3895 = vpop.permute.xlu0 %3894
    %v3897 = vadd.f32 %v3891, %v3895
    %v3898 = vtanh.pop %v3897
    %v3899 = vmul.f32 %v3890, %v3898
    %v3900 = vpack.c.bf16 %v3899, %v3899
    %3902 = vrot.lane.b32.xlu0 %v3900, 64
    %v3903 = vpop.permute.xlu0 %3902
    %v3905 = vsel %vm206, %v3903, 0
    %3907 = vmatpush.bf16.msra.mxu0 0
    %3908 = vmatpush.bf16.msra.mxu0 0
    %3909 = vmatpush.bf16.msra.mxu0 0
    %3910 = vmatpush.bf16.msra.mxu0 0
    %3911 = vmatpush.bf16.msra.mxu0 %v2422
    %3912 = vmatpush.bf16.msra.mxu0 %v2421
    %3913 = vmatpush.bf16.msra.mxu0 %v2420
    %3914 = vmatpush.bf16.msra.mxu0 %v2419
    %3915 = vmatmul.bf16.gmra.mxu0 %v3905
    %v3916 = vpop.f32.mrf.mxu0
    %v3917 = vadd.f32 %v2398, %v3916
    %v3918 = vpop.f32.mrf.mxu0
    %3919 = vdwg.mxu0
    %3921 = vrot.lane.b32.xlu0 %v2440, 16
    %v3922 = vpop.permute.xlu0 %3921
    %3925 = vrot.lane.b32.xlu0 %v2687, 32
    %v3926 = vpop.permute.xlu0 %3925
    %3929 = vrot.lane.b32.xlu0 %v2933, 48
    %v3930 = vpop.permute.xlu0 %3929
    %3933 = vrot.lane.b32.xlu0 %v3179, 64
    %v3934 = vpop.permute.xlu0 %3933
    %3937 = vrot.lane.b32.xlu0 %v3425, 80
    %v3938 = vpop.permute.xlu0 %3937
    %3941 = vrot.lane.b32.xlu0 %v3671, 96
    %v3942 = vpop.permute.xlu0 %3941
    %3945 = vrot.lane.b32.xlu0 %v3917, 112
    %v3946 = vpop.permute.xlu0 %3945
    %v3948 = vsel %vm2007, %v2006, %v3922
    %vm3949 = vcmask 261120
    %v3950 = vsel %vm3949, %v3948, %v3926
    %vm3951 = vcmask 392192
    %v3952 = vsel %vm3951, %v3950, %v3930
    %v3953 = vsel %vm206, %v3952, %v3934
    %vm3954 = vcmask 654336
    %v3955 = vsel %vm3954, %v3953, %v3938
    %vm3956 = vcmask 785408
    %v3957 = vsel %vm3956, %v3955, %v3942
    %vm3958 = vcmask 916480
    %v3959 = vsel %vm3958, %v3957, %v3946
    %3960 = vst [vmem:[%s15] sm:$0x3] %v3959
    // Predicated region
    $region86: #{seq2seq_forward.1} parent=1 // pred_check
      _
    $region87: #{seq2seq_forward.1} parent=1 // pred_check_branch
      %3962 = sbr.rel (0) target = $region89
    $region88: #{seq2seq_forward.1} parent=1 // pred_region
      _
    $region89: #{seq2seq_forward.1} parent=1 // pred_fallthru
      _
    // Predicated region
    $region90: #{seq2seq_forward.1} parent=1 // pred_check
      _
    $region91: #{seq2seq_forward.1} parent=1 // pred_check_branch
      %3964 = sbr.rel (0) target = $region93
    $region92: #{seq2seq_forward.1} parent=1 // pred_region
      _
    $region93: #{seq2seq_forward.1} parent=1 // pred_fallthru
      _
    %3965 = vsyncpa [#allocation4], 1
    %3966 = vsyncpa [#allocation6], 1
    %3967 = vsyncpa [#allocation9], 1
    %3968 = vsyncpa [#allocation12], 1

</llo_original>
